<compile_context>
chip_gen: v7x
topology: tpu7x:2x2x1
jax: 0.10.0
libtpu: 0.0.40
codegen_flags: <defaults>
</compile_context>

<pallas_src>
import functools
import math

import jax
import jax.numpy as jnp
from jax.experimental import pallas as pl
from jax.experimental.pallas import tpu as pltpu


def _layernorm(v, w, b, eps=1e-5):
    mu = jnp.mean(v, axis=-1, keepdims=True)
    var = jnp.mean((v - mu) ** 2, axis=-1, keepdims=True)
    return (v - mu) * jax.lax.rsqrt(var + eps) * w + b


def _transformer_block_kernel(x_ref, ln_w_ref, ln_b_ref,
                              wqkv_ref, bqkv_ref,
                              wo_ref, bo_ref, wmlp_ref, bmlp_ref,
                              out_ref, attn_scratch, *, S, D, H, Bt):
    """One batch chunk (Bt sequences, flattened to N = Bt*S rows) of the block."""
    dh = D // H
    N = Bt * S
    f32 = jnp.float32
    bf16 = jnp.bfloat16

    x = x_ref[...]                        # (N, D) f32
    ln_w = ln_w_ref[...]                  # (1, D)
    ln_b = ln_b_ref[...]                  # (1, D)

    # ---- LayerNorm(inputs) (f32 math) -----------------------------------------
    norm_bf = _layernorm(x, ln_w, ln_b).astype(bf16)

    # ---- fused QKV projection: a single (N, D) @ (D, 3D) MXU pass ---------------
    # (the 1/sqrt(dh) scale is folded into the q columns of wqkv/bqkv on the host)
    qkv = jnp.dot(norm_bf, wqkv_ref[...], preferred_element_type=f32) + bqkv_ref[...]
    qkv_bf = qkv.astype(bf16)             # single bf16 cast; f32 copy dies here
    q3 = qkv_bf[:, 0 * D:1 * D].reshape(Bt, S, D)
    k3 = qkv_bf[:, 1 * D:2 * D].reshape(Bt, S, D)
    v3 = qkv_bf[:, 2 * D:3 * D].reshape(Bt, S, D)

    # ---- attention: per-head scores + f32 softmax, head outputs written to a
    #      VMEM scratch at static lane offsets (no concatenate / no per-head dot
    #      against a K=dh-padded out-projection) ---------------------------------
    # TODO(synk): for long S, switch to a query-blocked online-softmax (flash)
    # accumulator so the (Bt, S, S) score tensor never materializes; for dh < 128
    # pack 128//dh heads per MXU call to fill the lane tile.
    for h in range(H):                    # static, small H
        sl = slice(h * dh, (h + 1) * dh)
        qh = q3[:, :, sl]                 # (Bt, S, dh) bf16
        kh = k3[:, :, sl]
        vh = v3[:, :, sl]

        s = jnp.einsum('bqd,bkd->bqk', qh, kh, preferred_element_type=f32)
        s = s - jnp.max(s, axis=-1, keepdims=True)
        p = jnp.exp(s)
        p = p * pl.reciprocal(jnp.sum(p, axis=-1, keepdims=True), approx=True)

        oh = jnp.einsum('bqk,bkd->bqd', p.astype(bf16), vh,
                        preferred_element_type=f32)            # (Bt, S, dh) f32
        attn_scratch[:, sl] = oh.reshape(N, dh)

    # ---- single full-contraction out-projection + residual 1 --------------------
    mha = (jnp.dot(attn_scratch[...].astype(bf16), wo_ref[...],
                   preferred_element_type=f32)
           + bo_ref[...] + x)

    # ---- mlp_out = LayerNorm(Linear(mha)); out = mlp_out + mha ------------------
    mlp = jnp.dot(mha.astype(bf16), wmlp_ref[...],
                  preferred_element_type=f32) + bmlp_ref[...]
    mlp = _layernorm(mlp, ln_w, ln_b)

    out_ref[...] = (mlp + mha).astype(out_ref.dtype)


# ----------------------------------------------------------------------------------
# Host-side planning / weight prep
# ----------------------------------------------------------------------------------

def _vmem_limit_and_budget_bytes():
    """Generation-aware VMEM plan: raise the scoped limit above the 16/32 MiB
    defaults and keep the per-step working set well under the physical capacity
    (128 MiB on v5e/v6e, 64 MiB per TensorCore on v7x)."""
    try:
        cap = int(pltpu.get_tpu_info().vmem_capacity_bytes)
    except Exception:
        cap = 64 * 1024 * 1024            # conservative fallback: v7x per-core VMEM
    vmem_limit = (cap * 3) // 4           # leave headroom for compiler scratch
    budget = vmem_limit // 2              # per-step working-set target
    return vmem_limit, budget


def _estimate_block_vmem_bytes(Bt, S, D, weight_buffers=2):
    """Rough per-grid-step VMEM working set for a (Bt*S, D) row slab."""
    N = Bt * S
    f32, bf16 = 4, 2
    io = 2 * (N * D * f32) * 2            # double-buffered x input + output slabs
    weights = weight_buffers * 5 * D * D * bf16   # wqkv(3) + wo + wmlp, bf16
    qkv = N * 3 * D * (f32 + bf16)        # qkv f32 + bf16 copy
    acts = 4 * N * D * f32                # norm / mha / mlp / residual temporaries
    scratch = N * D * f32                 # attention-output scratch
    scores = 2 * Bt * S * S * f32         # per-head scores + probs live at once
    return io + weights + qkv + acts + scratch + scores


def _pick_block_batch(B, S, D, budget_bytes, weight_buffers=2):
    """Largest divisor of B whose estimated per-step VMEM working set fits the
    budget, capped at B//2 so the batch grid has >= 2 'parallel' steps and both of
    v7x's TensorCores get work (negligible cost on single-TC v5e/v6e)."""
    max_bt = max(1, B // 2)
    best = 1
    for bt in range(1, max_bt + 1):
        if B % bt == 0 and _estimate_block_vmem_bytes(bt, S, D, weight_buffers) <= budget_bytes:
            best = bt
    return best


def prepare_block_params(params, num_heads):
    """Host-side weight prep, done ONCE per layer (not per forward call): fused
    K-major (D, 3D) qkv weight with 1/sqrt(dh) folded into the q columns / q bias,
    pre-transposed wo/wmlp, all matmul weights cast to bf16."""
    ln_w, ln_b, wqkv, bqkv, wo, bo, wmlp, bmlp = params
    D = wo.shape[0]
    dh = D // num_heads
    scale = 1.0 / math.sqrt(dh)
    f32, bf16 = jnp.float32, jnp.bfloat16

    col_scale = jnp.concatenate(
        [jnp.full((D,), scale, f32), jnp.ones((2 * D,), f32)])[None, :]   # (1, 3D)
    wqkv_t = (wqkv.T.astype(f32) * col_scale).astype(bf16)                # (D, 3D)
    bqkv_s = (bqkv.astype(f32) * col_scale).astype(f32)                   # (1, 3D)
    wo_t = wo.T.astype(bf16)                                              # (D, D)
    wmlp_t = wmlp.T.astype(bf16)                                          # (D, D)
    return (ln_w.astype(f32), ln_b.astype(f32), wqkv_t, bqkv_s,
            wo_t, bo.astype(f32), wmlp_t, bmlp.astype(f32))


# ----------------------------------------------------------------------------------
# pallas_call wrapper
# ----------------------------------------------------------------------------------

def transformer_block(x, prepped, num_heads):
    B, S, D = x.shape
    ln_w, ln_b, wqkv_t, bqkv_s, wo_t, bo, wmlp_t, bmlp = prepped
    H = num_heads

    vmem_limit, budget = _vmem_limit_and_budget_bytes()
    Bt = _pick_block_batch(B, S, D, budget)
    grid = (B // Bt,)
    N = Bt * S

    # TODO(synk): keep HBM activations in bf16 (upcast in-kernel for LayerNorm) once
    # the consumer's accuracy budget allows; f32 I/O kept for strict f32 parity here.
    x2 = x.reshape(B * S, D).astype(jnp.float32)

    kernel = functools.partial(_transformer_block_kernel, S=S, D=D, H=H, Bt=Bt)
    operands = (x2, ln_w, ln_b, wqkv_t, bqkv_s, wo_t, bo, wmlp_t, bmlp)

    def call(single_buffer_weights):
        def const_spec(a):
            idx = lambda i, _nd=a.ndim: (0,) * _nd
            if single_buffer_weights:
                # Grid-invariant weights/biases: single-buffer to halve their VMEM
                # footprint (matters most on v7x's 64 MiB per-core VMEM).
                return pl.BlockSpec(a.shape, idx, pipeline_mode=pl.Buffered(1))
            return pl.BlockSpec(a.shape, idx)

        return pl.pallas_call(
            kernel,
            out_shape=jax.ShapeDtypeStruct((B * S, D), jnp.float32),
            grid_spec=pltpu.PrefetchScalarGridSpec(
                num_scalar_prefetch=0,
                grid=grid,
                in_specs=[pl.BlockSpec((N, D), lambda i: (i, 0))]   # x row slab
                         + [const_spec(a) for a in operands[1:]],
                out_specs=pl.BlockSpec((N, D), lambda i: (i, 0)),
                scratch_shapes=[pltpu.VMEM((N, D), jnp.float32)],   # attn output
            ),
            compiler_params=pltpu.CompilerParams(
                dimension_semantics=("parallel",),
                vmem_limit_bytes=vmem_limit,
            ),
        )(*operands)

    try:
        out2 = call(single_buffer_weights=True)
    except Exception:
        # pipeline_mode / pl.Buffered(1) not supported on this jax build:
        # fall back to default (double-buffered) weight specs.
        out2 = call(single_buffer_weights=False)

    return out2.reshape(B, S, D)


def transformer_encoder(x, layer_params, num_heads):
    """Mirrors the PyTorch TransformerEncoder.forward exactly: every block is applied
    to the ORIGINAL inputs (as written in the reference module, layers are NOT
    chained) and the last block's output is returned."""
    prepped = [prepare_block_params(p, num_heads) for p in layer_params]
    out = None
    for p in prepped:
        out = transformer_block(x, p, num_heads)
    return out


# ----------------------------------------------------------------------------------
# Pure-JAX reference + self-test
# ----------------------------------------------------------------------------------

def reference_forward(x, params, num_heads):
    """Pure-JAX f32 reference mirroring the PyTorch TransformerBlock forward."""
    ln_w, ln_b, wqkv, bqkv, wo, bo, wmlp, bmlp = params
    B, S, D = x.shape
    dh = D // num_heads

    def ln(v):
        return _layernorm(v, ln_w, ln_b)

    n = ln(x)
    qkv = n @ wqkv.T + bqkv                                  # (B, S, 3D)
    q, k, v = jnp.split(qkv, 3, axis=-1)

    def heads(t):                                            # (B, S, D) -> (B, H, S, dh)
        return t.reshape(B, S, num_heads, dh).transpose(0, 2, 1, 3)

    qh, kh, vh = heads(q), heads(k), heads(v)
    s = jnp.einsum("bhqd,bhkd->bhqk", qh * (1.0 / math.sqrt(dh)), kh)
    p = jax.nn.softmax(s, axis=-1)
    a = jnp.einsum("bhqk,bhkd->bhqd", p, vh)
    a = a.transpose(0, 2, 1, 3).reshape(B, S, D)
    mha = a @ wo.T + bo + x
    mlp = ln(mha @ wmlp.T + bmlp)
    return mlp + mha


if __name__ == "__main__":
    B, S, D, H = 2, 8, 32, 4          # small shapes; head_dim = 8
    num_layers = 1
    key = jax.random.PRNGKey(0)
    keys = jax.random.split(key, 9)

    x = jax.random.normal(keys[0], (B, S, D), dtype=jnp.float32)

    # Deterministic synthetic parameters (not a checkpoint load).
    ln_w = 1.0 + 0.05 * jax.random.normal(keys[1], (1, D), dtype=jnp.float32)
    ln_b = 0.05 * jax.random.normal(keys[2], (1, D), dtype=jnp.float32)
    wqkv = 0.05 * jax.random.normal(keys[3], (3 * D, D), dtype=jnp.float32)
    bqkv = 0.05 * jax.random.normal(keys[4], (1, 3 * D), dtype=jnp.float32)
    wo = 0.05 * jax.random.normal(keys[5], (D, D), dtype=jnp.float32)
    bo = 0.05 * jax.random.normal(keys[6], (1, D), dtype=jnp.float32)
    wmlp = 0.05 * jax.random.normal(keys[7], (D, D), dtype=jnp.float32)
    bmlp = 0.05 * jax.random.normal(keys[8], (1, D), dtype=jnp.float32)

    params = (ln_w, ln_b, wqkv, bqkv, wo, bo, wmlp, bmlp)
    layer_params = [params] * num_layers

    out = transformer_encoder(x, layer_params, num_heads=H)
    out = jax.block_until_ready(out)

    ref = reference_forward(x, params, num_heads=H)
    assert out.shape == (B, S, D)
    # bf16 matmul operands (f32 accumulation) + approx reciprocal => loose tolerance.
    assert jnp.allclose(out, ref, rtol=2e-2, atol=2e-2), "mismatch vs JAX reference"

    print("KERNEL_OK")
</pallas_src>

<mosaic_0001>
module attributes {stable_mosaic.version = 11 : i64} {
  func.func @_transformer_block_kernel(%arg0: i32, %arg1: memref<8x32xf32, #tpu.memory_space<vmem>>, %arg2: memref<1x32xf32, #tpu.memory_space<vmem>>, %arg3: memref<1x32xf32, #tpu.memory_space<vmem>>, %arg4: memref<32x96xbf16, #tpu.memory_space<vmem>>, %arg5: memref<1x96xf32, #tpu.memory_space<vmem>>, %arg6: memref<32x32xbf16, #tpu.memory_space<vmem>>, %arg7: memref<1x32xf32, #tpu.memory_space<vmem>>, %arg8: memref<32x32xbf16, #tpu.memory_space<vmem>>, %arg9: memref<1x32xf32, #tpu.memory_space<vmem>>, %arg10: memref<8x32xf32, #tpu.memory_space<vmem>>, %arg11: memref<8x32xf32, #tpu.memory_space<vmem>>) attributes {dimension_semantics = [#tpu.dimension_semantics<parallel>], iteration_bounds = array<i64: 2>, scalar_prefetch = 0 : i64, scratch_operands = 1 : i64, tpu.core_type = #tpu.core_type<tc>, window_params = [{transform_indices = @transform_0, window_bounds = array<i64: 8, 32>}, {pipeline_mode = #tpu.pipeline_mode<synchronous>, transform_indices = @transform_1, window_bounds = array<i64: 1, 32>}, {pipeline_mode = #tpu.pipeline_mode<synchronous>, transform_indices = @transform_2, window_bounds = array<i64: 1, 32>}, {pipeline_mode = #tpu.pipeline_mode<synchronous>, transform_indices = @transform_3, window_bounds = array<i64: 32, 96>}, {pipeline_mode = #tpu.pipeline_mode<synchronous>, transform_indices = @transform_4, window_bounds = array<i64: 1, 96>}, {pipeline_mode = #tpu.pipeline_mode<synchronous>, transform_indices = @transform_5, window_bounds = array<i64: 32, 32>}, {pipeline_mode = #tpu.pipeline_mode<synchronous>, transform_indices = @transform_6, window_bounds = array<i64: 1, 32>}, {pipeline_mode = #tpu.pipeline_mode<synchronous>, transform_indices = @transform_7, window_bounds = array<i64: 32, 32>}, {pipeline_mode = #tpu.pipeline_mode<synchronous>, transform_indices = @transform_8, window_bounds = array<i64: 1, 32>}, {transform_indices = @transform_9, window_bounds = array<i64: 8, 32>}]} {
    %c0 = arith.constant 0 : index
    %c0_0 = arith.constant 0 : index
    %0 = vector.load %arg1[%c0, %c0_0] : memref<8x32xf32, #tpu.memory_space<vmem>>, vector<8x32xf32>
    %c0_1 = arith.constant 0 : index
    %c0_2 = arith.constant 0 : index
    %1 = vector.load %arg2[%c0_1, %c0_2] : memref<1x32xf32, #tpu.memory_space<vmem>>, vector<1x32xf32>
    %c0_3 = arith.constant 0 : index
    %c0_4 = arith.constant 0 : index
    %2 = vector.load %arg3[%c0_3, %c0_4] : memref<1x32xf32, #tpu.memory_space<vmem>>, vector<1x32xf32>
    %cst = arith.constant dense<0.000000e+00> : vector<8xf32>
    %3 = vector.multi_reduction <add>, %0, %cst [1] : vector<8x32xf32> to vector<8xf32>
    %4 = vector.shape_cast %3 : vector<8xf32> to vector<8x1xf32>
    %cst_5 = arith.constant 3.200000e+01 : f32
    %5 = vector.broadcast %cst_5 : f32 to vector<8x1xf32>
    %6 = arith.divf %4, %5 : vector<8x1xf32>
    %7 = vector.broadcast %6 : vector<8x1xf32> to vector<8x32xf32>
    %8 = arith.subf %0, %7 : vector<8x32xf32>
    %9 = arith.mulf %8, %8 : vector<8x32xf32>
    %cst_6 = arith.constant dense<0.000000e+00> : vector<8xf32>
    %10 = vector.multi_reduction <add>, %9, %cst_6 [1] : vector<8x32xf32> to vector<8xf32>
    %11 = vector.shape_cast %10 : vector<8xf32> to vector<8x1xf32>
    %cst_7 = arith.constant 3.200000e+01 : f32
    %12 = vector.broadcast %cst_7 : f32 to vector<8x1xf32>
    %13 = arith.divf %11, %12 : vector<8x1xf32>
    %14 = vector.broadcast %6 : vector<8x1xf32> to vector<8x32xf32>
    %15 = arith.subf %0, %14 : vector<8x32xf32>
    %cst_8 = arith.constant 9.99999974E-6 : f32
    %16 = vector.broadcast %cst_8 : f32 to vector<8x1xf32>
    %17 = arith.addf %13, %16 : vector<8x1xf32>
    %18 = math.rsqrt %17 : vector<8x1xf32>
    %19 = vector.broadcast %18 : vector<8x1xf32> to vector<8x32xf32>
    %20 = arith.mulf %15, %19 : vector<8x32xf32>
    %21 = vector.broadcast %1 : vector<1x32xf32> to vector<8x32xf32>
    %22 = arith.mulf %20, %21 : vector<8x32xf32>
    %23 = vector.broadcast %2 : vector<1x32xf32> to vector<8x32xf32>
    %24 = arith.addf %22, %23 : vector<8x32xf32>
    %25 = arith.truncf %24 : vector<8x32xf32> to vector<8x32xbf16>
    %c0_9 = arith.constant 0 : index
    %c0_10 = arith.constant 0 : index
    %26 = vector.load %arg4[%c0_9, %c0_10] : memref<32x96xbf16, #tpu.memory_space<vmem>>, vector<32x96xbf16>
    %cst_11 = arith.constant dense<0.000000e+00> : vector<8x96xf32>
    %27 = tpu.matmul %25, %26, %cst_11 {dimension_numbers = #tpu.dot_dimension_numbers<[1], [0], [0], [1], [0, 0, 1, 1], [], []>} : vector<8x32xbf16>, vector<32x96xbf16>, vector<8x96xf32> -> vector<8x96xf32>
    %c0_12 = arith.constant 0 : index
    %c0_13 = arith.constant 0 : index
    %28 = vector.load %arg5[%c0_12, %c0_13] : memref<1x96xf32, #tpu.memory_space<vmem>>, vector<1x96xf32>
    %29 = vector.broadcast %28 : vector<1x96xf32> to vector<8x96xf32>
    %30 = arith.addf %27, %29 : vector<8x96xf32>
    %31 = arith.truncf %30 : vector<8x96xf32> to vector<8x96xbf16>
    %32 = vector.extract_strided_slice %31 {offsets = [0, 0], sizes = [8, 32], strides = [1, 1]} : vector<8x96xbf16> to vector<8x32xbf16>
    %33 = vector.shape_cast %32 : vector<8x32xbf16> to vector<1x8x32xbf16>
    %34 = vector.extract_strided_slice %31 {offsets = [0, 32], sizes = [8, 32], strides = [1, 1]} : vector<8x96xbf16> to vector<8x32xbf16>
    %35 = vector.shape_cast %34 : vector<8x32xbf16> to vector<1x8x32xbf16>
    %36 = vector.extract_strided_slice %31 {offsets = [0, 64], sizes = [8, 32], strides = [1, 1]} : vector<8x96xbf16> to vector<8x32xbf16>
    %37 = vector.shape_cast %36 : vector<8x32xbf16> to vector<1x8x32xbf16>
    %38 = vector.extract_strided_slice %33 {offsets = [0, 0, 0], sizes = [1, 8, 8], strides = [1, 1, 1]} : vector<1x8x32xbf16> to vector<1x8x8xbf16>
    %39 = vector.extract_strided_slice %35 {offsets = [0, 0, 0], sizes = [1, 8, 8], strides = [1, 1, 1]} : vector<1x8x32xbf16> to vector<1x8x8xbf16>
    %40 = vector.extract_strided_slice %37 {offsets = [0, 0, 0], sizes = [1, 8, 8], strides = [1, 1, 1]} : vector<1x8x32xbf16> to vector<1x8x8xbf16>
    "tpu.trace_start"() <{level = 10 : i32, message = "bqd,bkd->bqk"}> : () -> ()
    %cst_14 = arith.constant dense<0.000000e+00> : vector<1x8x8xf32>
    %41 = tpu.matmul %38, %39, %cst_14 {dimension_numbers = #tpu.dot_dimension_numbers<[2], [2], [1], [1], [0, 0, 0, 1, 1, 1], [0], [0]>} : vector<1x8x8xbf16>, vector<1x8x8xbf16>, vector<1x8x8xf32> -> vector<1x8x8xf32>
    "tpu.trace_stop"() : () -> ()
    %cst_15 = arith.constant dense<0xFF800000> : vector<1x8xf32>
    %42 = vector.multi_reduction <maximumf>, %41, %cst_15 [2] : vector<1x8x8xf32> to vector<1x8xf32>
    %43 = vector.shape_cast %42 : vector<1x8xf32> to vector<1x8x1xf32>
    %44 = vector.broadcast %43 : vector<1x8x1xf32> to vector<1x8x8xf32>
    %45 = arith.subf %41, %44 : vector<1x8x8xf32>
    %46 = math.exp %45 : vector<1x8x8xf32>
    %cst_16 = arith.constant dense<0.000000e+00> : vector<1x8xf32>
    %47 = vector.multi_reduction <add>, %46, %cst_16 [2] : vector<1x8x8xf32> to vector<1x8xf32>
    %48 = vector.shape_cast %47 : vector<1x8xf32> to vector<1x8x1xf32>
    %49 = tpu.reciprocal %48 {approx = true} : vector<1x8x1xf32> -> vector<1x8x1xf32>
    %50 = vector.broadcast %49 : vector<1x8x1xf32> to vector<1x8x8xf32>
    %51 = arith.mulf %46, %50 : vector<1x8x8xf32>
    %52 = arith.truncf %51 : vector<1x8x8xf32> to vector<1x8x8xbf16>
    "tpu.trace_start"() <{level = 10 : i32, message = "bqk,bkd->bqd"}> : () -> ()
    %cst_17 = arith.constant dense<0.000000e+00> : vector<1x8x8xf32>
    %53 = tpu.matmul %52, %40, %cst_17 {dimension_numbers = #tpu.dot_dimension_numbers<[2], [1], [1], [2], [0, 0, 0, 1, 1, 2], [0], [0]>} : vector<1x8x8xbf16>, vector<1x8x8xbf16>, vector<1x8x8xf32> -> vector<1x8x8xf32>
    "tpu.trace_stop"() : () -> ()
    %54 = vector.shape_cast %53 : vector<1x8x8xf32> to vector<8x8xf32>
    %c0_18 = arith.constant 0 : index
    %c0_19 = arith.constant 0 : index
    %55 = vector.load %arg11[%c0_18, %c0_19] : memref<8x32xf32, #tpu.memory_space<vmem>>, vector<8x8xf32>
    tpu.vector_store %arg11[%c0_18, %c0_19], %54 {strides = array<i32>} : memref<8x32xf32, #tpu.memory_space<vmem>>, vector<8x8xf32>,
    %56 = vector.extract_strided_slice %33 {offsets = [0, 0, 8], sizes = [1, 8, 8], strides = [1, 1, 1]} : vector<1x8x32xbf16> to vector<1x8x8xbf16>
    %57 = vector.extract_strided_slice %35 {offsets = [0, 0, 8], sizes = [1, 8, 8], strides = [1, 1, 1]} : vector<1x8x32xbf16> to vector<1x8x8xbf16>
    %58 = vector.extract_strided_slice %37 {offsets = [0, 0, 8], sizes = [1, 8, 8], strides = [1, 1, 1]} : vector<1x8x32xbf16> to vector<1x8x8xbf16>
    "tpu.trace_start"() <{level = 10 : i32, message = "bqd,bkd->bqk"}> : () -> ()
    %cst_20 = arith.constant dense<0.000000e+00> : vector<1x8x8xf32>
    %59 = tpu.matmul %56, %57, %cst_20 {dimension_numbers = #tpu.dot_dimension_numbers<[2], [2], [1], [1], [0, 0, 0, 1, 1, 1], [0], [0]>} : vector<1x8x8xbf16>, vector<1x8x8xbf16>, vector<1x8x8xf32> -> vector<1x8x8xf32>
    "tpu.trace_stop"() : () -> ()
    %cst_21 = arith.constant dense<0xFF800000> : vector<1x8xf32>
    %60 = vector.multi_reduction <maximumf>, %59, %cst_21 [2] : vector<1x8x8xf32> to vector<1x8xf32>
    %61 = vector.shape_cast %60 : vector<1x8xf32> to vector<1x8x1xf32>
    %62 = vector.broadcast %61 : vector<1x8x1xf32> to vector<1x8x8xf32>
    %63 = arith.subf %59, %62 : vector<1x8x8xf32>
    %64 = math.exp %63 : vector<1x8x8xf32>
    %cst_22 = arith.constant dense<0.000000e+00> : vector<1x8xf32>
    %65 = vector.multi_reduction <add>, %64, %cst_22 [2] : vector<1x8x8xf32> to vector<1x8xf32>
    %66 = vector.shape_cast %65 : vector<1x8xf32> to vector<1x8x1xf32>
    %67 = tpu.reciprocal %66 {approx = true} : vector<1x8x1xf32> -> vector<1x8x1xf32>
    %68 = vector.broadcast %67 : vector<1x8x1xf32> to vector<1x8x8xf32>
    %69 = arith.mulf %64, %68 : vector<1x8x8xf32>
    %70 = arith.truncf %69 : vector<1x8x8xf32> to vector<1x8x8xbf16>
    "tpu.trace_start"() <{level = 10 : i32, message = "bqk,bkd->bqd"}> : () -> ()
    %cst_23 = arith.constant dense<0.000000e+00> : vector<1x8x8xf32>
    %71 = tpu.matmul %70, %58, %cst_23 {dimension_numbers = #tpu.dot_dimension_numbers<[2], [1], [1], [2], [0, 0, 0, 1, 1, 2], [0], [0]>} : vector<1x8x8xbf16>, vector<1x8x8xbf16>, vector<1x8x8xf32> -> vector<1x8x8xf32>
    "tpu.trace_stop"() : () -> ()
    %72 = vector.shape_cast %71 : vector<1x8x8xf32> to vector<8x8xf32>
    %c0_24 = arith.constant 0 : index
    %c8 = arith.constant 8 : index
    %73 = vector.load %arg11[%c0_24, %c8] : memref<8x32xf32, #tpu.memory_space<vmem>>, vector<8x8xf32>
    tpu.vector_store %arg11[%c0_24, %c8], %72 {strides = array<i32>} : memref<8x32xf32, #tpu.memory_space<vmem>>, vector<8x8xf32>,
    %74 = vector.extract_strided_slice %33 {offsets = [0, 0, 16], sizes = [1, 8, 8], strides = [1, 1, 1]} : vector<1x8x32xbf16> to vector<1x8x8xbf16>
    %75 = vector.extract_strided_slice %35 {offsets = [0, 0, 16], sizes = [1, 8, 8], strides = [1, 1, 1]} : vector<1x8x32xbf16> to vector<1x8x8xbf16>
    %76 = vector.extract_strided_slice %37 {offsets = [0, 0, 16], sizes = [1, 8, 8], strides = [1, 1, 1]} : vector<1x8x32xbf16> to vector<1x8x8xbf16>
    "tpu.trace_start"() <{level = 10 : i32, message = "bqd,bkd->bqk"}> : () -> ()
    %cst_25 = arith.constant dense<0.000000e+00> : vector<1x8x8xf32>
    %77 = tpu.matmul %74, %75, %cst_25 {dimension_numbers = #tpu.dot_dimension_numbers<[2], [2], [1], [1], [0, 0, 0, 1, 1, 1], [0], [0]>} : vector<1x8x8xbf16>, vector<1x8x8xbf16>, vector<1x8x8xf32> -> vector<1x8x8xf32>
    "tpu.trace_stop"() : () -> ()
    %cst_26 = arith.constant dense<0xFF800000> : vector<1x8xf32>
    %78 = vector.multi_reduction <maximumf>, %77, %cst_26 [2] : vector<1x8x8xf32> to vector<1x8xf32>
    %79 = vector.shape_cast %78 : vector<1x8xf32> to vector<1x8x1xf32>
    %80 = vector.broadcast %79 : vector<1x8x1xf32> to vector<1x8x8xf32>
    %81 = arith.subf %77, %80 : vector<1x8x8xf32>
    %82 = math.exp %81 : vector<1x8x8xf32>
    %cst_27 = arith.constant dense<0.000000e+00> : vector<1x8xf32>
    %83 = vector.multi_reduction <add>, %82, %cst_27 [2] : vector<1x8x8xf32> to vector<1x8xf32>
    %84 = vector.shape_cast %83 : vector<1x8xf32> to vector<1x8x1xf32>
    %85 = tpu.reciprocal %84 {approx = true} : vector<1x8x1xf32> -> vector<1x8x1xf32>
    %86 = vector.broadcast %85 : vector<1x8x1xf32> to vector<1x8x8xf32>
    %87 = arith.mulf %82, %86 : vector<1x8x8xf32>
    %88 = arith.truncf %87 : vector<1x8x8xf32> to vector<1x8x8xbf16>
    "tpu.trace_start"() <{level = 10 : i32, message = "bqk,bkd->bqd"}> : () -> ()
    %cst_28 = arith.constant dense<0.000000e+00> : vector<1x8x8xf32>
    %89 = tpu.matmul %88, %76, %cst_28 {dimension_numbers = #tpu.dot_dimension_numbers<[2], [1], [1], [2], [0, 0, 0, 1, 1, 2], [0], [0]>} : vector<1x8x8xbf16>, vector<1x8x8xbf16>, vector<1x8x8xf32> -> vector<1x8x8xf32>
    "tpu.trace_stop"() : () -> ()
    %90 = vector.shape_cast %89 : vector<1x8x8xf32> to vector<8x8xf32>
    %c0_29 = arith.constant 0 : index
    %c16 = arith.constant 16 : index
    %91 = vector.load %arg11[%c0_29, %c16] : memref<8x32xf32, #tpu.memory_space<vmem>>, vector<8x8xf32>
    tpu.vector_store %arg11[%c0_29, %c16], %90 {strides = array<i32>} : memref<8x32xf32, #tpu.memory_space<vmem>>, vector<8x8xf32>,
    %92 = vector.extract_strided_slice %33 {offsets = [0, 0, 24], sizes = [1, 8, 8], strides = [1, 1, 1]} : vector<1x8x32xbf16> to vector<1x8x8xbf16>
    %93 = vector.extract_strided_slice %35 {offsets = [0, 0, 24], sizes = [1, 8, 8], strides = [1, 1, 1]} : vector<1x8x32xbf16> to vector<1x8x8xbf16>
    %94 = vector.extract_strided_slice %37 {offsets = [0, 0, 24], sizes = [1, 8, 8], strides = [1, 1, 1]} : vector<1x8x32xbf16> to vector<1x8x8xbf16>
    "tpu.trace_start"() <{level = 10 : i32, message = "bqd,bkd->bqk"}> : () -> ()
    %cst_30 = arith.constant dense<0.000000e+00> : vector<1x8x8xf32>
    %95 = tpu.matmul %92, %93, %cst_30 {dimension_numbers = #tpu.dot_dimension_numbers<[2], [2], [1], [1], [0, 0, 0, 1, 1, 1], [0], [0]>} : vector<1x8x8xbf16>, vector<1x8x8xbf16>, vector<1x8x8xf32> -> vector<1x8x8xf32>
    "tpu.trace_stop"() : () -> ()
    %cst_31 = arith.constant dense<0xFF800000> : vector<1x8xf32>
    %96 = vector.multi_reduction <maximumf>, %95, %cst_31 [2] : vector<1x8x8xf32> to vector<1x8xf32>
    %97 = vector.shape_cast %96 : vector<1x8xf32> to vector<1x8x1xf32>
    %98 = vector.broadcast %97 : vector<1x8x1xf32> to vector<1x8x8xf32>
    %99 = arith.subf %95, %98 : vector<1x8x8xf32>
    %100 = math.exp %99 : vector<1x8x8xf32>
    %cst_32 = arith.constant dense<0.000000e+00> : vector<1x8xf32>
    %101 = vector.multi_reduction <add>, %100, %cst_32 [2] : vector<1x8x8xf32> to vector<1x8xf32>
    %102 = vector.shape_cast %101 : vector<1x8xf32> to vector<1x8x1xf32>
    %103 = tpu.reciprocal %102 {approx = true} : vector<1x8x1xf32> -> vector<1x8x1xf32>
    %104 = vector.broadcast %103 : vector<1x8x1xf32> to vector<1x8x8xf32>
    %105 = arith.mulf %100, %104 : vector<1x8x8xf32>
    %106 = arith.truncf %105 : vector<1x8x8xf32> to vector<1x8x8xbf16>
    "tpu.trace_start"() <{level = 10 : i32, message = "bqk,bkd->bqd"}> : () -> ()
    %cst_33 = arith.constant dense<0.000000e+00> : vector<1x8x8xf32>
    %107 = tpu.matmul %106, %94, %cst_33 {dimension_numbers = #tpu.dot_dimension_numbers<[2], [1], [1], [2], [0, 0, 0, 1, 1, 2], [0], [0]>} : vector<1x8x8xbf16>, vector<1x8x8xbf16>, vector<1x8x8xf32> -> vector<1x8x8xf32>
    "tpu.trace_stop"() : () -> ()
    %108 = vector.shape_cast %107 : vector<1x8x8xf32> to vector<8x8xf32>
    %c0_34 = arith.constant 0 : index
    %c24 = arith.constant 24 : index
    %109 = vector.load %arg11[%c0_34, %c24] : memref<8x32xf32, #tpu.memory_space<vmem>>, vector<8x8xf32>
    tpu.vector_store %arg11[%c0_34, %c24], %108 {strides = array<i32>} : memref<8x32xf32, #tpu.memory_space<vmem>>, vector<8x8xf32>,
    %c0_35 = arith.constant 0 : index
    %c0_36 = arith.constant 0 : index
    %110 = vector.load %arg11[%c0_35, %c0_36] : memref<8x32xf32, #tpu.memory_space<vmem>>, vector<8x32xf32>
    %111 = arith.truncf %110 : vector<8x32xf32> to vector<8x32xbf16>
    %c0_37 = arith.constant 0 : index
    %c0_38 = arith.constant 0 : index
    %112 = vector.load %arg6[%c0_37, %c0_38] : memref<32x32xbf16, #tpu.memory_space<vmem>>, vector<32x32xbf16>
    %cst_39 = arith.constant dense<0.000000e+00> : vector<8x32xf32>
    %113 = tpu.matmul %111, %112, %cst_39 {dimension_numbers = #tpu.dot_dimension_numbers<[1], [0], [0], [1], [0, 0, 1, 1], [], []>} : vector<8x32xbf16>, vector<32x32xbf16>, vector<8x32xf32> -> vector<8x32xf32>
    %c0_40 = arith.constant 0 : index
    %c0_41 = arith.constant 0 : index
    %114 = vector.load %arg7[%c0_40, %c0_41] : memref<1x32xf32, #tpu.memory_space<vmem>>, vector<1x32xf32>
    %115 = vector.broadcast %114 : vector<1x32xf32> to vector<8x32xf32>
    %116 = arith.addf %113, %115 : vector<8x32xf32>
    %117 = arith.addf %116, %0 : vector<8x32xf32>
    %118 = arith.truncf %117 : vector<8x32xf32> to vector<8x32xbf16>
    %c0_42 = arith.constant 0 : index
    %c0_43 = arith.constant 0 : index
    %119 = vector.load %arg8[%c0_42, %c0_43] : memref<32x32xbf16, #tpu.memory_space<vmem>>, vector<32x32xbf16>
    %cst_44 = arith.constant dense<0.000000e+00> : vector<8x32xf32>
    %120 = tpu.matmul %118, %119, %cst_44 {dimension_numbers = #tpu.dot_dimension_numbers<[1], [0], [0], [1], [0, 0, 1, 1], [], []>} : vector<8x32xbf16>, vector<32x32xbf16>, vector<8x32xf32> -> vector<8x32xf32>
    %c0_45 = arith.constant 0 : index
    %c0_46 = arith.constant 0 : index
    %121 = vector.load %arg9[%c0_45, %c0_46] : memref<1x32xf32, #tpu.memory_space<vmem>>, vector<1x32xf32>
    %122 = vector.broadcast %121 : vector<1x32xf32> to vector<8x32xf32>
    %123 = arith.addf %120, %122 : vector<8x32xf32>
    %cst_47 = arith.constant dense<0.000000e+00> : vector<8xf32>
    %124 = vector.multi_reduction <add>, %123, %cst_47 [1] : vector<8x32xf32> to vector<8xf32>
    %125 = vector.shape_cast %124 : vector<8xf32> to vector<8x1xf32>
    %cst_48 = arith.constant 3.200000e+01 : f32
    %126 = vector.broadcast %cst_48 : f32 to vector<8x1xf32>
    %127 = arith.divf %125, %126 : vector<8x1xf32>
    %128 = vector.broadcast %127 : vector<8x1xf32> to vector<8x32xf32>
    %129 = arith.subf %123, %128 : vector<8x32xf32>
    %130 = arith.mulf %129, %129 : vector<8x32xf32>
    %cst_49 = arith.constant dense<0.000000e+00> : vector<8xf32>
    %131 = vector.multi_reduction <add>, %130, %cst_49 [1] : vector<8x32xf32> to vector<8xf32>
    %132 = vector.shape_cast %131 : vector<8xf32> to vector<8x1xf32>
    %cst_50 = arith.constant 3.200000e+01 : f32
    %133 = vector.broadcast %cst_50 : f32 to vector<8x1xf32>
    %134 = arith.divf %132, %133 : vector<8x1xf32>
    %135 = vector.broadcast %127 : vector<8x1xf32> to vector<8x32xf32>
    %136 = arith.subf %123, %135 : vector<8x32xf32>
    %cst_51 = arith.constant 9.99999974E-6 : f32
    %137 = vector.broadcast %cst_51 : f32 to vector<8x1xf32>
    %138 = arith.addf %134, %137 : vector<8x1xf32>
    %139 = math.rsqrt %138 : vector<8x1xf32>
    %140 = vector.broadcast %139 : vector<8x1xf32> to vector<8x32xf32>
    %141 = arith.mulf %136, %140 : vector<8x32xf32>
    %142 = vector.broadcast %1 : vector<1x32xf32> to vector<8x32xf32>
    %143 = arith.mulf %141, %142 : vector<8x32xf32>
    %144 = vector.broadcast %2 : vector<1x32xf32> to vector<8x32xf32>
    %145 = arith.addf %143, %144 : vector<8x32xf32>
    %146 = arith.addf %145, %117 : vector<8x32xf32>
    %c0_52 = arith.constant 0 : index
    %c0_53 = arith.constant 0 : index
    %147 = vector.load %arg10[%c0_52, %c0_53] : memref<8x32xf32, #tpu.memory_space<vmem>>, vector<8x32xf32>
    tpu.vector_store %arg10[%c0_52, %c0_53], %146 {strides = array<i32>} : memref<8x32xf32, #tpu.memory_space<vmem>>, vector<8x32xf32>,
    return
  }
  func.func @transform_0(%arg0: i32) -> (i32, i32) {
    %c0_i32 = arith.constant 0 : i32
    %c0_i32_0 = arith.constant 0 : i32
    return %arg0, %c0_i32 : i32, i32
  }
  func.func @transform_1(%arg0: i32) -> (i32, i32) {
    %c0_i32 = arith.constant 0 : i32
    %c0_i32_0 = arith.constant 0 : i32
    %c0_i32_1 = arith.constant 0 : i32
    return %c0_i32, %c0_i32_0 : i32, i32
  }
  func.func @transform_2(%arg0: i32) -> (i32, i32) {
    %c0_i32 = arith.constant 0 : i32
    %c0_i32_0 = arith.constant 0 : i32
    %c0_i32_1 = arith.constant 0 : i32
    return %c0_i32, %c0_i32_0 : i32, i32
  }
  func.func @transform_3(%arg0: i32) -> (i32, i32) {
    %c0_i32 = arith.constant 0 : i32
    %c0_i32_0 = arith.constant 0 : i32
    %c0_i32_1 = arith.constant 0 : i32
    return %c0_i32, %c0_i32_0 : i32, i32
  }
  func.func @transform_4(%arg0: i32) -> (i32, i32) {
    %c0_i32 = arith.constant 0 : i32
    %c0_i32_0 = arith.constant 0 : i32
    %c0_i32_1 = arith.constant 0 : i32
    return %c0_i32, %c0_i32_0 : i32, i32
  }
  func.func @transform_5(%arg0: i32) -> (i32, i32) {
    %c0_i32 = arith.constant 0 : i32
    %c0_i32_0 = arith.constant 0 : i32
    %c0_i32_1 = arith.constant 0 : i32
    return %c0_i32, %c0_i32_0 : i32, i32
  }
  func.func @transform_6(%arg0: i32) -> (i32, i32) {
    %c0_i32 = arith.constant 0 : i32
    %c0_i32_0 = arith.constant 0 : i32
    %c0_i32_1 = arith.constant 0 : i32
    return %c0_i32, %c0_i32_0 : i32, i32
  }
  func.func @transform_7(%arg0: i32) -> (i32, i32) {
    %c0_i32 = arith.constant 0 : i32
    %c0_i32_0 = arith.constant 0 : i32
    %c0_i32_1 = arith.constant 0 : i32
    return %c0_i32, %c0_i32_0 : i32, i32
  }
  func.func @transform_8(%arg0: i32) -> (i32, i32) {
    %c0_i32 = arith.constant 0 : i32
    %c0_i32_0 = arith.constant 0 : i32
    %c0_i32_1 = arith.constant 0 : i32
    return %c0_i32, %c0_i32_0 : i32, i32
  }
  func.func @transform_9(%arg0: i32) -> (i32, i32) {
    %c0_i32 = arith.constant 0 : i32
    %c0_i32_0 = arith.constant 0 : i32
    return %arg0, %c0_i32 : i32, i32
  }
}

module attributes {stable_mosaic.version = 11 : i64} {
  func.func @_transformer_block_kernel(%arg0: i32, %arg1: memref<8x32xf32, #tpu.memory_space<vmem>>, %arg2: memref<1x32xf32, #tpu.memory_space<vmem>>, %arg3: memref<1x32xf32, #tpu.memory_space<vmem>>, %arg4: memref<32x96xbf16, #tpu.memory_space<vmem>>, %arg5: memref<1x96xf32, #tpu.memory_space<vmem>>, %arg6: memref<32x32xbf16, #tpu.memory_space<vmem>>, %arg7: memref<1x32xf32, #tpu.memory_space<vmem>>, %arg8: memref<32x32xbf16, #tpu.memory_space<vmem>>, %arg9: memref<1x32xf32, #tpu.memory_space<vmem>>, %arg10: memref<8x32xf32, #tpu.memory_space<vmem>>, %arg11: memref<8x32xf32, #tpu.memory_space<vmem>>) attributes {dimension_semantics = [#tpu.dimension_semantics<parallel>], iteration_bounds = array<i64: 2>, scalar_prefetch = 0 : i64, scratch_operands = 1 : i64, tpu.core_type = #tpu.core_type<tc>, window_params = [{transform_indices = @transform_0, window_bounds = array<i64: 8, 32>}, {pipeline_mode = #tpu.pipeline_mode<synchronous>, transform_indices = @transform_1, window_bounds = array<i64: 1, 32>}, {pipeline_mode = #tpu.pipeline_mode<synchronous>, transform_indices = @transform_2, window_bounds = array<i64: 1, 32>}, {pipeline_mode = #tpu.pipeline_mode<synchronous>, transform_indices = @transform_3, window_bounds = array<i64: 32, 96>}, {pipeline_mode = #tpu.pipeline_mode<synchronous>, transform_indices = @transform_4, window_bounds = array<i64: 1, 96>}, {pipeline_mode = #tpu.pipeline_mode<synchronous>, transform_indices = @transform_5, window_bounds = array<i64: 32, 32>}, {pipeline_mode = #tpu.pipeline_mode<synchronous>, transform_indices = @transform_6, window_bounds = array<i64: 1, 32>}, {pipeline_mode = #tpu.pipeline_mode<synchronous>, transform_indices = @transform_7, window_bounds = array<i64: 32, 32>}, {pipeline_mode = #tpu.pipeline_mode<synchronous>, transform_indices = @transform_8, window_bounds = array<i64: 1, 32>}, {transform_indices = @transform_9, window_bounds = array<i64: 8, 32>}]} {
    %c0 = arith.constant 0 : index
    %c0_0 = arith.constant 0 : index
    %0 = vector.load %arg1[%c0, %c0_0] : memref<8x32xf32, #tpu.memory_space<vmem>>, vector<8x32xf32>
    %c0_1 = arith.constant 0 : index
    %c0_2 = arith.constant 0 : index
    %1 = vector.load %arg2[%c0_1, %c0_2] : memref<1x32xf32, #tpu.memory_space<vmem>>, vector<1x32xf32>
    %c0_3 = arith.constant 0 : index
    %c0_4 = arith.constant 0 : index
    %2 = vector.load %arg3[%c0_3, %c0_4] : memref<1x32xf32, #tpu.memory_space<vmem>>, vector<1x32xf32>
    %cst = arith.constant dense<0.000000e+00> : vector<8xf32>
    %3 = vector.multi_reduction <add>, %0, %cst [1] : vector<8x32xf32> to vector<8xf32>
    %4 = vector.shape_cast %3 : vector<8xf32> to vector<8x1xf32>
    %cst_5 = arith.constant 3.200000e+01 : f32
    %5 = vector.broadcast %cst_5 : f32 to vector<8x1xf32>
    %6 = arith.divf %4, %5 : vector<8x1xf32>
    %7 = vector.broadcast %6 : vector<8x1xf32> to vector<8x32xf32>
    %8 = arith.subf %0, %7 : vector<8x32xf32>
    %9 = arith.mulf %8, %8 : vector<8x32xf32>
    %cst_6 = arith.constant dense<0.000000e+00> : vector<8xf32>
    %10 = vector.multi_reduction <add>, %9, %cst_6 [1] : vector<8x32xf32> to vector<8xf32>
    %11 = vector.shape_cast %10 : vector<8xf32> to vector<8x1xf32>
    %cst_7 = arith.constant 3.200000e+01 : f32
    %12 = vector.broadcast %cst_7 : f32 to vector<8x1xf32>
    %13 = arith.divf %11, %12 : vector<8x1xf32>
    %14 = vector.broadcast %6 : vector<8x1xf32> to vector<8x32xf32>
    %15 = arith.subf %0, %14 : vector<8x32xf32>
    %cst_8 = arith.constant 9.99999974E-6 : f32
    %16 = vector.broadcast %cst_8 : f32 to vector<8x1xf32>
    %17 = arith.addf %13, %16 : vector<8x1xf32>
    %18 = math.rsqrt %17 : vector<8x1xf32>
    %19 = vector.broadcast %18 : vector<8x1xf32> to vector<8x32xf32>
    %20 = arith.mulf %15, %19 : vector<8x32xf32>
    %21 = vector.broadcast %1 : vector<1x32xf32> to vector<8x32xf32>
    %22 = arith.mulf %20, %21 : vector<8x32xf32>
    %23 = vector.broadcast %2 : vector<1x32xf32> to vector<8x32xf32>
    %24 = arith.addf %22, %23 : vector<8x32xf32>
    %25 = arith.truncf %24 : vector<8x32xf32> to vector<8x32xbf16>
    %c0_9 = arith.constant 0 : index
    %c0_10 = arith.constant 0 : index
    %26 = vector.load %arg4[%c0_9, %c0_10] : memref<32x96xbf16, #tpu.memory_space<vmem>>, vector<32x96xbf16>
    %cst_11 = arith.constant dense<0.000000e+00> : vector<8x96xf32>
    %27 = tpu.matmul %25, %26, %cst_11 {dimension_numbers = #tpu.dot_dimension_numbers<[1], [0], [0], [1], [0, 0, 1, 1], [], []>} : vector<8x32xbf16>, vector<32x96xbf16>, vector<8x96xf32> -> vector<8x96xf32>
    %c0_12 = arith.constant 0 : index
    %c0_13 = arith.constant 0 : index
    %28 = vector.load %arg5[%c0_12, %c0_13] : memref<1x96xf32, #tpu.memory_space<vmem>>, vector<1x96xf32>
    %29 = vector.broadcast %28 : vector<1x96xf32> to vector<8x96xf32>
    %30 = arith.addf %27, %29 : vector<8x96xf32>
    %31 = arith.truncf %30 : vector<8x96xf32> to vector<8x96xbf16>
    %32 = vector.extract_strided_slice %31 {offsets = [0, 0], sizes = [8, 32], strides = [1, 1]} : vector<8x96xbf16> to vector<8x32xbf16>
    %33 = vector.shape_cast %32 : vector<8x32xbf16> to vector<1x8x32xbf16>
    %34 = vector.extract_strided_slice %31 {offsets = [0, 32], sizes = [8, 32], strides = [1, 1]} : vector<8x96xbf16> to vector<8x32xbf16>
    %35 = vector.shape_cast %34 : vector<8x32xbf16> to vector<1x8x32xbf16>
    %36 = vector.extract_strided_slice %31 {offsets = [0, 64], sizes = [8, 32], strides = [1, 1]} : vector<8x96xbf16> to vector<8x32xbf16>
    %37 = vector.shape_cast %36 : vector<8x32xbf16> to vector<1x8x32xbf16>
    %38 = vector.extract_strided_slice %33 {offsets = [0, 0, 0], sizes = [1, 8, 8], strides = [1, 1, 1]} : vector<1x8x32xbf16> to vector<1x8x8xbf16>
    %39 = vector.extract_strided_slice %35 {offsets = [0, 0, 0], sizes = [1, 8, 8], strides = [1, 1, 1]} : vector<1x8x32xbf16> to vector<1x8x8xbf16>
    %40 = vector.extract_strided_slice %37 {offsets = [0, 0, 0], sizes = [1, 8, 8], strides = [1, 1, 1]} : vector<1x8x32xbf16> to vector<1x8x8xbf16>
    "tpu.trace_start"() <{level = 10 : i32, message = "bqd,bkd->bqk"}> : () -> ()
    %cst_14 = arith.constant dense<0.000000e+00> : vector<1x8x8xf32>
    %41 = tpu.matmul %38, %39, %cst_14 {dimension_numbers = #tpu.dot_dimension_numbers<[2], [2], [1], [1], [0, 0, 0, 1, 1, 1], [0], [0]>} : vector<1x8x8xbf16>, vector<1x8x8xbf16>, vector<1x8x8xf32> -> vector<1x8x8xf32>
    "tpu.trace_stop"() : () -> ()
    %cst_15 = arith.constant dense<0xFF800000> : vector<1x8xf32>
    %42 = vector.multi_reduction <maximumf>, %41, %cst_15 [2] : vector<1x8x8xf32> to vector<1x8xf32>
    %43 = vector.shape_cast %42 : vector<1x8xf32> to vector<1x8x1xf32>
    %44 = vector.broadcast %43 : vector<1x8x1xf32> to vector<1x8x8xf32>
    %45 = arith.subf %41, %44 : vector<1x8x8xf32>
    %46 = math.exp %45 : vector<1x8x8xf32>
    %cst_16 = arith.constant dense<0.000000e+00> : vector<1x8xf32>
    %47 = vector.multi_reduction <add>, %46, %cst_16 [2] : vector<1x8x8xf32> to vector<1x8xf32>
    %48 = vector.shape_cast %47 : vector<1x8xf32> to vector<1x8x1xf32>
    %49 = tpu.reciprocal %48 {approx = true} : vector<1x8x1xf32> -> vector<1x8x1xf32>
    %50 = vector.broadcast %49 : vector<1x8x1xf32> to vector<1x8x8xf32>
    %51 = arith.mulf %46, %50 : vector<1x8x8xf32>
    %52 = arith.truncf %51 : vector<1x8x8xf32> to vector<1x8x8xbf16>
    "tpu.trace_start"() <{level = 10 : i32, message = "bqk,bkd->bqd"}> : () -> ()
    %cst_17 = arith.constant dense<0.000000e+00> : vector<1x8x8xf32>
    %53 = tpu.matmul %52, %40, %cst_17 {dimension_numbers = #tpu.dot_dimension_numbers<[2], [1], [1], [2], [0, 0, 0, 1, 1, 2], [0], [0]>} : vector<1x8x8xbf16>, vector<1x8x8xbf16>, vector<1x8x8xf32> -> vector<1x8x8xf32>
    "tpu.trace_stop"() : () -> ()
    %54 = vector.shape_cast %53 : vector<1x8x8xf32> to vector<8x8xf32>
    %c0_18 = arith.constant 0 : index
    %c0_19 = arith.constant 0 : index
    %55 = vector.load %arg11[%c0_18, %c0_19] : memref<8x32xf32, #tpu.memory_space<vmem>>, vector<8x8xf32>
    tpu.vector_store %arg11[%c0_18, %c0_19], %54 {strides = array<i32>} : memref<8x32xf32, #tpu.memory_space<vmem>>, vector<8x8xf32>,
    %56 = vector.extract_strided_slice %33 {offsets = [0, 0, 8], sizes = [1, 8, 8], strides = [1, 1, 1]} : vector<1x8x32xbf16> to vector<1x8x8xbf16>
    %57 = vector.extract_strided_slice %35 {offsets = [0, 0, 8], sizes = [1, 8, 8], strides = [1, 1, 1]} : vector<1x8x32xbf16> to vector<1x8x8xbf16>
    %58 = vector.extract_strided_slice %37 {offsets = [0, 0, 8], sizes = [1, 8, 8], strides = [1, 1, 1]} : vector<1x8x32xbf16> to vector<1x8x8xbf16>
    "tpu.trace_start"() <{level = 10 : i32, message = "bqd,bkd->bqk"}> : () -> ()
    %cst_20 = arith.constant dense<0.000000e+00> : vector<1x8x8xf32>
    %59 = tpu.matmul %56, %57, %cst_20 {dimension_numbers = #tpu.dot_dimension_numbers<[2], [2], [1], [1], [0, 0, 0, 1, 1, 1], [0], [0]>} : vector<1x8x8xbf16>, vector<1x8x8xbf16>, vector<1x8x8xf32> -> vector<1x8x8xf32>
    "tpu.trace_stop"() : () -> ()
    %cst_21 = arith.constant dense<0xFF800000> : vector<1x8xf32>
    %60 = vector.multi_reduction <maximumf>, %59, %cst_21 [2] : vector<1x8x8xf32> to vector<1x8xf32>
    %61 = vector.shape_cast %60 : vector<1x8xf32> to vector<1x8x1xf32>
    %62 = vector.broadcast %61 : vector<1x8x1xf32> to vector<1x8x8xf32>
    %63 = arith.subf %59, %62 : vector<1x8x8xf32>
    %64 = math.exp %63 : vector<1x8x8xf32>
    %cst_22 = arith.constant dense<0.000000e+00> : vector<1x8xf32>
    %65 = vector.multi_reduction <add>, %64, %cst_22 [2] : vector<1x8x8xf32> to vector<1x8xf32>
    %66 = vector.shape_cast %65 : vector<1x8xf32> to vector<1x8x1xf32>
    %67 = tpu.reciprocal %66 {approx = true} : vector<1x8x1xf32> -> vector<1x8x1xf32>
    %68 = vector.broadcast %67 : vector<1x8x1xf32> to vector<1x8x8xf32>
    %69 = arith.mulf %64, %68 : vector<1x8x8xf32>
    %70 = arith.truncf %69 : vector<1x8x8xf32> to vector<1x8x8xbf16>
    "tpu.trace_start"() <{level = 10 : i32, message = "bqk,bkd->bqd"}> : () -> ()
    %cst_23 = arith.constant dense<0.000000e+00> : vector<1x8x8xf32>
    %71 = tpu.matmul %70, %58, %cst_23 {dimension_numbers = #tpu.dot_dimension_numbers<[2], [1], [1], [2], [0, 0, 0, 1, 1, 2], [0], [0]>} : vector<1x8x8xbf16>, vector<1x8x8xbf16>, vector<1x8x8xf32> -> vector<1x8x8xf32>
    "tpu.trace_stop"() : () -> ()
    %72 = vector.shape_cast %71 : vector<1x8x8xf32> to vector<8x8xf32>
    %c0_24 = arith.constant 0 : index
    %c8 = arith.constant 8 : index
    %73 = vector.load %arg11[%c0_24, %c8] : memref<8x32xf32, #tpu.memory_space<vmem>>, vector<8x8xf32>
    tpu.vector_store %arg11[%c0_24, %c8], %72 {strides = array<i32>} : memref<8x32xf32, #tpu.memory_space<vmem>>, vector<8x8xf32>,
    %74 = vector.extract_strided_slice %33 {offsets = [0, 0, 16], sizes = [1, 8, 8], strides = [1, 1, 1]} : vector<1x8x32xbf16> to vector<1x8x8xbf16>
    %75 = vector.extract_strided_slice %35 {offsets = [0, 0, 16], sizes = [1, 8, 8], strides = [1, 1, 1]} : vector<1x8x32xbf16> to vector<1x8x8xbf16>
    %76 = vector.extract_strided_slice %37 {offsets = [0, 0, 16], sizes = [1, 8, 8], strides = [1, 1, 1]} : vector<1x8x32xbf16> to vector<1x8x8xbf16>
    "tpu.trace_start"() <{level = 10 : i32, message = "bqd,bkd->bqk"}> : () -> ()
    %cst_25 = arith.constant dense<0.000000e+00> : vector<1x8x8xf32>
    %77 = tpu.matmul %74, %75, %cst_25 {dimension_numbers = #tpu.dot_dimension_numbers<[2], [2], [1], [1], [0, 0, 0, 1, 1, 1], [0], [0]>} : vector<1x8x8xbf16>, vector<1x8x8xbf16>, vector<1x8x8xf32> -> vector<1x8x8xf32>
    "tpu.trace_stop"() : () -> ()
    %cst_26 = arith.constant dense<0xFF800000> : vector<1x8xf32>
    %78 = vector.multi_reduction <maximumf>, %77, %cst_26 [2] : vector<1x8x8xf32> to vector<1x8xf32>
    %79 = vector.shape_cast %78 : vector<1x8xf32> to vector<1x8x1xf32>
    %80 = vector.broadcast %79 : vector<1x8x1xf32> to vector<1x8x8xf32>
    %81 = arith.subf %77, %80 : vector<1x8x8xf32>
    %82 = math.exp %81 : vector<1x8x8xf32>
    %cst_27 = arith.constant dense<0.000000e+00> : vector<1x8xf32>
    %83 = vector.multi_reduction <add>, %82, %cst_27 [2] : vector<1x8x8xf32> to vector<1x8xf32>
    %84 = vector.shape_cast %83 : vector<1x8xf32> to vector<1x8x1xf32>
    %85 = tpu.reciprocal %84 {approx = true} : vector<1x8x1xf32> -> vector<1x8x1xf32>
    %86 = vector.broadcast %85 : vector<1x8x1xf32> to vector<1x8x8xf32>
    %87 = arith.mulf %82, %86 : vector<1x8x8xf32>
    %88 = arith.truncf %87 : vector<1x8x8xf32> to vector<1x8x8xbf16>
    "tpu.trace_start"() <{level = 10 : i32, message = "bqk,bkd->bqd"}> : () -> ()
    %cst_28 = arith.constant dense<0.000000e+00> : vector<1x8x8xf32>
    %89 = tpu.matmul %88, %76, %cst_28 {dimension_numbers = #tpu.dot_dimension_numbers<[2], [1], [1], [2], [0, 0, 0, 1, 1, 2], [0], [0]>} : vector<1x8x8xbf16>, vector<1x8x8xbf16>, vector<1x8x8xf32> -> vector<1x8x8xf32>
    "tpu.trace_stop"() : () -> ()
    %90 = vector.shape_cast %89 : vector<1x8x8xf32> to vector<8x8xf32>
    %c0_29 = arith.constant 0 : index
    %c16 = arith.constant 16 : index
    %91 = vector.load %arg11[%c0_29, %c16] : memref<8x32xf32, #tpu.memory_space<vmem>>, vector<8x8xf32>
    tpu.vector_store %arg11[%c0_29, %c16], %90 {strides = array<i32>} : memref<8x32xf32, #tpu.memory_space<vmem>>, vector<8x8xf32>,
    %92 = vector.extract_strided_slice %33 {offsets = [0, 0, 24], sizes = [1, 8, 8], strides = [1, 1, 1]} : vector<1x8x32xbf16> to vector<1x8x8xbf16>
    %93 = vector.extract_strided_slice %35 {offsets = [0, 0, 24], sizes = [1, 8, 8], strides = [1, 1, 1]} : vector<1x8x32xbf16> to vector<1x8x8xbf16>
    %94 = vector.extract_strided_slice %37 {offsets = [0, 0, 24], sizes = [1, 8, 8], strides = [1, 1, 1]} : vector<1x8x32xbf16> to vector<1x8x8xbf16>
    "tpu.trace_start"() <{level = 10 : i32, message = "bqd,bkd->bqk"}> : () -> ()
    %cst_30 = arith.constant dense<0.000000e+00> : vector<1x8x8xf32>
    %95 = tpu.matmul %92, %93, %cst_30 {dimension_numbers = #tpu.dot_dimension_numbers<[2], [2], [1], [1], [0, 0, 0, 1, 1, 1], [0], [0]>} : vector<1x8x8xbf16>, vector<1x8x8xbf16>, vector<1x8x8xf32> -> vector<1x8x8xf32>
    "tpu.trace_stop"() : () -> ()
    %cst_31 = arith.constant dense<0xFF800000> : vector<1x8xf32>
    %96 = vector.multi_reduction <maximumf>, %95, %cst_31 [2] : vector<1x8x8xf32> to vector<1x8xf32>
    %97 = vector.shape_cast %96 : vector<1x8xf32> to vector<1x8x1xf32>
    %98 = vector.broadcast %97 : vector<1x8x1xf32> to vector<1x8x8xf32>
    %99 = arith.subf %95, %98 : vector<1x8x8xf32>
    %100 = math.exp %99 : vector<1x8x8xf32>
    %cst_32 = arith.constant dense<0.000000e+00> : vector<1x8xf32>
    %101 = vector.multi_reduction <add>, %100, %cst_32 [2] : vector<1x8x8xf32> to vector<1x8xf32>
    %102 = vector.shape_cast %101 : vector<1x8xf32> to vector<1x8x1xf32>
    %103 = tpu.reciprocal %102 {approx = true} : vector<1x8x1xf32> -> vector<1x8x1xf32>
    %104 = vector.broadcast %103 : vector<1x8x1xf32> to vector<1x8x8xf32>
    %105 = arith.mulf %100, %104 : vector<1x8x8xf32>
    %106 = arith.truncf %105 : vector<1x8x8xf32> to vector<1x8x8xbf16>
    "tpu.trace_start"() <{level = 10 : i32, message = "bqk,bkd->bqd"}> : () -> ()
    %cst_33 = arith.constant dense<0.000000e+00> : vector<1x8x8xf32>
    %107 = tpu.matmul %106, %94, %cst_33 {dimension_numbers = #tpu.dot_dimension_numbers<[2], [1], [1], [2], [0, 0, 0, 1, 1, 2], [0], [0]>} : vector<1x8x8xbf16>, vector<1x8x8xbf16>, vector<1x8x8xf32> -> vector<1x8x8xf32>
    "tpu.trace_stop"() : () -> ()
    %108 = vector.shape_cast %107 : vector<1x8x8xf32> to vector<8x8xf32>
    %c0_34 = arith.constant 0 : index
    %c24 = arith.constant 24 : index
    %109 = vector.load %arg11[%c0_34, %c24] : memref<8x32xf32, #tpu.memory_space<vmem>>, vector<8x8xf32>
    tpu.vector_store %arg11[%c0_34, %c24], %108 {strides = array<i32>} : memref<8x32xf32, #tpu.memory_space<vmem>>, vector<8x8xf32>,
    %c0_35 = arith.constant 0 : index
    %c0_36 = arith.constant 0 : index
    %110 = vector.load %arg11[%c0_35, %c0_36] : memref<8x32xf32, #tpu.memory_space<vmem>>, vector<8x32xf32>
    %111 = arith.truncf %110 : vector<8x32xf32> to vector<8x32xbf16>
    %c0_37 = arith.constant 0 : index
    %c0_38 = arith.constant 0 : index
    %112 = vector.load %arg6[%c0_37, %c0_38] : memref<32x32xbf16, #tpu.memory_space<vmem>>, vector<32x32xbf16>
    %cst_39 = arith.constant dense<0.000000e+00> : vector<8x32xf32>
    %113 = tpu.matmul %111, %112, %cst_39 {dimension_numbers = #tpu.dot_dimension_numbers<[1], [0], [0], [1], [0, 0, 1, 1], [], []>} : vector<8x32xbf16>, vector<32x32xbf16>, vector<8x32xf32> -> vector<8x32xf32>
    %c0_40 = arith.constant 0 : index
    %c0_41 = arith.constant 0 : index
    %114 = vector.load %arg7[%c0_40, %c0_41] : memref<1x32xf32, #tpu.memory_space<vmem>>, vector<1x32xf32>
    %115 = vector.broadcast %114 : vector<1x32xf32> to vector<8x32xf32>
    %116 = arith.addf %113, %115 : vector<8x32xf32>
    %117 = arith.addf %116, %0 : vector<8x32xf32>
    %118 = arith.truncf %117 : vector<8x32xf32> to vector<8x32xbf16>
    %c0_42 = arith.constant 0 : index
    %c0_43 = arith.constant 0 : index
    %119 = vector.load %arg8[%c0_42, %c0_43] : memref<32x32xbf16, #tpu.memory_space<vmem>>, vector<32x32xbf16>
    %cst_44 = arith.constant dense<0.000000e+00> : vector<8x32xf32>
    %120 = tpu.matmul %118, %119, %cst_44 {dimension_numbers = #tpu.dot_dimension_numbers<[1], [0], [0], [1], [0, 0, 1, 1], [], []>} : vector<8x32xbf16>, vector<32x32xbf16>, vector<8x32xf32> -> vector<8x32xf32>
    %c0_45 = arith.constant 0 : index
    %c0_46 = arith.constant 0 : index
    %121 = vector.load %arg9[%c0_45, %c0_46] : memref<1x32xf32, #tpu.memory_space<vmem>>, vector<1x32xf32>
    %122 = vector.broadcast %121 : vector<1x32xf32> to vector<8x32xf32>
    %123 = arith.addf %120, %122 : vector<8x32xf32>
    %cst_47 = arith.constant dense<0.000000e+00> : vector<8xf32>
    %124 = vector.multi_reduction <add>, %123, %cst_47 [1] : vector<8x32xf32> to vector<8xf32>
    %125 = vector.shape_cast %124 : vector<8xf32> to vector<8x1xf32>
    %cst_48 = arith.constant 3.200000e+01 : f32
    %126 = vector.broadcast %cst_48 : f32 to vector<8x1xf32>
    %127 = arith.divf %125, %126 : vector<8x1xf32>
    %128 = vector.broadcast %127 : vector<8x1xf32> to vector<8x32xf32>
    %129 = arith.subf %123, %128 : vector<8x32xf32>
    %130 = arith.mulf %129, %129 : vector<8x32xf32>
    %cst_49 = arith.constant dense<0.000000e+00> : vector<8xf32>
    %131 = vector.multi_reduction <add>, %130, %cst_49 [1] : vector<8x32xf32> to vector<8xf32>
    %132 = vector.shape_cast %131 : vector<8xf32> to vector<8x1xf32>
    %cst_50 = arith.constant 3.200000e+01 : f32
    %133 = vector.broadcast %cst_50 : f32 to vector<8x1xf32>
    %134 = arith.divf %132, %133 : vector<8x1xf32>
    %135 = vector.broadcast %127 : vector<8x1xf32> to vector<8x32xf32>
    %136 = arith.subf %123, %135 : vector<8x32xf32>
    %cst_51 = arith.constant 9.99999974E-6 : f32
    %137 = vector.broadcast %cst_51 : f32 to vector<8x1xf32>
    %138 = arith.addf %134, %137 : vector<8x1xf32>
    %139 = math.rsqrt %138 : vector<8x1xf32>
    %140 = vector.broadcast %139 : vector<8x1xf32> to vector<8x32xf32>
    %141 = arith.mulf %136, %140 : vector<8x32xf32>
    %142 = vector.broadcast %1 : vector<1x32xf32> to vector<8x32xf32>
    %143 = arith.mulf %141, %142 : vector<8x32xf32>
    %144 = vector.broadcast %2 : vector<1x32xf32> to vector<8x32xf32>
    %145 = arith.addf %143, %144 : vector<8x32xf32>
    %146 = arith.addf %145, %117 : vector<8x32xf32>
    %c0_52 = arith.constant 0 : index
    %c0_53 = arith.constant 0 : index
    %147 = vector.load %arg10[%c0_52, %c0_53] : memref<8x32xf32, #tpu.memory_space<vmem>>, vector<8x32xf32>
    tpu.vector_store %arg10[%c0_52, %c0_53], %146 {strides = array<i32>} : memref<8x32xf32, #tpu.memory_space<vmem>>, vector<8x32xf32>,
    return
  }
  func.func @transform_0(%arg0: i32) -> (i32, i32) {
    %c0_i32 = arith.constant 0 : i32
    %c0_i32_0 = arith.constant 0 : i32
    return %arg0, %c0_i32 : i32, i32
  }
  func.func @transform_1(%arg0: i32) -> (i32, i32) {
    %c0_i32 = arith.constant 0 : i32
    %c0_i32_0 = arith.constant 0 : i32
    %c0_i32_1 = arith.constant 0 : i32
    return %c0_i32, %c0_i32_0 : i32, i32
  }
  func.func @transform_2(%arg0: i32) -> (i32, i32) {
    %c0_i32 = arith.constant 0 : i32
    %c0_i32_0 = arith.constant 0 : i32
    %c0_i32_1 = arith.constant 0 : i32
    return %c0_i32, %c0_i32_0 : i32, i32
  }
  func.func @transform_3(%arg0: i32) -> (i32, i32) {
    %c0_i32 = arith.constant 0 : i32
    %c0_i32_0 = arith.constant 0 : i32
    %c0_i32_1 = arith.constant 0 : i32
    return %c0_i32, %c0_i32_0 : i32, i32
  }
  func.func @transform_4(%arg0: i32) -> (i32, i32) {
    %c0_i32 = arith.constant 0 : i32
    %c0_i32_0 = arith.constant 0 : i32
    %c0_i32_1 = arith.constant 0 : i32
    return %c0_i32, %c0_i32_0 : i32, i32
  }
  func.func @transform_5(%arg0: i32) -> (i32, i32) {
    %c0_i32 = arith.constant 0 : i32
    %c0_i32_0 = arith.constant 0 : i32
    %c0_i32_1 = arith.constant 0 : i32
    return %c0_i32, %c0_i32_0 : i32, i32
  }
  func.func @transform_6(%arg0: i32) -> (i32, i32) {
    %c0_i32 = arith.constant 0 : i32
    %c0_i32_0 = arith.constant 0 : i32
    %c0_i32_1 = arith.constant 0 : i32
    return %c0_i32, %c0_i32_0 : i32, i32
  }
  func.func @transform_7(%arg0: i32) -> (i32, i32) {
    %c0_i32 = arith.constant 0 : i32
    %c0_i32_0 = arith.constant 0 : i32
    %c0_i32_1 = arith.constant 0 : i32
    return %c0_i32, %c0_i32_0 : i32, i32
  }
  func.func @transform_8(%arg0: i32) -> (i32, i32) {
    %c0_i32 = arith.constant 0 : i32
    %c0_i32_0 = arith.constant 0 : i32
    %c0_i32_1 = arith.constant 0 : i32
    return %c0_i32, %c0_i32_0 : i32, i32
  }
  func.func @transform_9(%arg0: i32) -> (i32, i32) {
    %c0_i32 = arith.constant 0 : i32
    %c0_i32_0 = arith.constant 0 : i32
    return %arg0, %c0_i32 : i32, i32
  }
}

</mosaic_0001>

<llo_original>
// kernel: tpu_custom_call.1
$region0: #{tpu_custom_call.1}
  #allocation0 [shape = 'u32[]', space=smem, size = 0x4, offset = 0x4, fixed_abs, tag = 'smem constant byte address 0x4 - core index']
  #allocation1 [shape = 'u32[144,128]{1,0:T(1,128)}', space=vmem, size = 0x12000, scoped, tag = 'internal scratch']
  #allocation2 [shape = 'f32[8,32]{1,0:T(8,128)}', space=vmem, size = 0x1000, scoped, tag = 'scratch operand']
  %s0 = inlined_call_operand.hbm [shape: f32[16,32], index: 0, kind: input, shape index: {}]
  %s1 = inlined_call_operand.vmem [shape: f32[1,32], index: 1, kind: input, shape index: {}]
  %s2 = inlined_call_operand.vmem [shape: f32[1,32], index: 2, kind: input, shape index: {}]
  %s3 = inlined_call_operand.hbm [shape: bf16[32,96], index: 3, kind: input, shape index: {}]
  %s4 = inlined_call_operand.hbm [shape: f32[1,96], index: 4, kind: input, shape index: {}]
  %s5 = inlined_call_operand.vmem [shape: bf16[32,32], index: 5, kind: input, shape index: {}]
  %s6 = inlined_call_operand.vmem [shape: f32[1,32], index: 6, kind: input, shape index: {}]
  %s7 = inlined_call_operand.hbm [shape: bf16[32,32], index: 7, kind: input, shape index: {}]
  %s8 = inlined_call_operand.vmem [shape: f32[1,32], index: 8, kind: input, shape index: {}]
  %s9 = inlined_call_operand.hbm [shape: f32[16,32], index: 9, kind: output, shape index: {}]
  %s10 = sld [smem:[#allocation0]]
  $region85: #{tpu_custom_call.1} parent=0
    _
  %s12 = ssub.s32 1, %s10
  %s13 = scalar_select 0, %s12, %s10
  $region1: #{tpu_custom_call.1} parent=0
    #allocation3 [shape = 'u8[8192]{0}', space=vmem, size = 0x2000, scoped, tag = 'input window, operand 0']
    #allocation4 [shape = 's32[2]{0}', space=sflag, size = 0x8, scoped, tag = 'scoped memory for tpu_custom_call.1']
    #allocation5 [shape = 's32[2]{0}', space=sflag, size = 0x8, scoped, tag = 'scoped memory for tpu_custom_call.1']
    #allocation6 [shape = 'u8[8192]{0}', space=vmem, size = 0x2000, scoped, tag = 'input window, operand 3, single buffered']
    #allocation7 [shape = 's32[1]{0}', space=sflag, size = 0x4, scoped, tag = 'scoped memory for tpu_custom_call.1']
    #allocation8 [shape = 'u8[512]{0}', space=vmem, size = 0x400, scoped, tag = 'input window, operand 4, single buffered']
    #allocation9 [shape = 'u8[8192]{0}', space=vmem, size = 0x2000, scoped, tag = 'input window, operand 7, single buffered']
    #allocation10 [shape = 's32[1]{0}', space=sflag, size = 0x4, scoped, tag = 'scoped memory for tpu_custom_call.1']
    #allocation11 [shape = 'u8[8192]{0}', space=vmem, size = 0x2000, scoped, tag = 'output window, operand 0']
    %14 = vsyncpa [#allocation4], 0
    %s15 = scalar_lea.sflag [#allocation4], 1
    %16 = vsyncpa %s15, 0
    %17 = vsyncpa [#allocation7], 0
    %18 = vsyncpa [#allocation10], 0
    %19 = vsyncpa [#allocation5], 0
    %s20 = scalar_lea.sflag [#allocation5], 1
    %21 = vsyncpa %s20, 0
    loop: start=0, step=1, limit=4
    $region2: #{tpu_custom_call.1} parent=1 // loop_pre_header
      _
    $region3: #{tpu_custom_call.1} parent=1 // loop_header
      %s23 = sphi 0, %s27
      %p24 = scmp.ge.s32.totalorder %s23, 4
      %s33 = sphi 0, %s35
      %s36 = sphi 0, %s33
      %s37 = sphi 0, %s36
      %s53 = sphi 0, %s37
      %s57 = sphi 0, %s57
      %s59 = sphi 0, %s57
      %s60 = sphi 0, %s59
      %s74 = sphi 0, %s60
      %s78 = sphi 0, %s78
      %s80 = sphi 0, %s78
      %s81 = sphi 0, %s80
      %s95 = sphi 0, %s81
      %s99 = sphi 0, %s99
      %s101 = sphi 0, %s99
      %s102 = sphi 0, %s101
      %s116 = sphi 0, %s102
      %s120 = sphi 0, %s120
      %s122 = sphi 0, %s120
      %s123 = sphi 0, %s122
      %s137 = sphi 0, %s123
      %s141 = sphi 0, %s141
      %s143 = sphi 0, %s141
      %s144 = sphi 0, %s143
      %s158 = sphi 0, %s144
      %s162 = sphi 0, %s162
      %s164 = sphi 0, %s162
      %s165 = sphi 0, %s164
      %s179 = sphi 0, %s165
      %s183 = sphi 0, %s183
      %s185 = sphi 0, %s183
      %s186 = sphi 0, %s185
      %s200 = sphi 0, %s186
      %s204 = sphi 0, %s204
      %s206 = sphi 0, %s204
      %s207 = sphi 0, %s206
      %s221 = sphi 0, %s207
      %s227 = sphi 0, %s229
      %s230 = sphi 0, %s227
      %s231 = sphi 0, %s230
      %s247 = sphi 0, %s231
    $region4: #{tpu_custom_call.1} parent=1 // loop_header_branch
      %26 = sbr.rel (%p24) target = $region8
    $region5: #{tpu_custom_call.1} parent=1 // loop_body
      %s28 = ssub.s32 %s23, 1
      %s29 = ssub.s32 %s23, 2
      %s30 = sadd.s32 %s23, 1
      %s31 = ssub.s32 %s23, %s30
      %p32 = scmp.eq.s32.totalorder %s31, 0
      %s34 = sadd.s32 %s33, 1
      %s35 = scalar_select %p32, %s33, %s34
      %p38 = pneg %p32
      %p39 = scmp.eq.s32.totalorder %s23, 1
      %p40 = por %p38, %p39
      %p41 = scmp.ne.s32.totalorder %s33, %s36
      %p42 = scmp.eq.s32.totalorder %s23, 0
      %p43 = por %p41, %p42
      %p44 = scmp.ne.s32.totalorder %s33, %s36
      %p45 = scmp.eq.s32.totalorder %s28, 1
      %p46 = por %p44, %p45
      %p47 = scmp.ne.s32.totalorder %s36, %s37
      %p48 = scmp.eq.s32.totalorder %s28, 0
      %p49 = por %p47, %p48
      %p50 = scmp.ne.s32.totalorder %s36, %s37
      %p51 = scmp.eq.s32.totalorder %s29, 1
      %p52 = por %p50, %p51
      %p54 = scmp.ne.s32.totalorder %s37, %s53
      %p55 = scmp.eq.s32.totalorder %s29, 0
      %p56 = por %p54, %p55
      %s58 = sadd.s32 %s57, 1
      %p61 = scmp.eq.s32.totalorder %s23, 1
      %p62 = scmp.ne.s32.totalorder %s57, %s59
      %p63 = scmp.eq.s32.totalorder %s23, 0
      %p64 = por %p62, %p63
      %p65 = scmp.ne.s32.totalorder %s57, %s59
      %p66 = scmp.eq.s32.totalorder %s28, 1
      %p67 = por %p65, %p66
      %p68 = scmp.ne.s32.totalorder %s59, %s60
      %p69 = scmp.eq.s32.totalorder %s28, 0
      %p70 = por %p68, %p69
      %p71 = scmp.ne.s32.totalorder %s59, %s60
      %p72 = scmp.eq.s32.totalorder %s29, 1
      %p73 = por %p71, %p72
      %p75 = scmp.ne.s32.totalorder %s60, %s74
      %p76 = scmp.eq.s32.totalorder %s29, 0
      %p77 = por %p75, %p76
      %s79 = sadd.s32 %s78, 1
      %p82 = scmp.eq.s32.totalorder %s23, 1
      %p83 = scmp.ne.s32.totalorder %s78, %s80
      %p84 = scmp.eq.s32.totalorder %s23, 0
      %p85 = por %p83, %p84
      %p86 = scmp.ne.s32.totalorder %s78, %s80
      %p87 = scmp.eq.s32.totalorder %s28, 1
      %p88 = por %p86, %p87
      %p89 = scmp.ne.s32.totalorder %s80, %s81
      %p90 = scmp.eq.s32.totalorder %s28, 0
      %p91 = por %p89, %p90
      %p92 = scmp.ne.s32.totalorder %s80, %s81
      %p93 = scmp.eq.s32.totalorder %s29, 1
      %p94 = por %p92, %p93
      %p96 = scmp.ne.s32.totalorder %s81, %s95
      %p97 = scmp.eq.s32.totalorder %s29, 0
      %p98 = por %p96, %p97
      %s100 = sadd.s32 %s99, 1
      %p103 = scmp.eq.s32.totalorder %s23, 1
      %p104 = scmp.ne.s32.totalorder %s99, %s101
      %p105 = scmp.eq.s32.totalorder %s23, 0
      %p106 = por %p104, %p105
      %p107 = scmp.ne.s32.totalorder %s99, %s101
      %p108 = scmp.eq.s32.totalorder %s28, 1
      %p109 = por %p107, %p108
      %p110 = scmp.ne.s32.totalorder %s101, %s102
      %p111 = scmp.eq.s32.totalorder %s28, 0
      %p112 = por %p110, %p111
      %p113 = scmp.ne.s32.totalorder %s101, %s102
      %p114 = scmp.eq.s32.totalorder %s29, 1
      %p115 = por %p113, %p114
      %p117 = scmp.ne.s32.totalorder %s102, %s116
      %p118 = scmp.eq.s32.totalorder %s29, 0
      %p119 = por %p117, %p118
      %s121 = sadd.s32 %s120, 1
      %p124 = scmp.eq.s32.totalorder %s23, 1
      %p125 = scmp.ne.s32.totalorder %s120, %s122
      %p126 = scmp.eq.s32.totalorder %s23, 0
      %p127 = por %p125, %p126
      %p128 = scmp.ne.s32.totalorder %s120, %s122
      %p129 = scmp.eq.s32.totalorder %s28, 1
      %p130 = por %p128, %p129
      %p131 = scmp.ne.s32.totalorder %s122, %s123
      %p132 = scmp.eq.s32.totalorder %s28, 0
      %p133 = por %p131, %p132
      %p134 = scmp.ne.s32.totalorder %s122, %s123
      %p135 = scmp.eq.s32.totalorder %s29, 1
      %p136 = por %p134, %p135
      %p138 = scmp.ne.s32.totalorder %s123, %s137
      %p139 = scmp.eq.s32.totalorder %s29, 0
      %p140 = por %p138, %p139
      %s142 = sadd.s32 %s141, 1
      %p145 = scmp.eq.s32.totalorder %s23, 1
      %p146 = scmp.ne.s32.totalorder %s141, %s143
      %p147 = scmp.eq.s32.totalorder %s23, 0
      %p148 = por %p146, %p147
      %p149 = scmp.ne.s32.totalorder %s141, %s143
      %p150 = scmp.eq.s32.totalorder %s28, 1
      %p151 = por %p149, %p150
      %p152 = scmp.ne.s32.totalorder %s143, %s144
      %p153 = scmp.eq.s32.totalorder %s28, 0
      %p154 = por %p152, %p153
      %p155 = scmp.ne.s32.totalorder %s143, %s144
      %p156 = scmp.eq.s32.totalorder %s29, 1
      %p157 = por %p155, %p156
      %p159 = scmp.ne.s32.totalorder %s144, %s158
      %p160 = scmp.eq.s32.totalorder %s29, 0
      %p161 = por %p159, %p160
      %s163 = sadd.s32 %s162, 1
      %p166 = scmp.eq.s32.totalorder %s23, 1
      %p167 = scmp.ne.s32.totalorder %s162, %s164
      %p168 = scmp.eq.s32.totalorder %s23, 0
      %p169 = por %p167, %p168
      %p170 = scmp.ne.s32.totalorder %s162, %s164
      %p171 = scmp.eq.s32.totalorder %s28, 1
      %p172 = por %p170, %p171
      %p173 = scmp.ne.s32.totalorder %s164, %s165
      %p174 = scmp.eq.s32.totalorder %s28, 0
      %p175 = por %p173, %p174
      %p176 = scmp.ne.s32.totalorder %s164, %s165
      %p177 = scmp.eq.s32.totalorder %s29, 1
      %p178 = por %p176, %p177
      %p180 = scmp.ne.s32.totalorder %s165, %s179
      %p181 = scmp.eq.s32.totalorder %s29, 0
      %p182 = por %p180, %p181
      %s184 = sadd.s32 %s183, 1
      %p187 = scmp.eq.s32.totalorder %s23, 1
      %p188 = scmp.ne.s32.totalorder %s183, %s185
      %p189 = scmp.eq.s32.totalorder %s23, 0
      %p190 = por %p188, %p189
      %p191 = scmp.ne.s32.totalorder %s183, %s185
      %p192 = scmp.eq.s32.totalorder %s28, 1
      %p193 = por %p191, %p192
      %p194 = scmp.ne.s32.totalorder %s185, %s186
      %p195 = scmp.eq.s32.totalorder %s28, 0
      %p196 = por %p194, %p195
      %p197 = scmp.ne.s32.totalorder %s185, %s186
      %p198 = scmp.eq.s32.totalorder %s29, 1
      %p199 = por %p197, %p198
      %p201 = scmp.ne.s32.totalorder %s186, %s200
      %p202 = scmp.eq.s32.totalorder %s29, 0
      %p203 = por %p201, %p202
      %s205 = sadd.s32 %s204, 1
      %p208 = scmp.eq.s32.totalorder %s23, 1
      %p209 = scmp.ne.s32.totalorder %s204, %s206
      %p210 = scmp.eq.s32.totalorder %s23, 0
      %p211 = por %p209, %p210
      %p212 = scmp.ne.s32.totalorder %s204, %s206
      %p213 = scmp.eq.s32.totalorder %s28, 1
      %p214 = por %p212, %p213
      %p215 = scmp.ne.s32.totalorder %s206, %s207
      %p216 = scmp.eq.s32.totalorder %s28, 0
      %p217 = por %p215, %p216
      %p218 = scmp.ne.s32.totalorder %s206, %s207
      %p219 = scmp.eq.s32.totalorder %s29, 1
      %p220 = por %p218, %p219
      %p222 = scmp.ne.s32.totalorder %s207, %s221
      %p223 = scmp.eq.s32.totalorder %s29, 0
      %p224 = por %p222, %p223
      %s225 = ssub.s32 %s23, %s30
      %p226 = scmp.eq.s32.totalorder %s225, 0
      %s228 = sadd.s32 %s227, 1
      %s229 = scalar_select %p226, %s227, %s228
      %p232 = pneg %p226
      %p233 = scmp.eq.s32.totalorder %s23, 1
      %p234 = por %p232, %p233
      %p235 = scmp.ne.s32.totalorder %s227, %s230
      %p236 = scmp.eq.s32.totalorder %s23, 0
      %p237 = por %p235, %p236
      %p238 = scmp.ne.s32.totalorder %s227, %s230
      %p239 = scmp.eq.s32.totalorder %s28, 1
      %p240 = por %p238, %p239
      %p241 = scmp.ne.s32.totalorder %s230, %s231
      %p242 = scmp.eq.s32.totalorder %s28, 0
      %p243 = por %p241, %p242
      %p244 = scmp.ne.s32.totalorder %s230, %s231
      %p245 = scmp.eq.s32.totalorder %s29, 1
      %p246 = por %p244, %p245
      %p248 = scmp.ne.s32.totalorder %s231, %s247
      %p249 = scmp.eq.s32.totalorder %s29, 0
      %p250 = por %p248, %p249
      %p251 = scmp.le.s32.totalorder 1, %s23
      %p252 = scmp.lt.s32.totalorder %s23, 3
      %p253 = pnand %p251, %p252
      %p254 = pneg %p253
      // Predicated region
      $region9: #{tpu_custom_call.1} parent=5 // pred_check
        _
      $region10: #{tpu_custom_call.1} parent=5 // pred_check_branch
        %256 = sbr.rel (%p253) target = $region12
      $region11: #{tpu_custom_call.1} parent=5 // pred_region
        %s257 = ssub.s32 %s23, 1
        // Predicated region
        $region13: #{tpu_custom_call.1} parent=11 // pred_check
          %p258 = pneg %p70
        $region14: #{tpu_custom_call.1} parent=11 // pred_check_branch
          %260 = sbr.rel (%p258) target = $region16
        $region15: #{tpu_custom_call.1} parent=11 // pred_region
          _
        $region16: #{tpu_custom_call.1} parent=11 // pred_fallthru
          _
        // Predicated region
        $region17: #{tpu_custom_call.1} parent=11 // pred_check
          %p261 = pneg %p91
        $region18: #{tpu_custom_call.1} parent=11 // pred_check_branch
          %263 = sbr.rel (%p261) target = $region20
        $region19: #{tpu_custom_call.1} parent=11 // pred_region
          _
        $region20: #{tpu_custom_call.1} parent=11 // pred_fallthru
          _
        // Predicated region
        $region21: #{tpu_custom_call.1} parent=11 // pred_check
          %p264 = pneg %p112
        $region22: #{tpu_custom_call.1} parent=11 // pred_check_branch
          %266 = sbr.rel (%p264) target = $region24
        $region23: #{tpu_custom_call.1} parent=11 // pred_region
          %s268 = ssub.s32 256, 256
          %269 = vsyncadd [#allocation7], %s268
          %s270 = sshll.u32 [#allocation6], 4
          %s271 = int_to_ptr.vmem [resolvable:$true] %s270
          %276 = dma.hbm_to_vmem [thread:$0]  %s3, 256, %s271, [#allocation7], 64, 64, 4
        $region24: #{tpu_custom_call.1} parent=11 // pred_fallthru
          _
        // Predicated region
        $region25: #{tpu_custom_call.1} parent=11 // pred_check
          %p277 = pneg %p133
        $region26: #{tpu_custom_call.1} parent=11 // pred_check_branch
          %279 = sbr.rel (%p277) target = $region28
        $region27: #{tpu_custom_call.1} parent=11 // pred_region
          %s281 = ssub.s32 16, 16
          %282 = vsyncadd [#allocation7], %s281
          %s284 = sshll.u32 [#allocation8], 4
          %s285 = int_to_ptr.vmem [resolvable:$true] %s284
          %287 = dma.hbm_to_vmem [thread:$0]  %s4, 16, %s285, [#allocation7]
        $region28: #{tpu_custom_call.1} parent=11 // pred_fallthru
          _
        // Predicated region
        $region29: #{tpu_custom_call.1} parent=11 // pred_check
          %p288 = pneg %p154
        $region30: #{tpu_custom_call.1} parent=11 // pred_check_branch
          %290 = sbr.rel (%p288) target = $region32
        $region31: #{tpu_custom_call.1} parent=11 // pred_region
          _
        $region32: #{tpu_custom_call.1} parent=11 // pred_fallthru
          _
        // Predicated region
        $region33: #{tpu_custom_call.1} parent=11 // pred_check
          %p291 = pneg %p175
        $region34: #{tpu_custom_call.1} parent=11 // pred_check_branch
          %293 = sbr.rel (%p291) target = $region36
        $region35: #{tpu_custom_call.1} parent=11 // pred_region
          _
        $region36: #{tpu_custom_call.1} parent=11 // pred_fallthru
          _
        // Predicated region
        $region37: #{tpu_custom_call.1} parent=11 // pred_check
          %p294 = pneg %p196
        $region38: #{tpu_custom_call.1} parent=11 // pred_check_branch
          %296 = sbr.rel (%p294) target = $region40
        $region39: #{tpu_custom_call.1} parent=11 // pred_region
          %s298 = ssub.s32 256, 256
          %299 = vsyncadd [#allocation10], %s298
          %s300 = sshll.u32 [#allocation9], 4
          %s301 = int_to_ptr.vmem [resolvable:$true] %s300
          %306 = dma.hbm_to_vmem [thread:$0]  %s7, 256, %s301, [#allocation10], 64, 64, 4
        $region40: #{tpu_custom_call.1} parent=11 // pred_fallthru
          _
        // Predicated region
        $region41: #{tpu_custom_call.1} parent=11 // pred_check
          %p307 = pneg %p217
        $region42: #{tpu_custom_call.1} parent=11 // pred_check_branch
          %309 = sbr.rel (%p307) target = $region44
        $region43: #{tpu_custom_call.1} parent=11 // pred_region
          _
        $region44: #{tpu_custom_call.1} parent=11 // pred_fallthru
          _
      $region12: #{tpu_custom_call.1} parent=5 // pred_fallthru
        _
      %p310 = scmp.lt.s32.totalorder %s23, 2
      // Predicated region
      $region45: #{tpu_custom_call.1} parent=5 // pred_check
        %p311 = pneg %p310
      $region46: #{tpu_custom_call.1} parent=5 // pred_check_branch
        %313 = sbr.rel (%p311) target = $region48
      $region47: #{tpu_custom_call.1} parent=5 // pred_region
        // Predicated region
        $region49: #{tpu_custom_call.1} parent=47 // pred_check
          %p314 = pneg %p43
        $region50: #{tpu_custom_call.1} parent=47 // pred_check_branch
          %316 = sbr.rel (%p314) target = $region52
        $region51: #{tpu_custom_call.1} parent=47 // pred_region
          %s317 = sand.u32 %s33, 1
          %s318 = scalar_lea.sflag [#allocation4], %s317
          %s319 = sand.u32 %s33, 1
          %s320 = smul.addr %s319, 8
          %s321 = scalar_lea.vmem [#allocation3], %s320
          %s323 = ssub.s32 128, 128
          %324 = vsyncadd %s318, %s323
          %s325 = smul.addr %s23, 128
          %s326 = scalar_lea.hbm %s0, %s325
          %s328 = sshll.u32 %s321, 4
          %s329 = int_to_ptr.vmem [resolvable:$true] %s328
          %331 = dma.hbm_to_vmem [thread:$0]  %s326, 128, %s329, %s318
        $region52: #{tpu_custom_call.1} parent=47 // pred_fallthru
          _
      $region48: #{tpu_custom_call.1} parent=5 // pred_fallthru
        _
      %p332 = scmp.le.s32.totalorder 1, %s23
      %p333 = scmp.lt.s32.totalorder %s23, 3
      %p334 = pnand %p332, %p333
      %p335 = pneg %p334
      // Predicated region
      $region53: #{tpu_custom_call.1} parent=5 // pred_check
        _
      $region54: #{tpu_custom_call.1} parent=5 // pred_check_branch
        %337 = sbr.rel (%p334) target = $region56
      $region55: #{tpu_custom_call.1} parent=5 // pred_region
        %s338 = ssub.s32 %s23, 1
        %s339 = sand.u32 %s36, 1
        %s340 = scalar_lea.sflag [#allocation4], %s339
        %s341 = sand.u32 %s36, 1
        %s342 = smul.addr %s341, 8
        %s343 = scalar_lea.vmem [#allocation3], %s342
        // Predicated region
        $region57: #{tpu_custom_call.1} parent=55 // pred_check
          %p344 = pneg %p49
        $region58: #{tpu_custom_call.1} parent=55 // pred_check_branch
          %346 = sbr.rel (%p344) target = $region60
        $region59: #{tpu_custom_call.1} parent=55 // pred_region
          %347 = dma.done %s340, 128
        $region60: #{tpu_custom_call.1} parent=55 // pred_fallthru
          _
        // Predicated region
        $region61: #{tpu_custom_call.1} parent=55 // pred_check
          %p348 = pneg %p112
        $region62: #{tpu_custom_call.1} parent=55 // pred_check_branch
          %350 = sbr.rel (%p348) target = $region64
        $region63: #{tpu_custom_call.1} parent=55 // pred_region
          %351 = dma.done [#allocation7], 256
        $region64: #{tpu_custom_call.1} parent=55 // pred_fallthru
          _
        // Predicated region
        $region65: #{tpu_custom_call.1} parent=55 // pred_check
          %p352 = pneg %p133
        $region66: #{tpu_custom_call.1} parent=55 // pred_check_branch
          %354 = sbr.rel (%p352) target = $region68
        $region67: #{tpu_custom_call.1} parent=55 // pred_region
          %355 = dma.done [#allocation7], 16
        $region68: #{tpu_custom_call.1} parent=55 // pred_fallthru
          _
        // Predicated region
        $region69: #{tpu_custom_call.1} parent=55 // pred_check
          %p356 = pneg %p196
        $region70: #{tpu_custom_call.1} parent=55 // pred_check_branch
          %358 = sbr.rel (%p356) target = $region72
        $region71: #{tpu_custom_call.1} parent=55 // pred_region
          %359 = dma.done [#allocation10], 256
        $region72: #{tpu_custom_call.1} parent=55 // pred_fallthru
          _
        %s360 = sand.u32 %s36, 1
        %s361 = scalar_lea.sflag [#allocation4], %s360
        %s362 = sand.u32 %s36, 1
        %s363 = smul.addr %s362, 8
        %s364 = scalar_lea.vmem [#allocation3], %s363
        %p365 = pneg %p49
        %p366 = pneg %p46
        %p367 = pneg %p70
        %p368 = pneg %p67
        %p369 = pneg %p91
        %p370 = pneg %p88
        %p371 = pneg %p112
        %p372 = pneg %p109
        %p373 = pneg %p133
        %p374 = pneg %p130
        %p375 = pneg %p154
        %p376 = pneg %p151
        %p377 = pneg %p175
        %p378 = pneg %p172
        %p379 = pneg %p196
        %p380 = pneg %p193
        %p381 = pneg %p217
        %p382 = pneg %p214
        %p383 = pneg %p243
        %p384 = pneg %p240
        %s385 = sand.u32 %s230, 1
        %s386 = scalar_lea.sflag [#allocation5], %s385
        %s387 = sand.u32 %s230, 1
        %s388 = smul.addr %s387, 8
        %s389 = scalar_lea.vmem [#allocation11], %s388
        %v391 = vld [vmem:[%s343] sm:$0xff]
        %v392 = vld [vmem:[%s1] sm:$0x1]
        %v393 = vld [vmem:[%s2] sm:$0x1]
        %vm394 = vcmask 261120
        %v395 = vsel %vm394, %v391, 0.0
        %396 = vadd.xlane.f32.xlu0 %v395
        %v397 = vpop.xlane.xlu0 %396
        %v398 = vrcp.pop 32.0
        %v399 = vmul.f32 %v397, %v398
        %v400 = vsub.f32 %v391, %v399
        %v401 = vmul.f32 %v400, %v400
        %v402 = vsel %vm394, %v401, 0.0
        %403 = vadd.xlane.f32.xlu0 %v402
        %v404 = vpop.xlane.xlu0 %403
        %v405 = vmul.f32 %v404, %v398
        %v406 = vadd.f32 %v405, 1e-05
        %v407 = vrsqrt.pop %v406
        %v408 = vmul.f32 %v400, %v407
        %v410 = vlaneseq
        %v411 = vshrl.u32 %v410, 7
        %v412 = vsub.s32 0, %v411
        %v413 = vrot.slane %v392, %v412
        %v415 = vmul.f32 %v408, %v413
        %v417 = vlaneseq
        %v418 = vshrl.u32 %v417, 7
        %v419 = vsub.s32 0, %v418
        %v420 = vrot.slane %v393, %v419
        %v422 = vadd.f32 %v415, %v420
        %v423 = vpack.c.bf16 %v422, %v422
        %v424 = vld [vmem:[#allocation6] sm:$0xf]
        %v425 = vld [vmem:[#allocation6 + $0x4] sm:$0xf]
        %v426 = vld [vmem:[#allocation6 + $0x8] sm:$0xf]
        %v427 = vld [vmem:[#allocation6 + $0xc] sm:$0xf]
        %v428 = vld [vmem:[#allocation8] sm:$0x1]
        %v430 = vlaneseq
        %v431 = vshrl.u32 %v430, 7
        %v432 = vsub.s32 0, %v431
        %v433 = vrot.slane %v428, %v432
        %v439 = vunpack.c.l.b16 %v424
        %v440 = vunpack.c.l.b16 %v425
        %v441 = vunpack.c.l.b16 %v426
        %v442 = vunpack.c.l.b16 %v427
        %v443 = vpack.c.b16 %v440, %v439
        %v444 = vpack.c.b16 %v442, %v441
        %v448 = vsel %vm394, %v423, 0
        %450 = vmatprep.subr.bf16.mxu0 0
        %451 = vmatpush1.bf16.msra.mxu0 %v443
        %452 = vmatprep.subr.bf16.mxu0 0
        %453 = vmatpush1.bf16.msra.mxu0 %v444
        %454 = vmatprep.subr.bf16.mxu0 0
        %455 = vmatpush1.bf16.msra.mxu0 0
        %456 = vmatprep.subr.bf16.mxu0 0
        %457 = vmatpush1.bf16.msra.mxu0 0
        %458 = vmatprep.subr.bf16.mxu0 0
        %459 = vmatpush1.bf16.msra.mxu0 0
        %460 = vmatprep.subr.bf16.mxu0 0
        %461 = vmatpush1.bf16.msra.mxu0 0
        %462 = vmatprep.subr.bf16.mxu0 0
        %463 = vmatpush1.bf16.msra.mxu0 0
        %464 = vmatprep.subr.bf16.mxu0 0
        %465 = vmatpush1.bf16.msra.mxu0 0
        %466 = vmatprep.subr.bf16.mxu0 0
        %467 = vmatpush1.bf16.msra.mxu0 0
        %468 = vmatprep.subr.bf16.mxu0 0
        %469 = vmatpush1.bf16.msra.mxu0 0
        %470 = vmatprep.subr.bf16.mxu0 0
        %471 = vmatpush1.bf16.msra.mxu0 0
        %472 = vmatprep.subr.bf16.mxu0 0
        %473 = vmatpush1.bf16.msra.mxu0 0
        %474 = vmatprep.subr.bf16.mxu0 0
        %475 = vmatpush1.bf16.msra.mxu0 0
        %476 = vmatprep.subr.bf16.mxu0 0
        %477 = vmatpush1.bf16.msra.mxu0 0
        %478 = vmatprep.subr.bf16.mxu0 0
        %479 = vmatpush1.bf16.msra.mxu0 0
        %480 = vmatprep.subr.bf16.mxu0 0
        %481 = vmatpush1.bf16.msra.mxu0 0
        %482 = vmatprep.mubr.bf16.mxu0 0
        %483 = vmatmul.mubr.bf16.gmra.mrb[0].mxu0 %v448
        %v484 = vpop.f32.mrb[0].mxu0
        %v485 = vadd.f32 %v433, %v484
        %v486 = vpop.f32.mrb[0].mxu0
        %v487 = vpop.f32.mrb[0].mxu0
        %v488 = vpop.f32.mrb[0].mxu0
        %489 = vdwg.mxu0
        %v490 = vpack.c.bf16 %v485, %v485
        %492 = vrot.lane.b32.xlu0 %v490, 96
        %v493 = vpop.permute.xlu0 %492
        %vm494 = vcmask 64512
        %v496 = vsel %vm494, %v490, 0
        %v499 = vsel %vm494, %v493, 0
        %501 = vmatprep.subr.bf16.mxu0 0
        %502 = vmatpush1.bf16.xpose.msra.mxu0 %v499
        %503 = vmatprep.subr.bf16.mxu0 0
        %504 = vmatpush1.bf16.xpose.msra.mxu0 0
        %505 = vmatprep.subr.bf16.mxu0 0
        %506 = vmatpush1.bf16.xpose.msra.mxu0 0
        %507 = vmatprep.subr.bf16.mxu0 0
        %508 = vmatpush1.bf16.xpose.msra.mxu0 0
        %509 = vmatprep.subr.bf16.mxu0 0
        %510 = vmatpush1.bf16.xpose.msra.mxu0 0
        %511 = vmatprep.subr.bf16.mxu0 0
        %512 = vmatpush1.bf16.xpose.msra.mxu0 0
        %513 = vmatprep.subr.bf16.mxu0 0
        %514 = vmatpush1.bf16.xpose.msra.mxu0 0
        %515 = vmatprep.subr.bf16.mxu0 0
        %516 = vmatpush1.bf16.xpose.msra.mxu0 0
        %517 = vmatprep.subr.bf16.mxu0 0
        %518 = vmatpush1.bf16.xpose.msra.mxu0 0
        %519 = vmatprep.subr.bf16.mxu0 0
        %520 = vmatpush1.bf16.xpose.msra.mxu0 0
        %521 = vmatprep.subr.bf16.mxu0 0
        %522 = vmatpush1.bf16.xpose.msra.mxu0 0
        %523 = vmatprep.subr.bf16.mxu0 0
        %524 = vmatpush1.bf16.xpose.msra.mxu0 0
        %525 = vmatprep.subr.bf16.mxu0 0
        %526 = vmatpush1.bf16.xpose.msra.mxu0 0
        %527 = vmatprep.subr.bf16.mxu0 0
        %528 = vmatpush1.bf16.xpose.msra.mxu0 0
        %529 = vmatprep.subr.bf16.mxu0 0
        %530 = vmatpush1.bf16.xpose.msra.mxu0 0
        %531 = vmatprep.subr.bf16.mxu0 0
        %532 = vmatpush1.bf16.xpose.msra.mxu0 0
        %533 = vmatprep.mubr.bf16.mxu0 0
        %534 = vmatmul.mubr.bf16.gmra.mrb[0].mxu0 %v496
        %v535 = vpop.f32.mrb[0].mxu0
        %v536 = vadd.f32 0.0, %v535
        %v537 = vpop.f32.mrb[0].mxu0
        %v538 = vpop.f32.mrb[0].mxu0
        %v539 = vpop.f32.mrb[0].mxu0
        %540 = vdwg.mxu0
        %v541 = vsel %vm494, %v536, -inf
        %542 = vmax.xlane.f32.xlu0 %v541
        %v543 = vpop.xlane.xlu0 %542
        %v544 = vsub.f32 %v536, %v543
        %v545 = vmul.f32 %v544, 1.442695
        %v546 = vpow.pop %v545
        %v547 = vsel %vm494, %v546, 0.0
        %548 = vadd.xlane.f32.xlu0 %v547
        %v549 = vpop.xlane.xlu0 %548
        %v550 = vrcp.pop %v549
        %v551 = vmul.f32 %v546, %v550
        %v552 = vpack.c.bf16 %v551, %v551
        %553 = vrot.lane.b32.xlu0 %v490, 64
        %v554 = vpop.permute.xlu0 %553
        %v556 = vsel %vm494, %v552, 0
        %vm558 = vcmask 1043456
        %v560 = vsel %vm558, %v554, 0
        %562 = vmatprep.subr.bf16.mxu0 0
        %563 = vmatpush1.bf16.msra.mxu0 %v560
        %564 = vmatprep.subr.bf16.mxu0 0
        %565 = vmatpush1.bf16.msra.mxu0 0
        %566 = vmatprep.subr.bf16.mxu0 0
        %567 = vmatpush1.bf16.msra.mxu0 0
        %568 = vmatprep.subr.bf16.mxu0 0
        %569 = vmatpush1.bf16.msra.mxu0 0
        %570 = vmatprep.subr.bf16.mxu0 0
        %571 = vmatpush1.bf16.msra.mxu0 0
        %572 = vmatprep.subr.bf16.mxu0 0
        %573 = vmatpush1.bf16.msra.mxu0 0
        %574 = vmatprep.subr.bf16.mxu0 0
        %575 = vmatpush1.bf16.msra.mxu0 0
        %576 = vmatprep.subr.bf16.mxu0 0
        %577 = vmatpush1.bf16.msra.mxu0 0
        %578 = vmatprep.subr.bf16.mxu0 0
        %579 = vmatpush1.bf16.msra.mxu0 0
        %580 = vmatprep.subr.bf16.mxu0 0
        %581 = vmatpush1.bf16.msra.mxu0 0
        %582 = vmatprep.subr.bf16.mxu0 0
        %583 = vmatpush1.bf16.msra.mxu0 0
        %584 = vmatprep.subr.bf16.mxu0 0
        %585 = vmatpush1.bf16.msra.mxu0 0
        %586 = vmatprep.subr.bf16.mxu0 0
        %587 = vmatpush1.bf16.msra.mxu0 0
        %588 = vmatprep.subr.bf16.mxu0 0
        %589 = vmatpush1.bf16.msra.mxu0 0
        %590 = vmatprep.subr.bf16.mxu0 0
        %591 = vmatpush1.bf16.msra.mxu0 0
        %592 = vmatprep.subr.bf16.mxu0 0
        %593 = vmatpush1.bf16.msra.mxu0 0
        %594 = vmatprep.mubr.bf16.mxu0 0
        %595 = vmatmul.mubr.bf16.gmra.mrb[0].mxu0 %v556
        %v596 = vpop.f32.mrb[0].mxu0
        %v597 = vadd.f32 0.0, %v596
        %v598 = vpop.f32.mrb[0].mxu0
        %v599 = vpop.f32.mrb[0].mxu0
        %v600 = vpop.f32.mrb[0].mxu0
        %601 = vdwg.mxu0
        %602 = vst.msk [vmem:[#allocation2] sm:$0xff] %vm494, %v597
        %603 = vrot.lane.b32.xlu0 %v490, 120
        %v604 = vpop.permute.xlu0 %603
        %605 = vrot.lane.b32.xlu0 %v490, 88
        %v606 = vpop.permute.xlu0 %605
        %v608 = vsel %vm494, %v604, 0
        %v611 = vsel %vm494, %v606, 0
        %613 = vmatprep.subr.bf16.mxu0 0
        %614 = vmatpush1.bf16.xpose.msra.mxu0 %v611
        %615 = vmatprep.subr.bf16.mxu0 0
        %616 = vmatpush1.bf16.xpose.msra.mxu0 0
        %617 = vmatprep.subr.bf16.mxu0 0
        %618 = vmatpush1.bf16.xpose.msra.mxu0 0
        %619 = vmatprep.subr.bf16.mxu0 0
        %620 = vmatpush1.bf16.xpose.msra.mxu0 0
        %621 = vmatprep.subr.bf16.mxu0 0
        %622 = vmatpush1.bf16.xpose.msra.mxu0 0
        %623 = vmatprep.subr.bf16.mxu0 0
        %624 = vmatpush1.bf16.xpose.msra.mxu0 0
        %625 = vmatprep.subr.bf16.mxu0 0
        %626 = vmatpush1.bf16.xpose.msra.mxu0 0
        %627 = vmatprep.subr.bf16.mxu0 0
        %628 = vmatpush1.bf16.xpose.msra.mxu0 0
        %629 = vmatprep.subr.bf16.mxu0 0
        %630 = vmatpush1.bf16.xpose.msra.mxu0 0
        %631 = vmatprep.subr.bf16.mxu0 0
        %632 = vmatpush1.bf16.xpose.msra.mxu0 0
        %633 = vmatprep.subr.bf16.mxu0 0
        %634 = vmatpush1.bf16.xpose.msra.mxu0 0
        %635 = vmatprep.subr.bf16.mxu0 0
        %636 = vmatpush1.bf16.xpose.msra.mxu0 0
        %637 = vmatprep.subr.bf16.mxu0 0
        %638 = vmatpush1.bf16.xpose.msra.mxu0 0
        %639 = vmatprep.subr.bf16.mxu0 0
        %640 = vmatpush1.bf16.xpose.msra.mxu0 0
        %641 = vmatprep.subr.bf16.mxu0 0
        %642 = vmatpush1.bf16.xpose.msra.mxu0 0
        %643 = vmatprep.subr.bf16.mxu0 0
        %644 = vmatpush1.bf16.xpose.msra.mxu0 0
        %645 = vmatprep.mubr.bf16.mxu0 0
        %646 = vmatmul.mubr.bf16.gmra.mrb[0].mxu0 %v608
        %v647 = vpop.f32.mrb[0].mxu0
        %v648 = vadd.f32 0.0, %v647
        %v649 = vpop.f32.mrb[0].mxu0
        %v650 = vpop.f32.mrb[0].mxu0
        %v651 = vpop.f32.mrb[0].mxu0
        %652 = vdwg.mxu0
        %v653 = vsel %vm494, %v648, -inf
        %654 = vmax.xlane.f32.xlu0 %v653
        %v655 = vpop.xlane.xlu0 %654
        %v656 = vsub.f32 %v648, %v655
        %v657 = vmul.f32 %v656, 1.442695
        %v658 = vpow.pop %v657
        %v659 = vsel %vm494, %v658, 0.0
        %660 = vadd.xlane.f32.xlu0 %v659
        %v661 = vpop.xlane.xlu0 %660
        %v662 = vrcp.pop %v661
        %v663 = vmul.f32 %v658, %v662
        %v664 = vpack.c.bf16 %v663, %v663
        %665 = vrot.lane.b32.xlu0 %v490, 56
        %v666 = vpop.permute.xlu0 %665
        %v668 = vsel %vm494, %v664, 0
        %v671 = vsel %vm558, %v666, 0
        %673 = vmatprep.subr.bf16.mxu0 0
        %674 = vmatpush1.bf16.msra.mxu0 %v671
        %675 = vmatprep.subr.bf16.mxu0 0
        %676 = vmatpush1.bf16.msra.mxu0 0
        %677 = vmatprep.subr.bf16.mxu0 0
        %678 = vmatpush1.bf16.msra.mxu0 0
        %679 = vmatprep.subr.bf16.mxu0 0
        %680 = vmatpush1.bf16.msra.mxu0 0
        %681 = vmatprep.subr.bf16.mxu0 0
        %682 = vmatpush1.bf16.msra.mxu0 0
        %683 = vmatprep.subr.bf16.mxu0 0
        %684 = vmatpush1.bf16.msra.mxu0 0
        %685 = vmatprep.subr.bf16.mxu0 0
        %686 = vmatpush1.bf16.msra.mxu0 0
        %687 = vmatprep.subr.bf16.mxu0 0
        %688 = vmatpush1.bf16.msra.mxu0 0
        %689 = vmatprep.subr.bf16.mxu0 0
        %690 = vmatpush1.bf16.msra.mxu0 0
        %691 = vmatprep.subr.bf16.mxu0 0
        %692 = vmatpush1.bf16.msra.mxu0 0
        %693 = vmatprep.subr.bf16.mxu0 0
        %694 = vmatpush1.bf16.msra.mxu0 0
        %695 = vmatprep.subr.bf16.mxu0 0
        %696 = vmatpush1.bf16.msra.mxu0 0
        %697 = vmatprep.subr.bf16.mxu0 0
        %698 = vmatpush1.bf16.msra.mxu0 0
        %699 = vmatprep.subr.bf16.mxu0 0
        %700 = vmatpush1.bf16.msra.mxu0 0
        %701 = vmatprep.subr.bf16.mxu0 0
        %702 = vmatpush1.bf16.msra.mxu0 0
        %703 = vmatprep.subr.bf16.mxu0 0
        %704 = vmatpush1.bf16.msra.mxu0 0
        %705 = vmatprep.mubr.bf16.mxu0 0
        %706 = vmatmul.mubr.bf16.gmra.mrb[0].mxu0 %v668
        %v707 = vpop.f32.mrb[0].mxu0
        %v708 = vadd.f32 0.0, %v707
        %v709 = vpop.f32.mrb[0].mxu0
        %v710 = vpop.f32.mrb[0].mxu0
        %v711 = vpop.f32.mrb[0].mxu0
        %712 = vdwg.mxu0
        %714 = vrot.lane.b32.xlu0 %v708, 8
        %v715 = vpop.permute.xlu0 %714
        %vm717 = vcmask 130112
        %718 = vst.msk [vmem:[#allocation2] sm:$0xff] %vm717, %v715
        %719 = vrot.lane.b32.xlu0 %v490, 112
        %v720 = vpop.permute.xlu0 %719
        %721 = vrot.lane.b32.xlu0 %v490, 80
        %v722 = vpop.permute.xlu0 %721
        %v724 = vsel %vm494, %v720, 0
        %v727 = vsel %vm494, %v722, 0
        %729 = vmatprep.subr.bf16.mxu0 0
        %730 = vmatpush1.bf16.xpose.msra.mxu0 %v727
        %731 = vmatprep.subr.bf16.mxu0 0
        %732 = vmatpush1.bf16.xpose.msra.mxu0 0
        %733 = vmatprep.subr.bf16.mxu0 0
        %734 = vmatpush1.bf16.xpose.msra.mxu0 0
        %735 = vmatprep.subr.bf16.mxu0 0
        %736 = vmatpush1.bf16.xpose.msra.mxu0 0
        %737 = vmatprep.subr.bf16.mxu0 0
        %738 = vmatpush1.bf16.xpose.msra.mxu0 0
        %739 = vmatprep.subr.bf16.mxu0 0
        %740 = vmatpush1.bf16.xpose.msra.mxu0 0
        %741 = vmatprep.subr.bf16.mxu0 0
        %742 = vmatpush1.bf16.xpose.msra.mxu0 0
        %743 = vmatprep.subr.bf16.mxu0 0
        %744 = vmatpush1.bf16.xpose.msra.mxu0 0
        %745 = vmatprep.subr.bf16.mxu0 0
        %746 = vmatpush1.bf16.xpose.msra.mxu0 0
        %747 = vmatprep.subr.bf16.mxu0 0
        %748 = vmatpush1.bf16.xpose.msra.mxu0 0
        %749 = vmatprep.subr.bf16.mxu0 0
        %750 = vmatpush1.bf16.xpose.msra.mxu0 0
        %751 = vmatprep.subr.bf16.mxu0 0
        %752 = vmatpush1.bf16.xpose.msra.mxu0 0
        %753 = vmatprep.subr.bf16.mxu0 0
        %754 = vmatpush1.bf16.xpose.msra.mxu0 0
        %755 = vmatprep.subr.bf16.mxu0 0
        %756 = vmatpush1.bf16.xpose.msra.mxu0 0
        %757 = vmatprep.subr.bf16.mxu0 0
        %758 = vmatpush1.bf16.xpose.msra.mxu0 0
        %759 = vmatprep.subr.bf16.mxu0 0
        %760 = vmatpush1.bf16.xpose.msra.mxu0 0
        %761 = vmatprep.mubr.bf16.mxu0 0
        %762 = vmatmul.mubr.bf16.gmra.mrb[0].mxu0 %v724
        %v763 = vpop.f32.mrb[0].mxu0
        %v764 = vadd.f32 0.0, %v763
        %v765 = vpop.f32.mrb[0].mxu0
        %v766 = vpop.f32.mrb[0].mxu0
        %v767 = vpop.f32.mrb[0].mxu0
        %768 = vdwg.mxu0
        %v769 = vsel %vm494, %v764, -inf
        %770 = vmax.xlane.f32.xlu0 %v769
        %v771 = vpop.xlane.xlu0 %770
        %v772 = vsub.f32 %v764, %v771
        %v773 = vmul.f32 %v772, 1.442695
        %v774 = vpow.pop %v773
        %v775 = vsel %vm494, %v774, 0.0
        %776 = vadd.xlane.f32.xlu0 %v775
        %v777 = vpop.xlane.xlu0 %776
        %v778 = vrcp.pop %v777
        %v779 = vmul.f32 %v774, %v778
        %v780 = vpack.c.bf16 %v779, %v779
        %781 = vrot.lane.b32.xlu0 %v490, 48
        %v782 = vpop.permute.xlu0 %781
        %v784 = vsel %vm494, %v780, 0
        %v787 = vsel %vm558, %v782, 0
        %789 = vmatprep.subr.bf16.mxu0 0
        %790 = vmatpush1.bf16.msra.mxu0 %v787
        %791 = vmatprep.subr.bf16.mxu0 0
        %792 = vmatpush1.bf16.msra.mxu0 0
        %793 = vmatprep.subr.bf16.mxu0 0
        %794 = vmatpush1.bf16.msra.mxu0 0
        %795 = vmatprep.subr.bf16.mxu0 0
        %796 = vmatpush1.bf16.msra.mxu0 0
        %797 = vmatprep.subr.bf16.mxu0 0
        %798 = vmatpush1.bf16.msra.mxu0 0
        %799 = vmatprep.subr.bf16.mxu0 0
        %800 = vmatpush1.bf16.msra.mxu0 0
        %801 = vmatprep.subr.bf16.mxu0 0
        %802 = vmatpush1.bf16.msra.mxu0 0
        %803 = vmatprep.subr.bf16.mxu0 0
        %804 = vmatpush1.bf16.msra.mxu0 0
        %805 = vmatprep.subr.bf16.mxu0 0
        %806 = vmatpush1.bf16.msra.mxu0 0
        %807 = vmatprep.subr.bf16.mxu0 0
        %808 = vmatpush1.bf16.msra.mxu0 0
        %809 = vmatprep.subr.bf16.mxu0 0
        %810 = vmatpush1.bf16.msra.mxu0 0
        %811 = vmatprep.subr.bf16.mxu0 0
        %812 = vmatpush1.bf16.msra.mxu0 0
        %813 = vmatprep.subr.bf16.mxu0 0
        %814 = vmatpush1.bf16.msra.mxu0 0
        %815 = vmatprep.subr.bf16.mxu0 0
        %816 = vmatpush1.bf16.msra.mxu0 0
        %817 = vmatprep.subr.bf16.mxu0 0
        %818 = vmatpush1.bf16.msra.mxu0 0
        %819 = vmatprep.subr.bf16.mxu0 0
        %820 = vmatpush1.bf16.msra.mxu0 0
        %821 = vmatprep.mubr.bf16.mxu0 0
        %822 = vmatmul.mubr.bf16.gmra.mrb[0].mxu0 %v784
        %v823 = vpop.f32.mrb[0].mxu0
        %v824 = vadd.f32 0.0, %v823
        %v825 = vpop.f32.mrb[0].mxu0
        %v826 = vpop.f32.mrb[0].mxu0
        %v827 = vpop.f32.mrb[0].mxu0
        %828 = vdwg.mxu0
        %830 = vrot.lane.b32.xlu0 %v824, 16
        %v831 = vpop.permute.xlu0 %830
        %vm833 = vcmask 195712
        %834 = vst.msk [vmem:[#allocation2] sm:$0xff] %vm833, %v831
        %835 = vrot.lane.b32.xlu0 %v490, 104
        %v836 = vpop.permute.xlu0 %835
        %837 = vrot.lane.b32.xlu0 %v490, 72
        %v838 = vpop.permute.xlu0 %837
        %v840 = vsel %vm494, %v836, 0
        %v843 = vsel %vm494, %v838, 0
        %845 = vmatprep.subr.bf16.mxu0 0
        %846 = vmatpush1.bf16.xpose.msra.mxu0 %v843
        %847 = vmatprep.subr.bf16.mxu0 0
        %848 = vmatpush1.bf16.xpose.msra.mxu0 0
        %849 = vmatprep.subr.bf16.mxu0 0
        %850 = vmatpush1.bf16.xpose.msra.mxu0 0
        %851 = vmatprep.subr.bf16.mxu0 0
        %852 = vmatpush1.bf16.xpose.msra.mxu0 0
        %853 = vmatprep.subr.bf16.mxu0 0
        %854 = vmatpush1.bf16.xpose.msra.mxu0 0
        %855 = vmatprep.subr.bf16.mxu0 0
        %856 = vmatpush1.bf16.xpose.msra.mxu0 0
        %857 = vmatprep.subr.bf16.mxu0 0
        %858 = vmatpush1.bf16.xpose.msra.mxu0 0
        %859 = vmatprep.subr.bf16.mxu0 0
        %860 = vmatpush1.bf16.xpose.msra.mxu0 0
        %861 = vmatprep.subr.bf16.mxu0 0
        %862 = vmatpush1.bf16.xpose.msra.mxu0 0
        %863 = vmatprep.subr.bf16.mxu0 0
        %864 = vmatpush1.bf16.xpose.msra.mxu0 0
        %865 = vmatprep.subr.bf16.mxu0 0
        %866 = vmatpush1.bf16.xpose.msra.mxu0 0
        %867 = vmatprep.subr.bf16.mxu0 0
        %868 = vmatpush1.bf16.xpose.msra.mxu0 0
        %869 = vmatprep.subr.bf16.mxu0 0
        %870 = vmatpush1.bf16.xpose.msra.mxu0 0
        %871 = vmatprep.subr.bf16.mxu0 0
        %872 = vmatpush1.bf16.xpose.msra.mxu0 0
        %873 = vmatprep.subr.bf16.mxu0 0
        %874 = vmatpush1.bf16.xpose.msra.mxu0 0
        %875 = vmatprep.subr.bf16.mxu0 0
        %876 = vmatpush1.bf16.xpose.msra.mxu0 0
        %877 = vmatprep.mubr.bf16.mxu0 0
        %878 = vmatmul.mubr.bf16.gmra.mrb[0].mxu0 %v840
        %v879 = vpop.f32.mrb[0].mxu0
        %v880 = vadd.f32 0.0, %v879
        %v881 = vpop.f32.mrb[0].mxu0
        %v882 = vpop.f32.mrb[0].mxu0
        %v883 = vpop.f32.mrb[0].mxu0
        %884 = vdwg.mxu0
        %v885 = vsel %vm494, %v880, -inf
        %886 = vmax.xlane.f32.xlu0 %v885
        %v887 = vpop.xlane.xlu0 %886
        %v888 = vsub.f32 %v880, %v887
        %v889 = vmul.f32 %v888, 1.442695
        %v890 = vpow.pop %v889
        %v891 = vsel %vm494, %v890, 0.0
        %892 = vadd.xlane.f32.xlu0 %v891
        %v893 = vpop.xlane.xlu0 %892
        %v894 = vrcp.pop %v893
        %v895 = vmul.f32 %v890, %v894
        %v896 = vpack.c.bf16 %v895, %v895
        %897 = vrot.lane.b32.xlu0 %v490, 40
        %v898 = vpop.permute.xlu0 %897
        %v900 = vsel %vm494, %v896, 0
        %v903 = vsel %vm558, %v898, 0
        %905 = vmatprep.subr.bf16.mxu0 0
        %906 = vmatpush1.bf16.msra.mxu0 %v903
        %907 = vmatprep.subr.bf16.mxu0 0
        %908 = vmatpush1.bf16.msra.mxu0 0
        %909 = vmatprep.subr.bf16.mxu0 0
        %910 = vmatpush1.bf16.msra.mxu0 0
        %911 = vmatprep.subr.bf16.mxu0 0
        %912 = vmatpush1.bf16.msra.mxu0 0
        %913 = vmatprep.subr.bf16.mxu0 0
        %914 = vmatpush1.bf16.msra.mxu0 0
        %915 = vmatprep.subr.bf16.mxu0 0
        %916 = vmatpush1.bf16.msra.mxu0 0
        %917 = vmatprep.subr.bf16.mxu0 0
        %918 = vmatpush1.bf16.msra.mxu0 0
        %919 = vmatprep.subr.bf16.mxu0 0
        %920 = vmatpush1.bf16.msra.mxu0 0
        %921 = vmatprep.subr.bf16.mxu0 0
        %922 = vmatpush1.bf16.msra.mxu0 0
        %923 = vmatprep.subr.bf16.mxu0 0
        %924 = vmatpush1.bf16.msra.mxu0 0
        %925 = vmatprep.subr.bf16.mxu0 0
        %926 = vmatpush1.bf16.msra.mxu0 0
        %927 = vmatprep.subr.bf16.mxu0 0
        %928 = vmatpush1.bf16.msra.mxu0 0
        %929 = vmatprep.subr.bf16.mxu0 0
        %930 = vmatpush1.bf16.msra.mxu0 0
        %931 = vmatprep.subr.bf16.mxu0 0
        %932 = vmatpush1.bf16.msra.mxu0 0
        %933 = vmatprep.subr.bf16.mxu0 0
        %934 = vmatpush1.bf16.msra.mxu0 0
        %935 = vmatprep.subr.bf16.mxu0 0
        %936 = vmatpush1.bf16.msra.mxu0 0
        %937 = vmatprep.mubr.bf16.mxu0 0
        %938 = vmatmul.mubr.bf16.gmra.mrb[0].mxu0 %v900
        %v939 = vpop.f32.mrb[0].mxu0
        %v940 = vadd.f32 0.0, %v939
        %v941 = vpop.f32.mrb[0].mxu0
        %v942 = vpop.f32.mrb[0].mxu0
        %v943 = vpop.f32.mrb[0].mxu0
        %944 = vdwg.mxu0
        %946 = vrot.lane.b32.xlu0 %v940, 24
        %v947 = vpop.permute.xlu0 %946
        %vm949 = vcmask 261312
        %950 = vst.msk [vmem:[#allocation2] sm:$0xff] %vm949, %v947
        %v951 = vld [vmem:[#allocation2] sm:$0xff]
        %v952 = vpack.c.bf16 %v951, %v951
        %v953 = vld [vmem:[%s5] sm:$0xf]
        %v954 = vld [vmem:[%s5 + $0x4] sm:$0xf]
        %v955 = vld [vmem:[%s5 + $0x8] sm:$0xf]
        %v956 = vld [vmem:[%s5 + $0xc] sm:$0xf]
        %v957 = vld [vmem:[%s6] sm:$0x1]
        %v959 = vlaneseq
        %v960 = vshrl.u32 %v959, 7
        %v961 = vsub.s32 0, %v960
        %v962 = vrot.slane %v957, %v961
        %v968 = vunpack.c.l.b16 %v953
        %v969 = vunpack.c.l.b16 %v954
        %v970 = vunpack.c.l.b16 %v955
        %v971 = vunpack.c.l.b16 %v956
        %v972 = vpack.c.b16 %v969, %v968
        %v973 = vpack.c.b16 %v971, %v970
        %v977 = vsel %vm394, %v952, 0
        %979 = vmatprep.subr.bf16.mxu0 0
        %980 = vmatpush1.bf16.msra.mxu0 %v972
        %981 = vmatprep.subr.bf16.mxu0 0
        %982 = vmatpush1.bf16.msra.mxu0 %v973
        %983 = vmatprep.subr.bf16.mxu0 0
        %984 = vmatpush1.bf16.msra.mxu0 0
        %985 = vmatprep.subr.bf16.mxu0 0
        %986 = vmatpush1.bf16.msra.mxu0 0
        %987 = vmatprep.subr.bf16.mxu0 0
        %988 = vmatpush1.bf16.msra.mxu0 0
        %989 = vmatprep.subr.bf16.mxu0 0
        %990 = vmatpush1.bf16.msra.mxu0 0
        %991 = vmatprep.subr.bf16.mxu0 0
        %992 = vmatpush1.bf16.msra.mxu0 0
        %993 = vmatprep.subr.bf16.mxu0 0
        %994 = vmatpush1.bf16.msra.mxu0 0
        %995 = vmatprep.subr.bf16.mxu0 0
        %996 = vmatpush1.bf16.msra.mxu0 0
        %997 = vmatprep.subr.bf16.mxu0 0
        %998 = vmatpush1.bf16.msra.mxu0 0
        %999 = vmatprep.subr.bf16.mxu0 0
        %1000 = vmatpush1.bf16.msra.mxu0 0
        %1001 = vmatprep.subr.bf16.mxu0 0
        %1002 = vmatpush1.bf16.msra.mxu0 0
        %1003 = vmatprep.subr.bf16.mxu0 0
        %1004 = vmatpush1.bf16.msra.mxu0 0
        %1005 = vmatprep.subr.bf16.mxu0 0
        %1006 = vmatpush1.bf16.msra.mxu0 0
        %1007 = vmatprep.subr.bf16.mxu0 0
        %1008 = vmatpush1.bf16.msra.mxu0 0
        %1009 = vmatprep.subr.bf16.mxu0 0
        %1010 = vmatpush1.bf16.msra.mxu0 0
        %1011 = vmatprep.mubr.bf16.mxu0 0
        %1012 = vmatmul.mubr.bf16.gmra.mrb[0].mxu0 %v977
        %v1013 = vpop.f32.mrb[0].mxu0
        %v1014 = vadd.f32 %v962, %v1013
        %v1015 = vpop.f32.mrb[0].mxu0
        %v1016 = vpop.f32.mrb[0].mxu0
        %v1017 = vpop.f32.mrb[0].mxu0
        %1018 = vdwg.mxu0
        %v1019 = vadd.f32 %v1014, %v391
        %v1020 = vpack.c.bf16 %v1019, %v1019
        %v1021 = vld [vmem:[#allocation9] sm:$0xf]
        %v1022 = vld [vmem:[#allocation9 + $0x4] sm:$0xf]
        %v1023 = vld [vmem:[#allocation9 + $0x8] sm:$0xf]
        %v1024 = vld [vmem:[#allocation9 + $0xc] sm:$0xf]
        %v1025 = vld [vmem:[%s8] sm:$0x1]
        %v1027 = vlaneseq
        %v1028 = vshrl.u32 %v1027, 7
        %v1029 = vsub.s32 0, %v1028
        %v1030 = vrot.slane %v1025, %v1029
        %v1036 = vunpack.c.l.b16 %v1021
        %v1037 = vunpack.c.l.b16 %v1022
        %v1038 = vunpack.c.l.b16 %v1023
        %v1039 = vunpack.c.l.b16 %v1024
        %v1040 = vpack.c.b16 %v1037, %v1036
        %v1041 = vpack.c.b16 %v1039, %v1038
        %v1045 = vsel %vm394, %v1020, 0
        %1047 = vmatprep.subr.bf16.mxu0 0
        %1048 = vmatpush1.bf16.msra.mxu0 %v1040
        %1049 = vmatprep.subr.bf16.mxu0 0
        %1050 = vmatpush1.bf16.msra.mxu0 %v1041
        %1051 = vmatprep.subr.bf16.mxu0 0
        %1052 = vmatpush1.bf16.msra.mxu0 0
        %1053 = vmatprep.subr.bf16.mxu0 0
        %1054 = vmatpush1.bf16.msra.mxu0 0
        %1055 = vmatprep.subr.bf16.mxu0 0
        %1056 = vmatpush1.bf16.msra.mxu0 0
        %1057 = vmatprep.subr.bf16.mxu0 0
        %1058 = vmatpush1.bf16.msra.mxu0 0
        %1059 = vmatprep.subr.bf16.mxu0 0
        %1060 = vmatpush1.bf16.msra.mxu0 0
        %1061 = vmatprep.subr.bf16.mxu0 0
        %1062 = vmatpush1.bf16.msra.mxu0 0
        %1063 = vmatprep.subr.bf16.mxu0 0
        %1064 = vmatpush1.bf16.msra.mxu0 0
        %1065 = vmatprep.subr.bf16.mxu0 0
        %1066 = vmatpush1.bf16.msra.mxu0 0
        %1067 = vmatprep.subr.bf16.mxu0 0
        %1068 = vmatpush1.bf16.msra.mxu0 0
        %1069 = vmatprep.subr.bf16.mxu0 0
        %1070 = vmatpush1.bf16.msra.mxu0 0
        %1071 = vmatprep.subr.bf16.mxu0 0
        %1072 = vmatpush1.bf16.msra.mxu0 0
        %1073 = vmatprep.subr.bf16.mxu0 0
        %1074 = vmatpush1.bf16.msra.mxu0 0
        %1075 = vmatprep.subr.bf16.mxu0 0
        %1076 = vmatpush1.bf16.msra.mxu0 0
        %1077 = vmatprep.subr.bf16.mxu0 0
        %1078 = vmatpush1.bf16.msra.mxu0 0
        %1079 = vmatprep.mubr.bf16.mxu0 0
        %1080 = vmatmul.mubr.bf16.gmra.mrb[0].mxu0 %v1045
        %v1081 = vpop.f32.mrb[0].mxu0
        %v1082 = vadd.f32 %v1030, %v1081
        %v1083 = vpop.f32.mrb[0].mxu0
        %v1084 = vpop.f32.mrb[0].mxu0
        %v1085 = vpop.f32.mrb[0].mxu0
        %1086 = vdwg.mxu0
        %v1087 = vsel %vm394, %v1082, 0.0
        %1088 = vadd.xlane.f32.xlu0 %v1087
        %v1089 = vpop.xlane.xlu0 %1088
        %v1090 = vmul.f32 %v1089, %v398
        %v1091 = vsub.f32 %v1082, %v1090
        %v1092 = vmul.f32 %v1091, %v1091
        %v1093 = vsel %vm394, %v1092, 0.0
        %1094 = vadd.xlane.f32.xlu0 %v1093
        %v1095 = vpop.xlane.xlu0 %1094
        %v1096 = vmul.f32 %v1095, %v398
        %v1097 = vadd.f32 %v1096, 1e-05
        %v1098 = vrsqrt.pop %v1097
        %v1099 = vmul.f32 %v1091, %v1098
        %v1100 = vmul.f32 %v1099, %v413
        %v1101 = vadd.f32 %v1100, %v420
        %v1102 = vadd.f32 %v1101, %v1019
        %1103 = vst.msk [vmem:[%s389] sm:$0xff] %vm394, %v1102
        %s1104 = sand.u32 %s230, 1
        %s1105 = scalar_lea.sflag [#allocation5], %s1104
        %s1106 = sand.u32 %s230, 1
        %s1107 = smul.addr %s1106, 8
        %s1108 = scalar_lea.vmem [#allocation11], %s1107
        // Predicated region
        $region73: #{tpu_custom_call.1} parent=55 // pred_check
          %p1109 = pneg %p240
        $region74: #{tpu_custom_call.1} parent=55 // pred_check_branch
          %1111 = sbr.rel (%p1109) target = $region76
        $region75: #{tpu_custom_call.1} parent=55 // pred_region
          %s1113 = ssub.s32 128, 128
          %1114 = vsyncadd %s1105, %s1113
          %s1115 = smul.addr %s28, 128
          %s1116 = scalar_lea.hbm %s9, %s1115
          %s1118 = sshll.u32 %s1108, 4
          %s1119 = int_to_ptr.vmem [resolvable:$true] %s1118
          %1121 = dma.vmem_to_hbm [thread:$0]  %s1119, 128, %s1116, %s1105
        $region76: #{tpu_custom_call.1} parent=55 // pred_fallthru
          _
      $region56: #{tpu_custom_call.1} parent=5 // pred_fallthru
        _
      %p1122 = scmp.le.s32.totalorder 2, %s23
      // Predicated region
      $region77: #{tpu_custom_call.1} parent=5 // pred_check
        %p1123 = pneg %p1122
      $region78: #{tpu_custom_call.1} parent=5 // pred_check_branch
        %1125 = sbr.rel (%p1123) target = $region80
      $region79: #{tpu_custom_call.1} parent=5 // pred_region
        %s1126 = ssub.s32 %s23, 2
        // Predicated region
        $region81: #{tpu_custom_call.1} parent=79 // pred_check
          %p1127 = pneg %p246
        $region82: #{tpu_custom_call.1} parent=79 // pred_check_branch
          %1129 = sbr.rel (%p1127) target = $region84
        $region83: #{tpu_custom_call.1} parent=79 // pred_region
          %s1130 = sand.u32 %s231, 1
          %s1131 = scalar_lea.sflag [#allocation5], %s1130
          %s1132 = sand.u32 %s231, 1
          %s1133 = smul.addr %s1132, 8
          %s1134 = scalar_lea.vmem [#allocation11], %s1133
          %1135 = dma.done %s1131, 128
        $region84: #{tpu_custom_call.1} parent=79 // pred_fallthru
          _
      $region80: #{tpu_custom_call.1} parent=5 // pred_fallthru
        _
    $region6: #{tpu_custom_call.1} parent=1 // loop_footer
      %s27 = sadd.s32 1, %s23
    $region7: #{tpu_custom_call.1} parent=1 // loop_footer_branch
      %22 = sbr.rel target = $region3
    $region8: #{tpu_custom_call.1} parent=1 // loop_exit
      _
    %1136 = vsyncpa [#allocation4], 1
    %s1137 = scalar_lea.sflag [#allocation4], 1
    %1138 = vsyncpa %s1137, 1
    %1139 = vsyncpa [#allocation7], 1
    %1140 = vsyncpa [#allocation10], 1
    %1141 = vsyncpa [#allocation5], 1
    %s1142 = scalar_lea.sflag [#allocation5], 1
    %1143 = vsyncpa %s1142, 1

// kernel: tpu_custom_call.1
$region0: #{tpu_custom_call.1}
  #allocation0 [shape = 'u32[]', space=smem, size = 0x4, offset = 0x4, fixed_abs, tag = 'smem constant byte address 0x4 - core index']
  #allocation1 [shape = 'u32[144,128]{1,0:T(1,128)}', space=vmem, size = 0x12000, scoped, tag = 'internal scratch']
  #allocation2 [shape = 'f32[8,32]{1,0:T(8,128)}', space=vmem, size = 0x1000, scoped, tag = 'scratch operand']
  %s0 = inlined_call_operand.hbm [shape: f32[16,32], index: 0, kind: input, shape index: {}]
  %s1 = inlined_call_operand.vmem [shape: f32[1,32], index: 1, kind: input, shape index: {}]
  %s2 = inlined_call_operand.vmem [shape: f32[1,32], index: 2, kind: input, shape index: {}]
  %s3 = inlined_call_operand.hbm [shape: bf16[32,96], index: 3, kind: input, shape index: {}]
  %s4 = inlined_call_operand.hbm [shape: f32[1,96], index: 4, kind: input, shape index: {}]
  %s5 = inlined_call_operand.vmem [shape: bf16[32,32], index: 5, kind: input, shape index: {}]
  %s6 = inlined_call_operand.vmem [shape: f32[1,32], index: 6, kind: input, shape index: {}]
  %s7 = inlined_call_operand.hbm [shape: bf16[32,32], index: 7, kind: input, shape index: {}]
  %s8 = inlined_call_operand.vmem [shape: f32[1,32], index: 8, kind: input, shape index: {}]
  %s9 = inlined_call_operand.hbm [shape: f32[16,32], index: 9, kind: output, shape index: {}]
  %s10 = sld [smem:[#allocation0]]
  $region85: #{tpu_custom_call.1} parent=0
    _
  %s12 = ssub.s32 1, %s10
  %s13 = scalar_select 0, %s12, %s10
  $region1: #{tpu_custom_call.1} parent=0
    #allocation3 [shape = 'u8[8192]{0}', space=vmem, size = 0x2000, scoped, tag = 'input window, operand 0']
    #allocation4 [shape = 's32[2]{0}', space=sflag, size = 0x8, scoped, tag = 'scoped memory for tpu_custom_call.1']
    #allocation5 [shape = 's32[2]{0}', space=sflag, size = 0x8, scoped, tag = 'scoped memory for tpu_custom_call.1']
    #allocation6 [shape = 'u8[8192]{0}', space=vmem, size = 0x2000, scoped, tag = 'input window, operand 3, single buffered']
    #allocation7 [shape = 's32[1]{0}', space=sflag, size = 0x4, scoped, tag = 'scoped memory for tpu_custom_call.1']
    #allocation8 [shape = 'u8[512]{0}', space=vmem, size = 0x400, scoped, tag = 'input window, operand 4, single buffered']
    #allocation9 [shape = 'u8[8192]{0}', space=vmem, size = 0x2000, scoped, tag = 'input window, operand 7, single buffered']
    #allocation10 [shape = 's32[1]{0}', space=sflag, size = 0x4, scoped, tag = 'scoped memory for tpu_custom_call.1']
    #allocation11 [shape = 'u8[8192]{0}', space=vmem, size = 0x2000, scoped, tag = 'output window, operand 0']
    %14 = vsyncpa [#allocation4], 0
    %s15 = scalar_lea.sflag [#allocation4], 1
    %16 = vsyncpa %s15, 0
    %17 = vsyncpa [#allocation7], 0
    %18 = vsyncpa [#allocation10], 0
    %19 = vsyncpa [#allocation5], 0
    %s20 = scalar_lea.sflag [#allocation5], 1
    %21 = vsyncpa %s20, 0
    loop: start=0, step=1, limit=4
    $region2: #{tpu_custom_call.1} parent=1 // loop_pre_header
      _
    $region3: #{tpu_custom_call.1} parent=1 // loop_header
      %s23 = sphi 0, %s27
      %p24 = scmp.ge.s32.totalorder %s23, 4
      %s33 = sphi 0, %s35
      %s36 = sphi 0, %s33
      %s37 = sphi 0, %s36
      %s53 = sphi 0, %s37
      %s57 = sphi 0, %s57
      %s59 = sphi 0, %s57
      %s60 = sphi 0, %s59
      %s74 = sphi 0, %s60
      %s78 = sphi 0, %s78
      %s80 = sphi 0, %s78
      %s81 = sphi 0, %s80
      %s95 = sphi 0, %s81
      %s99 = sphi 0, %s99
      %s101 = sphi 0, %s99
      %s102 = sphi 0, %s101
      %s116 = sphi 0, %s102
      %s120 = sphi 0, %s120
      %s122 = sphi 0, %s120
      %s123 = sphi 0, %s122
      %s137 = sphi 0, %s123
      %s141 = sphi 0, %s141
      %s143 = sphi 0, %s141
      %s144 = sphi 0, %s143
      %s158 = sphi 0, %s144
      %s162 = sphi 0, %s162
      %s164 = sphi 0, %s162
      %s165 = sphi 0, %s164
      %s179 = sphi 0, %s165
      %s183 = sphi 0, %s183
      %s185 = sphi 0, %s183
      %s186 = sphi 0, %s185
      %s200 = sphi 0, %s186
      %s204 = sphi 0, %s204
      %s206 = sphi 0, %s204
      %s207 = sphi 0, %s206
      %s221 = sphi 0, %s207
      %s227 = sphi 0, %s229
      %s230 = sphi 0, %s227
      %s231 = sphi 0, %s230
      %s247 = sphi 0, %s231
    $region4: #{tpu_custom_call.1} parent=1 // loop_header_branch
      %26 = sbr.rel (%p24) target = $region8
    $region5: #{tpu_custom_call.1} parent=1 // loop_body
      %s28 = ssub.s32 %s23, 1
      %s29 = ssub.s32 %s23, 2
      %s30 = sadd.s32 %s23, 1
      %s31 = ssub.s32 %s23, %s30
      %p32 = scmp.eq.s32.totalorder %s31, 0
      %s34 = sadd.s32 %s33, 1
      %s35 = scalar_select %p32, %s33, %s34
      %p38 = pneg %p32
      %p39 = scmp.eq.s32.totalorder %s23, 1
      %p40 = por %p38, %p39
      %p41 = scmp.ne.s32.totalorder %s33, %s36
      %p42 = scmp.eq.s32.totalorder %s23, 0
      %p43 = por %p41, %p42
      %p44 = scmp.ne.s32.totalorder %s33, %s36
      %p45 = scmp.eq.s32.totalorder %s28, 1
      %p46 = por %p44, %p45
      %p47 = scmp.ne.s32.totalorder %s36, %s37
      %p48 = scmp.eq.s32.totalorder %s28, 0
      %p49 = por %p47, %p48
      %p50 = scmp.ne.s32.totalorder %s36, %s37
      %p51 = scmp.eq.s32.totalorder %s29, 1
      %p52 = por %p50, %p51
      %p54 = scmp.ne.s32.totalorder %s37, %s53
      %p55 = scmp.eq.s32.totalorder %s29, 0
      %p56 = por %p54, %p55
      %s58 = sadd.s32 %s57, 1
      %p61 = scmp.eq.s32.totalorder %s23, 1
      %p62 = scmp.ne.s32.totalorder %s57, %s59
      %p63 = scmp.eq.s32.totalorder %s23, 0
      %p64 = por %p62, %p63
      %p65 = scmp.ne.s32.totalorder %s57, %s59
      %p66 = scmp.eq.s32.totalorder %s28, 1
      %p67 = por %p65, %p66
      %p68 = scmp.ne.s32.totalorder %s59, %s60
      %p69 = scmp.eq.s32.totalorder %s28, 0
      %p70 = por %p68, %p69
      %p71 = scmp.ne.s32.totalorder %s59, %s60
      %p72 = scmp.eq.s32.totalorder %s29, 1
      %p73 = por %p71, %p72
      %p75 = scmp.ne.s32.totalorder %s60, %s74
      %p76 = scmp.eq.s32.totalorder %s29, 0
      %p77 = por %p75, %p76
      %s79 = sadd.s32 %s78, 1
      %p82 = scmp.eq.s32.totalorder %s23, 1
      %p83 = scmp.ne.s32.totalorder %s78, %s80
      %p84 = scmp.eq.s32.totalorder %s23, 0
      %p85 = por %p83, %p84
      %p86 = scmp.ne.s32.totalorder %s78, %s80
      %p87 = scmp.eq.s32.totalorder %s28, 1
      %p88 = por %p86, %p87
      %p89 = scmp.ne.s32.totalorder %s80, %s81
      %p90 = scmp.eq.s32.totalorder %s28, 0
      %p91 = por %p89, %p90
      %p92 = scmp.ne.s32.totalorder %s80, %s81
      %p93 = scmp.eq.s32.totalorder %s29, 1
      %p94 = por %p92, %p93
      %p96 = scmp.ne.s32.totalorder %s81, %s95
      %p97 = scmp.eq.s32.totalorder %s29, 0
      %p98 = por %p96, %p97
      %s100 = sadd.s32 %s99, 1
      %p103 = scmp.eq.s32.totalorder %s23, 1
      %p104 = scmp.ne.s32.totalorder %s99, %s101
      %p105 = scmp.eq.s32.totalorder %s23, 0
      %p106 = por %p104, %p105
      %p107 = scmp.ne.s32.totalorder %s99, %s101
      %p108 = scmp.eq.s32.totalorder %s28, 1
      %p109 = por %p107, %p108
      %p110 = scmp.ne.s32.totalorder %s101, %s102
      %p111 = scmp.eq.s32.totalorder %s28, 0
      %p112 = por %p110, %p111
      %p113 = scmp.ne.s32.totalorder %s101, %s102
      %p114 = scmp.eq.s32.totalorder %s29, 1
      %p115 = por %p113, %p114
      %p117 = scmp.ne.s32.totalorder %s102, %s116
      %p118 = scmp.eq.s32.totalorder %s29, 0
      %p119 = por %p117, %p118
      %s121 = sadd.s32 %s120, 1
      %p124 = scmp.eq.s32.totalorder %s23, 1
      %p125 = scmp.ne.s32.totalorder %s120, %s122
      %p126 = scmp.eq.s32.totalorder %s23, 0
      %p127 = por %p125, %p126
      %p128 = scmp.ne.s32.totalorder %s120, %s122
      %p129 = scmp.eq.s32.totalorder %s28, 1
      %p130 = por %p128, %p129
      %p131 = scmp.ne.s32.totalorder %s122, %s123
      %p132 = scmp.eq.s32.totalorder %s28, 0
      %p133 = por %p131, %p132
      %p134 = scmp.ne.s32.totalorder %s122, %s123
      %p135 = scmp.eq.s32.totalorder %s29, 1
      %p136 = por %p134, %p135
      %p138 = scmp.ne.s32.totalorder %s123, %s137
      %p139 = scmp.eq.s32.totalorder %s29, 0
      %p140 = por %p138, %p139
      %s142 = sadd.s32 %s141, 1
      %p145 = scmp.eq.s32.totalorder %s23, 1
      %p146 = scmp.ne.s32.totalorder %s141, %s143
      %p147 = scmp.eq.s32.totalorder %s23, 0
      %p148 = por %p146, %p147
      %p149 = scmp.ne.s32.totalorder %s141, %s143
      %p150 = scmp.eq.s32.totalorder %s28, 1
      %p151 = por %p149, %p150
      %p152 = scmp.ne.s32.totalorder %s143, %s144
      %p153 = scmp.eq.s32.totalorder %s28, 0
      %p154 = por %p152, %p153
      %p155 = scmp.ne.s32.totalorder %s143, %s144
      %p156 = scmp.eq.s32.totalorder %s29, 1
      %p157 = por %p155, %p156
      %p159 = scmp.ne.s32.totalorder %s144, %s158
      %p160 = scmp.eq.s32.totalorder %s29, 0
      %p161 = por %p159, %p160
      %s163 = sadd.s32 %s162, 1
      %p166 = scmp.eq.s32.totalorder %s23, 1
      %p167 = scmp.ne.s32.totalorder %s162, %s164
      %p168 = scmp.eq.s32.totalorder %s23, 0
      %p169 = por %p167, %p168
      %p170 = scmp.ne.s32.totalorder %s162, %s164
      %p171 = scmp.eq.s32.totalorder %s28, 1
      %p172 = por %p170, %p171
      %p173 = scmp.ne.s32.totalorder %s164, %s165
      %p174 = scmp.eq.s32.totalorder %s28, 0
      %p175 = por %p173, %p174
      %p176 = scmp.ne.s32.totalorder %s164, %s165
      %p177 = scmp.eq.s32.totalorder %s29, 1
      %p178 = por %p176, %p177
      %p180 = scmp.ne.s32.totalorder %s165, %s179
      %p181 = scmp.eq.s32.totalorder %s29, 0
      %p182 = por %p180, %p181
      %s184 = sadd.s32 %s183, 1
      %p187 = scmp.eq.s32.totalorder %s23, 1
      %p188 = scmp.ne.s32.totalorder %s183, %s185
      %p189 = scmp.eq.s32.totalorder %s23, 0
      %p190 = por %p188, %p189
      %p191 = scmp.ne.s32.totalorder %s183, %s185
      %p192 = scmp.eq.s32.totalorder %s28, 1
      %p193 = por %p191, %p192
      %p194 = scmp.ne.s32.totalorder %s185, %s186
      %p195 = scmp.eq.s32.totalorder %s28, 0
      %p196 = por %p194, %p195
      %p197 = scmp.ne.s32.totalorder %s185, %s186
      %p198 = scmp.eq.s32.totalorder %s29, 1
      %p199 = por %p197, %p198
      %p201 = scmp.ne.s32.totalorder %s186, %s200
      %p202 = scmp.eq.s32.totalorder %s29, 0
      %p203 = por %p201, %p202
      %s205 = sadd.s32 %s204, 1
      %p208 = scmp.eq.s32.totalorder %s23, 1
      %p209 = scmp.ne.s32.totalorder %s204, %s206
      %p210 = scmp.eq.s32.totalorder %s23, 0
      %p211 = por %p209, %p210
      %p212 = scmp.ne.s32.totalorder %s204, %s206
      %p213 = scmp.eq.s32.totalorder %s28, 1
      %p214 = por %p212, %p213
      %p215 = scmp.ne.s32.totalorder %s206, %s207
      %p216 = scmp.eq.s32.totalorder %s28, 0
      %p217 = por %p215, %p216
      %p218 = scmp.ne.s32.totalorder %s206, %s207
      %p219 = scmp.eq.s32.totalorder %s29, 1
      %p220 = por %p218, %p219
      %p222 = scmp.ne.s32.totalorder %s207, %s221
      %p223 = scmp.eq.s32.totalorder %s29, 0
      %p224 = por %p222, %p223
      %s225 = ssub.s32 %s23, %s30
      %p226 = scmp.eq.s32.totalorder %s225, 0
      %s228 = sadd.s32 %s227, 1
      %s229 = scalar_select %p226, %s227, %s228
      %p232 = pneg %p226
      %p233 = scmp.eq.s32.totalorder %s23, 1
      %p234 = por %p232, %p233
      %p235 = scmp.ne.s32.totalorder %s227, %s230
      %p236 = scmp.eq.s32.totalorder %s23, 0
      %p237 = por %p235, %p236
      %p238 = scmp.ne.s32.totalorder %s227, %s230
      %p239 = scmp.eq.s32.totalorder %s28, 1
      %p240 = por %p238, %p239
      %p241 = scmp.ne.s32.totalorder %s230, %s231
      %p242 = scmp.eq.s32.totalorder %s28, 0
      %p243 = por %p241, %p242
      %p244 = scmp.ne.s32.totalorder %s230, %s231
      %p245 = scmp.eq.s32.totalorder %s29, 1
      %p246 = por %p244, %p245
      %p248 = scmp.ne.s32.totalorder %s231, %s247
      %p249 = scmp.eq.s32.totalorder %s29, 0
      %p250 = por %p248, %p249
      %p251 = scmp.le.s32.totalorder 1, %s23
      %p252 = scmp.lt.s32.totalorder %s23, 3
      %p253 = pnand %p251, %p252
      %p254 = pneg %p253
      // Predicated region
      $region9: #{tpu_custom_call.1} parent=5 // pred_check
        _
      $region10: #{tpu_custom_call.1} parent=5 // pred_check_branch
        %256 = sbr.rel (%p253) target = $region12
      $region11: #{tpu_custom_call.1} parent=5 // pred_region
        %s257 = ssub.s32 %s23, 1
        // Predicated region
        $region13: #{tpu_custom_call.1} parent=11 // pred_check
          %p258 = pneg %p70
        $region14: #{tpu_custom_call.1} parent=11 // pred_check_branch
          %260 = sbr.rel (%p258) target = $region16
        $region15: #{tpu_custom_call.1} parent=11 // pred_region
          _
        $region16: #{tpu_custom_call.1} parent=11 // pred_fallthru
          _
        // Predicated region
        $region17: #{tpu_custom_call.1} parent=11 // pred_check
          %p261 = pneg %p91
        $region18: #{tpu_custom_call.1} parent=11 // pred_check_branch
          %263 = sbr.rel (%p261) target = $region20
        $region19: #{tpu_custom_call.1} parent=11 // pred_region
          _
        $region20: #{tpu_custom_call.1} parent=11 // pred_fallthru
          _
        // Predicated region
        $region21: #{tpu_custom_call.1} parent=11 // pred_check
          %p264 = pneg %p112
        $region22: #{tpu_custom_call.1} parent=11 // pred_check_branch
          %266 = sbr.rel (%p264) target = $region24
        $region23: #{tpu_custom_call.1} parent=11 // pred_region
          %s268 = ssub.s32 256, 256
          %269 = vsyncadd [#allocation7], %s268
          %s270 = sshll.u32 [#allocation6], 4
          %s271 = int_to_ptr.vmem [resolvable:$true] %s270
          %276 = dma.hbm_to_vmem [thread:$0]  %s3, 256, %s271, [#allocation7], 64, 64, 4
        $region24: #{tpu_custom_call.1} parent=11 // pred_fallthru
          _
        // Predicated region
        $region25: #{tpu_custom_call.1} parent=11 // pred_check
          %p277 = pneg %p133
        $region26: #{tpu_custom_call.1} parent=11 // pred_check_branch
          %279 = sbr.rel (%p277) target = $region28
        $region27: #{tpu_custom_call.1} parent=11 // pred_region
          %s281 = ssub.s32 16, 16
          %282 = vsyncadd [#allocation7], %s281
          %s284 = sshll.u32 [#allocation8], 4
          %s285 = int_to_ptr.vmem [resolvable:$true] %s284
          %287 = dma.hbm_to_vmem [thread:$0]  %s4, 16, %s285, [#allocation7]
        $region28: #{tpu_custom_call.1} parent=11 // pred_fallthru
          _
        // Predicated region
        $region29: #{tpu_custom_call.1} parent=11 // pred_check
          %p288 = pneg %p154
        $region30: #{tpu_custom_call.1} parent=11 // pred_check_branch
          %290 = sbr.rel (%p288) target = $region32
        $region31: #{tpu_custom_call.1} parent=11 // pred_region
          _
        $region32: #{tpu_custom_call.1} parent=11 // pred_fallthru
          _
        // Predicated region
        $region33: #{tpu_custom_call.1} parent=11 // pred_check
          %p291 = pneg %p175
        $region34: #{tpu_custom_call.1} parent=11 // pred_check_branch
          %293 = sbr.rel (%p291) target = $region36
        $region35: #{tpu_custom_call.1} parent=11 // pred_region
          _
        $region36: #{tpu_custom_call.1} parent=11 // pred_fallthru
          _
        // Predicated region
        $region37: #{tpu_custom_call.1} parent=11 // pred_check
          %p294 = pneg %p196
        $region38: #{tpu_custom_call.1} parent=11 // pred_check_branch
          %296 = sbr.rel (%p294) target = $region40
        $region39: #{tpu_custom_call.1} parent=11 // pred_region
          %s298 = ssub.s32 256, 256
          %299 = vsyncadd [#allocation10], %s298
          %s300 = sshll.u32 [#allocation9], 4
          %s301 = int_to_ptr.vmem [resolvable:$true] %s300
          %306 = dma.hbm_to_vmem [thread:$0]  %s7, 256, %s301, [#allocation10], 64, 64, 4
        $region40: #{tpu_custom_call.1} parent=11 // pred_fallthru
          _
        // Predicated region
        $region41: #{tpu_custom_call.1} parent=11 // pred_check
          %p307 = pneg %p217
        $region42: #{tpu_custom_call.1} parent=11 // pred_check_branch
          %309 = sbr.rel (%p307) target = $region44
        $region43: #{tpu_custom_call.1} parent=11 // pred_region
          _
        $region44: #{tpu_custom_call.1} parent=11 // pred_fallthru
          _
      $region12: #{tpu_custom_call.1} parent=5 // pred_fallthru
        _
      %p310 = scmp.lt.s32.totalorder %s23, 2
      // Predicated region
      $region45: #{tpu_custom_call.1} parent=5 // pred_check
        %p311 = pneg %p310
      $region46: #{tpu_custom_call.1} parent=5 // pred_check_branch
        %313 = sbr.rel (%p311) target = $region48
      $region47: #{tpu_custom_call.1} parent=5 // pred_region
        // Predicated region
        $region49: #{tpu_custom_call.1} parent=47 // pred_check
          %p314 = pneg %p43
        $region50: #{tpu_custom_call.1} parent=47 // pred_check_branch
          %316 = sbr.rel (%p314) target = $region52
        $region51: #{tpu_custom_call.1} parent=47 // pred_region
          %s317 = sand.u32 %s33, 1
          %s318 = scalar_lea.sflag [#allocation4], %s317
          %s319 = sand.u32 %s33, 1
          %s320 = smul.addr %s319, 8
          %s321 = scalar_lea.vmem [#allocation3], %s320
          %s323 = ssub.s32 128, 128
          %324 = vsyncadd %s318, %s323
          %s325 = smul.addr %s23, 128
          %s326 = scalar_lea.hbm %s0, %s325
          %s328 = sshll.u32 %s321, 4
          %s329 = int_to_ptr.vmem [resolvable:$true] %s328
          %331 = dma.hbm_to_vmem [thread:$0]  %s326, 128, %s329, %s318
        $region52: #{tpu_custom_call.1} parent=47 // pred_fallthru
          _
      $region48: #{tpu_custom_call.1} parent=5 // pred_fallthru
        _
      %p332 = scmp.le.s32.totalorder 1, %s23
      %p333 = scmp.lt.s32.totalorder %s23, 3
      %p334 = pnand %p332, %p333
      %p335 = pneg %p334
      // Predicated region
      $region53: #{tpu_custom_call.1} parent=5 // pred_check
        _
      $region54: #{tpu_custom_call.1} parent=5 // pred_check_branch
        %337 = sbr.rel (%p334) target = $region56
      $region55: #{tpu_custom_call.1} parent=5 // pred_region
        %s338 = ssub.s32 %s23, 1
        %s339 = sand.u32 %s36, 1
        %s340 = scalar_lea.sflag [#allocation4], %s339
        %s341 = sand.u32 %s36, 1
        %s342 = smul.addr %s341, 8
        %s343 = scalar_lea.vmem [#allocation3], %s342
        // Predicated region
        $region57: #{tpu_custom_call.1} parent=55 // pred_check
          %p344 = pneg %p49
        $region58: #{tpu_custom_call.1} parent=55 // pred_check_branch
          %346 = sbr.rel (%p344) target = $region60
        $region59: #{tpu_custom_call.1} parent=55 // pred_region
          %347 = dma.done %s340, 128
        $region60: #{tpu_custom_call.1} parent=55 // pred_fallthru
          _
        // Predicated region
        $region61: #{tpu_custom_call.1} parent=55 // pred_check
          %p348 = pneg %p112
        $region62: #{tpu_custom_call.1} parent=55 // pred_check_branch
          %350 = sbr.rel (%p348) target = $region64
        $region63: #{tpu_custom_call.1} parent=55 // pred_region
          %351 = dma.done [#allocation7], 256
        $region64: #{tpu_custom_call.1} parent=55 // pred_fallthru
          _
        // Predicated region
        $region65: #{tpu_custom_call.1} parent=55 // pred_check
          %p352 = pneg %p133
        $region66: #{tpu_custom_call.1} parent=55 // pred_check_branch
          %354 = sbr.rel (%p352) target = $region68
        $region67: #{tpu_custom_call.1} parent=55 // pred_region
          %355 = dma.done [#allocation7], 16
        $region68: #{tpu_custom_call.1} parent=55 // pred_fallthru
          _
        // Predicated region
        $region69: #{tpu_custom_call.1} parent=55 // pred_check
          %p356 = pneg %p196
        $region70: #{tpu_custom_call.1} parent=55 // pred_check_branch
          %358 = sbr.rel (%p356) target = $region72
        $region71: #{tpu_custom_call.1} parent=55 // pred_region
          %359 = dma.done [#allocation10], 256
        $region72: #{tpu_custom_call.1} parent=55 // pred_fallthru
          _
        %s360 = sand.u32 %s36, 1
        %s361 = scalar_lea.sflag [#allocation4], %s360
        %s362 = sand.u32 %s36, 1
        %s363 = smul.addr %s362, 8
        %s364 = scalar_lea.vmem [#allocation3], %s363
        %p365 = pneg %p49
        %p366 = pneg %p46
        %p367 = pneg %p70
        %p368 = pneg %p67
        %p369 = pneg %p91
        %p370 = pneg %p88
        %p371 = pneg %p112
        %p372 = pneg %p109
        %p373 = pneg %p133
        %p374 = pneg %p130
        %p375 = pneg %p154
        %p376 = pneg %p151
        %p377 = pneg %p175
        %p378 = pneg %p172
        %p379 = pneg %p196
        %p380 = pneg %p193
        %p381 = pneg %p217
        %p382 = pneg %p214
        %p383 = pneg %p243
        %p384 = pneg %p240
        %s385 = sand.u32 %s230, 1
        %s386 = scalar_lea.sflag [#allocation5], %s385
        %s387 = sand.u32 %s230, 1
        %s388 = smul.addr %s387, 8
        %s389 = scalar_lea.vmem [#allocation11], %s388
        %v391 = vld [vmem:[%s343] sm:$0xff]
        %v392 = vld [vmem:[%s1] sm:$0x1]
        %v393 = vld [vmem:[%s2] sm:$0x1]
        %vm394 = vcmask 261120
        %v395 = vsel %vm394, %v391, 0.0
        %396 = vadd.xlane.f32.xlu0 %v395
        %v397 = vpop.xlane.xlu0 %396
        %v398 = vrcp.pop 32.0
        %v399 = vmul.f32 %v397, %v398
        %v400 = vsub.f32 %v391, %v399
        %v401 = vmul.f32 %v400, %v400
        %v402 = vsel %vm394, %v401, 0.0
        %403 = vadd.xlane.f32.xlu0 %v402
        %v404 = vpop.xlane.xlu0 %403
        %v405 = vmul.f32 %v404, %v398
        %v406 = vadd.f32 %v405, 1e-05
        %v407 = vrsqrt.pop %v406
        %v408 = vmul.f32 %v400, %v407
        %v410 = vlaneseq
        %v411 = vshrl.u32 %v410, 7
        %v412 = vsub.s32 0, %v411
        %v413 = vrot.slane %v392, %v412
        %v415 = vmul.f32 %v408, %v413
        %v417 = vlaneseq
        %v418 = vshrl.u32 %v417, 7
        %v419 = vsub.s32 0, %v418
        %v420 = vrot.slane %v393, %v419
        %v422 = vadd.f32 %v415, %v420
        %v423 = vpack.c.bf16 %v422, %v422
        %v424 = vld [vmem:[#allocation6] sm:$0xf]
        %v425 = vld [vmem:[#allocation6 + $0x4] sm:$0xf]
        %v426 = vld [vmem:[#allocation6 + $0x8] sm:$0xf]
        %v427 = vld [vmem:[#allocation6 + $0xc] sm:$0xf]
        %v428 = vld [vmem:[#allocation8] sm:$0x1]
        %v430 = vlaneseq
        %v431 = vshrl.u32 %v430, 7
        %v432 = vsub.s32 0, %v431
        %v433 = vrot.slane %v428, %v432
        %v439 = vunpack.c.l.b16 %v424
        %v440 = vunpack.c.l.b16 %v425
        %v441 = vunpack.c.l.b16 %v426
        %v442 = vunpack.c.l.b16 %v427
        %v443 = vpack.c.b16 %v440, %v439
        %v444 = vpack.c.b16 %v442, %v441
        %v448 = vsel %vm394, %v423, 0
        %450 = vmatprep.subr.bf16.mxu0 0
        %451 = vmatpush1.bf16.msra.mxu0 %v443
        %452 = vmatprep.subr.bf16.mxu0 0
        %453 = vmatpush1.bf16.msra.mxu0 %v444
        %454 = vmatprep.subr.bf16.mxu0 0
        %455 = vmatpush1.bf16.msra.mxu0 0
        %456 = vmatprep.subr.bf16.mxu0 0
        %457 = vmatpush1.bf16.msra.mxu0 0
        %458 = vmatprep.subr.bf16.mxu0 0
        %459 = vmatpush1.bf16.msra.mxu0 0
        %460 = vmatprep.subr.bf16.mxu0 0
        %461 = vmatpush1.bf16.msra.mxu0 0
        %462 = vmatprep.subr.bf16.mxu0 0
        %463 = vmatpush1.bf16.msra.mxu0 0
        %464 = vmatprep.subr.bf16.mxu0 0
        %465 = vmatpush1.bf16.msra.mxu0 0
        %466 = vmatprep.subr.bf16.mxu0 0
        %467 = vmatpush1.bf16.msra.mxu0 0
        %468 = vmatprep.subr.bf16.mxu0 0
        %469 = vmatpush1.bf16.msra.mxu0 0
        %470 = vmatprep.subr.bf16.mxu0 0
        %471 = vmatpush1.bf16.msra.mxu0 0
        %472 = vmatprep.subr.bf16.mxu0 0
        %473 = vmatpush1.bf16.msra.mxu0 0
        %474 = vmatprep.subr.bf16.mxu0 0
        %475 = vmatpush1.bf16.msra.mxu0 0
        %476 = vmatprep.subr.bf16.mxu0 0
        %477 = vmatpush1.bf16.msra.mxu0 0
        %478 = vmatprep.subr.bf16.mxu0 0
        %479 = vmatpush1.bf16.msra.mxu0 0
        %480 = vmatprep.subr.bf16.mxu0 0
        %481 = vmatpush1.bf16.msra.mxu0 0
        %482 = vmatprep.mubr.bf16.mxu0 0
        %483 = vmatmul.mubr.bf16.gmra.mrb[0].mxu0 %v448
        %v484 = vpop.f32.mrb[0].mxu0
        %v485 = vadd.f32 %v433, %v484
        %v486 = vpop.f32.mrb[0].mxu0
        %v487 = vpop.f32.mrb[0].mxu0
        %v488 = vpop.f32.mrb[0].mxu0
        %489 = vdwg.mxu0
        %v490 = vpack.c.bf16 %v485, %v485
        %492 = vrot.lane.b32.xlu0 %v490, 96
        %v493 = vpop.permute.xlu0 %492
        %vm494 = vcmask 64512
        %v496 = vsel %vm494, %v490, 0
        %v499 = vsel %vm494, %v493, 0
        %501 = vmatprep.subr.bf16.mxu0 0
        %502 = vmatpush1.bf16.xpose.msra.mxu0 %v499
        %503 = vmatprep.subr.bf16.mxu0 0
        %504 = vmatpush1.bf16.xpose.msra.mxu0 0
        %505 = vmatprep.subr.bf16.mxu0 0
        %506 = vmatpush1.bf16.xpose.msra.mxu0 0
        %507 = vmatprep.subr.bf16.mxu0 0
        %508 = vmatpush1.bf16.xpose.msra.mxu0 0
        %509 = vmatprep.subr.bf16.mxu0 0
        %510 = vmatpush1.bf16.xpose.msra.mxu0 0
        %511 = vmatprep.subr.bf16.mxu0 0
        %512 = vmatpush1.bf16.xpose.msra.mxu0 0
        %513 = vmatprep.subr.bf16.mxu0 0
        %514 = vmatpush1.bf16.xpose.msra.mxu0 0
        %515 = vmatprep.subr.bf16.mxu0 0
        %516 = vmatpush1.bf16.xpose.msra.mxu0 0
        %517 = vmatprep.subr.bf16.mxu0 0
        %518 = vmatpush1.bf16.xpose.msra.mxu0 0
        %519 = vmatprep.subr.bf16.mxu0 0
        %520 = vmatpush1.bf16.xpose.msra.mxu0 0
        %521 = vmatprep.subr.bf16.mxu0 0
        %522 = vmatpush1.bf16.xpose.msra.mxu0 0
        %523 = vmatprep.subr.bf16.mxu0 0
        %524 = vmatpush1.bf16.xpose.msra.mxu0 0
        %525 = vmatprep.subr.bf16.mxu0 0
        %526 = vmatpush1.bf16.xpose.msra.mxu0 0
        %527 = vmatprep.subr.bf16.mxu0 0
        %528 = vmatpush1.bf16.xpose.msra.mxu0 0
        %529 = vmatprep.subr.bf16.mxu0 0
        %530 = vmatpush1.bf16.xpose.msra.mxu0 0
        %531 = vmatprep.subr.bf16.mxu0 0
        %532 = vmatpush1.bf16.xpose.msra.mxu0 0
        %533 = vmatprep.mubr.bf16.mxu0 0
        %534 = vmatmul.mubr.bf16.gmra.mrb[0].mxu0 %v496
        %v535 = vpop.f32.mrb[0].mxu0
        %v536 = vadd.f32 0.0, %v535
        %v537 = vpop.f32.mrb[0].mxu0
        %v538 = vpop.f32.mrb[0].mxu0
        %v539 = vpop.f32.mrb[0].mxu0
        %540 = vdwg.mxu0
        %v541 = vsel %vm494, %v536, -inf
        %542 = vmax.xlane.f32.xlu0 %v541
        %v543 = vpop.xlane.xlu0 %542
        %v544 = vsub.f32 %v536, %v543
        %v545 = vmul.f32 %v544, 1.442695
        %v546 = vpow.pop %v545
        %v547 = vsel %vm494, %v546, 0.0
        %548 = vadd.xlane.f32.xlu0 %v547
        %v549 = vpop.xlane.xlu0 %548
        %v550 = vrcp.pop %v549
        %v551 = vmul.f32 %v546, %v550
        %v552 = vpack.c.bf16 %v551, %v551
        %553 = vrot.lane.b32.xlu0 %v490, 64
        %v554 = vpop.permute.xlu0 %553
        %v556 = vsel %vm494, %v552, 0
        %vm558 = vcmask 1043456
        %v560 = vsel %vm558, %v554, 0
        %562 = vmatprep.subr.bf16.mxu0 0
        %563 = vmatpush1.bf16.msra.mxu0 %v560
        %564 = vmatprep.subr.bf16.mxu0 0
        %565 = vmatpush1.bf16.msra.mxu0 0
        %566 = vmatprep.subr.bf16.mxu0 0
        %567 = vmatpush1.bf16.msra.mxu0 0
        %568 = vmatprep.subr.bf16.mxu0 0
        %569 = vmatpush1.bf16.msra.mxu0 0
        %570 = vmatprep.subr.bf16.mxu0 0
        %571 = vmatpush1.bf16.msra.mxu0 0
        %572 = vmatprep.subr.bf16.mxu0 0
        %573 = vmatpush1.bf16.msra.mxu0 0
        %574 = vmatprep.subr.bf16.mxu0 0
        %575 = vmatpush1.bf16.msra.mxu0 0
        %576 = vmatprep.subr.bf16.mxu0 0
        %577 = vmatpush1.bf16.msra.mxu0 0
        %578 = vmatprep.subr.bf16.mxu0 0
        %579 = vmatpush1.bf16.msra.mxu0 0
        %580 = vmatprep.subr.bf16.mxu0 0
        %581 = vmatpush1.bf16.msra.mxu0 0
        %582 = vmatprep.subr.bf16.mxu0 0
        %583 = vmatpush1.bf16.msra.mxu0 0
        %584 = vmatprep.subr.bf16.mxu0 0
        %585 = vmatpush1.bf16.msra.mxu0 0
        %586 = vmatprep.subr.bf16.mxu0 0
        %587 = vmatpush1.bf16.msra.mxu0 0
        %588 = vmatprep.subr.bf16.mxu0 0
        %589 = vmatpush1.bf16.msra.mxu0 0
        %590 = vmatprep.subr.bf16.mxu0 0
        %591 = vmatpush1.bf16.msra.mxu0 0
        %592 = vmatprep.subr.bf16.mxu0 0
        %593 = vmatpush1.bf16.msra.mxu0 0
        %594 = vmatprep.mubr.bf16.mxu0 0
        %595 = vmatmul.mubr.bf16.gmra.mrb[0].mxu0 %v556
        %v596 = vpop.f32.mrb[0].mxu0
        %v597 = vadd.f32 0.0, %v596
        %v598 = vpop.f32.mrb[0].mxu0
        %v599 = vpop.f32.mrb[0].mxu0
        %v600 = vpop.f32.mrb[0].mxu0
        %601 = vdwg.mxu0
        %602 = vst.msk [vmem:[#allocation2] sm:$0xff] %vm494, %v597
        %603 = vrot.lane.b32.xlu0 %v490, 120
        %v604 = vpop.permute.xlu0 %603
        %605 = vrot.lane.b32.xlu0 %v490, 88
        %v606 = vpop.permute.xlu0 %605
        %v608 = vsel %vm494, %v604, 0
        %v611 = vsel %vm494, %v606, 0
        %613 = vmatprep.subr.bf16.mxu0 0
        %614 = vmatpush1.bf16.xpose.msra.mxu0 %v611
        %615 = vmatprep.subr.bf16.mxu0 0
        %616 = vmatpush1.bf16.xpose.msra.mxu0 0
        %617 = vmatprep.subr.bf16.mxu0 0
        %618 = vmatpush1.bf16.xpose.msra.mxu0 0
        %619 = vmatprep.subr.bf16.mxu0 0
        %620 = vmatpush1.bf16.xpose.msra.mxu0 0
        %621 = vmatprep.subr.bf16.mxu0 0
        %622 = vmatpush1.bf16.xpose.msra.mxu0 0
        %623 = vmatprep.subr.bf16.mxu0 0
        %624 = vmatpush1.bf16.xpose.msra.mxu0 0
        %625 = vmatprep.subr.bf16.mxu0 0
        %626 = vmatpush1.bf16.xpose.msra.mxu0 0
        %627 = vmatprep.subr.bf16.mxu0 0
        %628 = vmatpush1.bf16.xpose.msra.mxu0 0
        %629 = vmatprep.subr.bf16.mxu0 0
        %630 = vmatpush1.bf16.xpose.msra.mxu0 0
        %631 = vmatprep.subr.bf16.mxu0 0
        %632 = vmatpush1.bf16.xpose.msra.mxu0 0
        %633 = vmatprep.subr.bf16.mxu0 0
        %634 = vmatpush1.bf16.xpose.msra.mxu0 0
        %635 = vmatprep.subr.bf16.mxu0 0
        %636 = vmatpush1.bf16.xpose.msra.mxu0 0
        %637 = vmatprep.subr.bf16.mxu0 0
        %638 = vmatpush1.bf16.xpose.msra.mxu0 0
        %639 = vmatprep.subr.bf16.mxu0 0
        %640 = vmatpush1.bf16.xpose.msra.mxu0 0
        %641 = vmatprep.subr.bf16.mxu0 0
        %642 = vmatpush1.bf16.xpose.msra.mxu0 0
        %643 = vmatprep.subr.bf16.mxu0 0
        %644 = vmatpush1.bf16.xpose.msra.mxu0 0
        %645 = vmatprep.mubr.bf16.mxu0 0
        %646 = vmatmul.mubr.bf16.gmra.mrb[0].mxu0 %v608
        %v647 = vpop.f32.mrb[0].mxu0
        %v648 = vadd.f32 0.0, %v647
        %v649 = vpop.f32.mrb[0].mxu0
        %v650 = vpop.f32.mrb[0].mxu0
        %v651 = vpop.f32.mrb[0].mxu0
        %652 = vdwg.mxu0
        %v653 = vsel %vm494, %v648, -inf
        %654 = vmax.xlane.f32.xlu0 %v653
        %v655 = vpop.xlane.xlu0 %654
        %v656 = vsub.f32 %v648, %v655
        %v657 = vmul.f32 %v656, 1.442695
        %v658 = vpow.pop %v657
        %v659 = vsel %vm494, %v658, 0.0
        %660 = vadd.xlane.f32.xlu0 %v659
        %v661 = vpop.xlane.xlu0 %660
        %v662 = vrcp.pop %v661
        %v663 = vmul.f32 %v658, %v662
        %v664 = vpack.c.bf16 %v663, %v663
        %665 = vrot.lane.b32.xlu0 %v490, 56
        %v666 = vpop.permute.xlu0 %665
        %v668 = vsel %vm494, %v664, 0
        %v671 = vsel %vm558, %v666, 0
        %673 = vmatprep.subr.bf16.mxu0 0
        %674 = vmatpush1.bf16.msra.mxu0 %v671
        %675 = vmatprep.subr.bf16.mxu0 0
        %676 = vmatpush1.bf16.msra.mxu0 0
        %677 = vmatprep.subr.bf16.mxu0 0
        %678 = vmatpush1.bf16.msra.mxu0 0
        %679 = vmatprep.subr.bf16.mxu0 0
        %680 = vmatpush1.bf16.msra.mxu0 0
        %681 = vmatprep.subr.bf16.mxu0 0
        %682 = vmatpush1.bf16.msra.mxu0 0
        %683 = vmatprep.subr.bf16.mxu0 0
        %684 = vmatpush1.bf16.msra.mxu0 0
        %685 = vmatprep.subr.bf16.mxu0 0
        %686 = vmatpush1.bf16.msra.mxu0 0
        %687 = vmatprep.subr.bf16.mxu0 0
        %688 = vmatpush1.bf16.msra.mxu0 0
        %689 = vmatprep.subr.bf16.mxu0 0
        %690 = vmatpush1.bf16.msra.mxu0 0
        %691 = vmatprep.subr.bf16.mxu0 0
        %692 = vmatpush1.bf16.msra.mxu0 0
        %693 = vmatprep.subr.bf16.mxu0 0
        %694 = vmatpush1.bf16.msra.mxu0 0
        %695 = vmatprep.subr.bf16.mxu0 0
        %696 = vmatpush1.bf16.msra.mxu0 0
        %697 = vmatprep.subr.bf16.mxu0 0
        %698 = vmatpush1.bf16.msra.mxu0 0
        %699 = vmatprep.subr.bf16.mxu0 0
        %700 = vmatpush1.bf16.msra.mxu0 0
        %701 = vmatprep.subr.bf16.mxu0 0
        %702 = vmatpush1.bf16.msra.mxu0 0
        %703 = vmatprep.subr.bf16.mxu0 0
        %704 = vmatpush1.bf16.msra.mxu0 0
        %705 = vmatprep.mubr.bf16.mxu0 0
        %706 = vmatmul.mubr.bf16.gmra.mrb[0].mxu0 %v668
        %v707 = vpop.f32.mrb[0].mxu0
        %v708 = vadd.f32 0.0, %v707
        %v709 = vpop.f32.mrb[0].mxu0
        %v710 = vpop.f32.mrb[0].mxu0
        %v711 = vpop.f32.mrb[0].mxu0
        %712 = vdwg.mxu0
        %714 = vrot.lane.b32.xlu0 %v708, 8
        %v715 = vpop.permute.xlu0 %714
        %vm717 = vcmask 130112
        %718 = vst.msk [vmem:[#allocation2] sm:$0xff] %vm717, %v715
        %719 = vrot.lane.b32.xlu0 %v490, 112
        %v720 = vpop.permute.xlu0 %719
        %721 = vrot.lane.b32.xlu0 %v490, 80
        %v722 = vpop.permute.xlu0 %721
        %v724 = vsel %vm494, %v720, 0
        %v727 = vsel %vm494, %v722, 0
        %729 = vmatprep.subr.bf16.mxu0 0
        %730 = vmatpush1.bf16.xpose.msra.mxu0 %v727
        %731 = vmatprep.subr.bf16.mxu0 0
        %732 = vmatpush1.bf16.xpose.msra.mxu0 0
        %733 = vmatprep.subr.bf16.mxu0 0
        %734 = vmatpush1.bf16.xpose.msra.mxu0 0
        %735 = vmatprep.subr.bf16.mxu0 0
        %736 = vmatpush1.bf16.xpose.msra.mxu0 0
        %737 = vmatprep.subr.bf16.mxu0 0
        %738 = vmatpush1.bf16.xpose.msra.mxu0 0
        %739 = vmatprep.subr.bf16.mxu0 0
        %740 = vmatpush1.bf16.xpose.msra.mxu0 0
        %741 = vmatprep.subr.bf16.mxu0 0
        %742 = vmatpush1.bf16.xpose.msra.mxu0 0
        %743 = vmatprep.subr.bf16.mxu0 0
        %744 = vmatpush1.bf16.xpose.msra.mxu0 0
        %745 = vmatprep.subr.bf16.mxu0 0
        %746 = vmatpush1.bf16.xpose.msra.mxu0 0
        %747 = vmatprep.subr.bf16.mxu0 0
        %748 = vmatpush1.bf16.xpose.msra.mxu0 0
        %749 = vmatprep.subr.bf16.mxu0 0
        %750 = vmatpush1.bf16.xpose.msra.mxu0 0
        %751 = vmatprep.subr.bf16.mxu0 0
        %752 = vmatpush1.bf16.xpose.msra.mxu0 0
        %753 = vmatprep.subr.bf16.mxu0 0
        %754 = vmatpush1.bf16.xpose.msra.mxu0 0
        %755 = vmatprep.subr.bf16.mxu0 0
        %756 = vmatpush1.bf16.xpose.msra.mxu0 0
        %757 = vmatprep.subr.bf16.mxu0 0
        %758 = vmatpush1.bf16.xpose.msra.mxu0 0
        %759 = vmatprep.subr.bf16.mxu0 0
        %760 = vmatpush1.bf16.xpose.msra.mxu0 0
        %761 = vmatprep.mubr.bf16.mxu0 0
        %762 = vmatmul.mubr.bf16.gmra.mrb[0].mxu0 %v724
        %v763 = vpop.f32.mrb[0].mxu0
        %v764 = vadd.f32 0.0, %v763
        %v765 = vpop.f32.mrb[0].mxu0
        %v766 = vpop.f32.mrb[0].mxu0
        %v767 = vpop.f32.mrb[0].mxu0
        %768 = vdwg.mxu0
        %v769 = vsel %vm494, %v764, -inf
        %770 = vmax.xlane.f32.xlu0 %v769
        %v771 = vpop.xlane.xlu0 %770
        %v772 = vsub.f32 %v764, %v771
        %v773 = vmul.f32 %v772, 1.442695
        %v774 = vpow.pop %v773
        %v775 = vsel %vm494, %v774, 0.0
        %776 = vadd.xlane.f32.xlu0 %v775
        %v777 = vpop.xlane.xlu0 %776
        %v778 = vrcp.pop %v777
        %v779 = vmul.f32 %v774, %v778
        %v780 = vpack.c.bf16 %v779, %v779
        %781 = vrot.lane.b32.xlu0 %v490, 48
        %v782 = vpop.permute.xlu0 %781
        %v784 = vsel %vm494, %v780, 0
        %v787 = vsel %vm558, %v782, 0
        %789 = vmatprep.subr.bf16.mxu0 0
        %790 = vmatpush1.bf16.msra.mxu0 %v787
        %791 = vmatprep.subr.bf16.mxu0 0
        %792 = vmatpush1.bf16.msra.mxu0 0
        %793 = vmatprep.subr.bf16.mxu0 0
        %794 = vmatpush1.bf16.msra.mxu0 0
        %795 = vmatprep.subr.bf16.mxu0 0
        %796 = vmatpush1.bf16.msra.mxu0 0
        %797 = vmatprep.subr.bf16.mxu0 0
        %798 = vmatpush1.bf16.msra.mxu0 0
        %799 = vmatprep.subr.bf16.mxu0 0
        %800 = vmatpush1.bf16.msra.mxu0 0
        %801 = vmatprep.subr.bf16.mxu0 0
        %802 = vmatpush1.bf16.msra.mxu0 0
        %803 = vmatprep.subr.bf16.mxu0 0
        %804 = vmatpush1.bf16.msra.mxu0 0
        %805 = vmatprep.subr.bf16.mxu0 0
        %806 = vmatpush1.bf16.msra.mxu0 0
        %807 = vmatprep.subr.bf16.mxu0 0
        %808 = vmatpush1.bf16.msra.mxu0 0
        %809 = vmatprep.subr.bf16.mxu0 0
        %810 = vmatpush1.bf16.msra.mxu0 0
        %811 = vmatprep.subr.bf16.mxu0 0
        %812 = vmatpush1.bf16.msra.mxu0 0
        %813 = vmatprep.subr.bf16.mxu0 0
        %814 = vmatpush1.bf16.msra.mxu0 0
        %815 = vmatprep.subr.bf16.mxu0 0
        %816 = vmatpush1.bf16.msra.mxu0 0
        %817 = vmatprep.subr.bf16.mxu0 0
        %818 = vmatpush1.bf16.msra.mxu0 0
        %819 = vmatprep.subr.bf16.mxu0 0
        %820 = vmatpush1.bf16.msra.mxu0 0
        %821 = vmatprep.mubr.bf16.mxu0 0
        %822 = vmatmul.mubr.bf16.gmra.mrb[0].mxu0 %v784
        %v823 = vpop.f32.mrb[0].mxu0
        %v824 = vadd.f32 0.0, %v823
        %v825 = vpop.f32.mrb[0].mxu0
        %v826 = vpop.f32.mrb[0].mxu0
        %v827 = vpop.f32.mrb[0].mxu0
        %828 = vdwg.mxu0
        %830 = vrot.lane.b32.xlu0 %v824, 16
        %v831 = vpop.permute.xlu0 %830
        %vm833 = vcmask 195712
        %834 = vst.msk [vmem:[#allocation2] sm:$0xff] %vm833, %v831
        %835 = vrot.lane.b32.xlu0 %v490, 104
        %v836 = vpop.permute.xlu0 %835
        %837 = vrot.lane.b32.xlu0 %v490, 72
        %v838 = vpop.permute.xlu0 %837
        %v840 = vsel %vm494, %v836, 0
        %v843 = vsel %vm494, %v838, 0
        %845 = vmatprep.subr.bf16.mxu0 0
        %846 = vmatpush1.bf16.xpose.msra.mxu0 %v843
        %847 = vmatprep.subr.bf16.mxu0 0
        %848 = vmatpush1.bf16.xpose.msra.mxu0 0
        %849 = vmatprep.subr.bf16.mxu0 0
        %850 = vmatpush1.bf16.xpose.msra.mxu0 0
        %851 = vmatprep.subr.bf16.mxu0 0
        %852 = vmatpush1.bf16.xpose.msra.mxu0 0
        %853 = vmatprep.subr.bf16.mxu0 0
        %854 = vmatpush1.bf16.xpose.msra.mxu0 0
        %855 = vmatprep.subr.bf16.mxu0 0
        %856 = vmatpush1.bf16.xpose.msra.mxu0 0
        %857 = vmatprep.subr.bf16.mxu0 0
        %858 = vmatpush1.bf16.xpose.msra.mxu0 0
        %859 = vmatprep.subr.bf16.mxu0 0
        %860 = vmatpush1.bf16.xpose.msra.mxu0 0
        %861 = vmatprep.subr.bf16.mxu0 0
        %862 = vmatpush1.bf16.xpose.msra.mxu0 0
        %863 = vmatprep.subr.bf16.mxu0 0
        %864 = vmatpush1.bf16.xpose.msra.mxu0 0
        %865 = vmatprep.subr.bf16.mxu0 0
        %866 = vmatpush1.bf16.xpose.msra.mxu0 0
        %867 = vmatprep.subr.bf16.mxu0 0
        %868 = vmatpush1.bf16.xpose.msra.mxu0 0
        %869 = vmatprep.subr.bf16.mxu0 0
        %870 = vmatpush1.bf16.xpose.msra.mxu0 0
        %871 = vmatprep.subr.bf16.mxu0 0
        %872 = vmatpush1.bf16.xpose.msra.mxu0 0
        %873 = vmatprep.subr.bf16.mxu0 0
        %874 = vmatpush1.bf16.xpose.msra.mxu0 0
        %875 = vmatprep.subr.bf16.mxu0 0
        %876 = vmatpush1.bf16.xpose.msra.mxu0 0
        %877 = vmatprep.mubr.bf16.mxu0 0
        %878 = vmatmul.mubr.bf16.gmra.mrb[0].mxu0 %v840
        %v879 = vpop.f32.mrb[0].mxu0
        %v880 = vadd.f32 0.0, %v879
        %v881 = vpop.f32.mrb[0].mxu0
        %v882 = vpop.f32.mrb[0].mxu0
        %v883 = vpop.f32.mrb[0].mxu0
        %884 = vdwg.mxu0
        %v885 = vsel %vm494, %v880, -inf
        %886 = vmax.xlane.f32.xlu0 %v885
        %v887 = vpop.xlane.xlu0 %886
        %v888 = vsub.f32 %v880, %v887
        %v889 = vmul.f32 %v888, 1.442695
        %v890 = vpow.pop %v889
        %v891 = vsel %vm494, %v890, 0.0
        %892 = vadd.xlane.f32.xlu0 %v891
        %v893 = vpop.xlane.xlu0 %892
        %v894 = vrcp.pop %v893
        %v895 = vmul.f32 %v890, %v894
        %v896 = vpack.c.bf16 %v895, %v895
        %897 = vrot.lane.b32.xlu0 %v490, 40
        %v898 = vpop.permute.xlu0 %897
        %v900 = vsel %vm494, %v896, 0
        %v903 = vsel %vm558, %v898, 0
        %905 = vmatprep.subr.bf16.mxu0 0
        %906 = vmatpush1.bf16.msra.mxu0 %v903
        %907 = vmatprep.subr.bf16.mxu0 0
        %908 = vmatpush1.bf16.msra.mxu0 0
        %909 = vmatprep.subr.bf16.mxu0 0
        %910 = vmatpush1.bf16.msra.mxu0 0
        %911 = vmatprep.subr.bf16.mxu0 0
        %912 = vmatpush1.bf16.msra.mxu0 0
        %913 = vmatprep.subr.bf16.mxu0 0
        %914 = vmatpush1.bf16.msra.mxu0 0
        %915 = vmatprep.subr.bf16.mxu0 0
        %916 = vmatpush1.bf16.msra.mxu0 0
        %917 = vmatprep.subr.bf16.mxu0 0
        %918 = vmatpush1.bf16.msra.mxu0 0
        %919 = vmatprep.subr.bf16.mxu0 0
        %920 = vmatpush1.bf16.msra.mxu0 0
        %921 = vmatprep.subr.bf16.mxu0 0
        %922 = vmatpush1.bf16.msra.mxu0 0
        %923 = vmatprep.subr.bf16.mxu0 0
        %924 = vmatpush1.bf16.msra.mxu0 0
        %925 = vmatprep.subr.bf16.mxu0 0
        %926 = vmatpush1.bf16.msra.mxu0 0
        %927 = vmatprep.subr.bf16.mxu0 0
        %928 = vmatpush1.bf16.msra.mxu0 0
        %929 = vmatprep.subr.bf16.mxu0 0
        %930 = vmatpush1.bf16.msra.mxu0 0
        %931 = vmatprep.subr.bf16.mxu0 0
        %932 = vmatpush1.bf16.msra.mxu0 0
        %933 = vmatprep.subr.bf16.mxu0 0
        %934 = vmatpush1.bf16.msra.mxu0 0
        %935 = vmatprep.subr.bf16.mxu0 0
        %936 = vmatpush1.bf16.msra.mxu0 0
        %937 = vmatprep.mubr.bf16.mxu0 0
        %938 = vmatmul.mubr.bf16.gmra.mrb[0].mxu0 %v900
        %v939 = vpop.f32.mrb[0].mxu0
        %v940 = vadd.f32 0.0, %v939
        %v941 = vpop.f32.mrb[0].mxu0
        %v942 = vpop.f32.mrb[0].mxu0
        %v943 = vpop.f32.mrb[0].mxu0
        %944 = vdwg.mxu0
        %946 = vrot.lane.b32.xlu0 %v940, 24
        %v947 = vpop.permute.xlu0 %946
        %vm949 = vcmask 261312
        %950 = vst.msk [vmem:[#allocation2] sm:$0xff] %vm949, %v947
        %v951 = vld [vmem:[#allocation2] sm:$0xff]
        %v952 = vpack.c.bf16 %v951, %v951
        %v953 = vld [vmem:[%s5] sm:$0xf]
        %v954 = vld [vmem:[%s5 + $0x4] sm:$0xf]
        %v955 = vld [vmem:[%s5 + $0x8] sm:$0xf]
        %v956 = vld [vmem:[%s5 + $0xc] sm:$0xf]
        %v957 = vld [vmem:[%s6] sm:$0x1]
        %v959 = vlaneseq
        %v960 = vshrl.u32 %v959, 7
        %v961 = vsub.s32 0, %v960
        %v962 = vrot.slane %v957, %v961
        %v968 = vunpack.c.l.b16 %v953
        %v969 = vunpack.c.l.b16 %v954
        %v970 = vunpack.c.l.b16 %v955
        %v971 = vunpack.c.l.b16 %v956
        %v972 = vpack.c.b16 %v969, %v968
        %v973 = vpack.c.b16 %v971, %v970
        %v977 = vsel %vm394, %v952, 0
        %979 = vmatprep.subr.bf16.mxu0 0
        %980 = vmatpush1.bf16.msra.mxu0 %v972
        %981 = vmatprep.subr.bf16.mxu0 0
        %982 = vmatpush1.bf16.msra.mxu0 %v973
        %983 = vmatprep.subr.bf16.mxu0 0
        %984 = vmatpush1.bf16.msra.mxu0 0
        %985 = vmatprep.subr.bf16.mxu0 0
        %986 = vmatpush1.bf16.msra.mxu0 0
        %987 = vmatprep.subr.bf16.mxu0 0
        %988 = vmatpush1.bf16.msra.mxu0 0
        %989 = vmatprep.subr.bf16.mxu0 0
        %990 = vmatpush1.bf16.msra.mxu0 0
        %991 = vmatprep.subr.bf16.mxu0 0
        %992 = vmatpush1.bf16.msra.mxu0 0
        %993 = vmatprep.subr.bf16.mxu0 0
        %994 = vmatpush1.bf16.msra.mxu0 0
        %995 = vmatprep.subr.bf16.mxu0 0
        %996 = vmatpush1.bf16.msra.mxu0 0
        %997 = vmatprep.subr.bf16.mxu0 0
        %998 = vmatpush1.bf16.msra.mxu0 0
        %999 = vmatprep.subr.bf16.mxu0 0
        %1000 = vmatpush1.bf16.msra.mxu0 0
        %1001 = vmatprep.subr.bf16.mxu0 0
        %1002 = vmatpush1.bf16.msra.mxu0 0
        %1003 = vmatprep.subr.bf16.mxu0 0
        %1004 = vmatpush1.bf16.msra.mxu0 0
        %1005 = vmatprep.subr.bf16.mxu0 0
        %1006 = vmatpush1.bf16.msra.mxu0 0
        %1007 = vmatprep.subr.bf16.mxu0 0
        %1008 = vmatpush1.bf16.msra.mxu0 0
        %1009 = vmatprep.subr.bf16.mxu0 0
        %1010 = vmatpush1.bf16.msra.mxu0 0
        %1011 = vmatprep.mubr.bf16.mxu0 0
        %1012 = vmatmul.mubr.bf16.gmra.mrb[0].mxu0 %v977
        %v1013 = vpop.f32.mrb[0].mxu0
        %v1014 = vadd.f32 %v962, %v1013
        %v1015 = vpop.f32.mrb[0].mxu0
        %v1016 = vpop.f32.mrb[0].mxu0
        %v1017 = vpop.f32.mrb[0].mxu0
        %1018 = vdwg.mxu0
        %v1019 = vadd.f32 %v1014, %v391
        %v1020 = vpack.c.bf16 %v1019, %v1019
        %v1021 = vld [vmem:[#allocation9] sm:$0xf]
        %v1022 = vld [vmem:[#allocation9 + $0x4] sm:$0xf]
        %v1023 = vld [vmem:[#allocation9 + $0x8] sm:$0xf]
        %v1024 = vld [vmem:[#allocation9 + $0xc] sm:$0xf]
        %v1025 = vld [vmem:[%s8] sm:$0x1]
        %v1027 = vlaneseq
        %v1028 = vshrl.u32 %v1027, 7
        %v1029 = vsub.s32 0, %v1028
        %v1030 = vrot.slane %v1025, %v1029
        %v1036 = vunpack.c.l.b16 %v1021
        %v1037 = vunpack.c.l.b16 %v1022
        %v1038 = vunpack.c.l.b16 %v1023
        %v1039 = vunpack.c.l.b16 %v1024
        %v1040 = vpack.c.b16 %v1037, %v1036
        %v1041 = vpack.c.b16 %v1039, %v1038
        %v1045 = vsel %vm394, %v1020, 0
        %1047 = vmatprep.subr.bf16.mxu0 0
        %1048 = vmatpush1.bf16.msra.mxu0 %v1040
        %1049 = vmatprep.subr.bf16.mxu0 0
        %1050 = vmatpush1.bf16.msra.mxu0 %v1041
        %1051 = vmatprep.subr.bf16.mxu0 0
        %1052 = vmatpush1.bf16.msra.mxu0 0
        %1053 = vmatprep.subr.bf16.mxu0 0
        %1054 = vmatpush1.bf16.msra.mxu0 0
        %1055 = vmatprep.subr.bf16.mxu0 0
        %1056 = vmatpush1.bf16.msra.mxu0 0
        %1057 = vmatprep.subr.bf16.mxu0 0
        %1058 = vmatpush1.bf16.msra.mxu0 0
        %1059 = vmatprep.subr.bf16.mxu0 0
        %1060 = vmatpush1.bf16.msra.mxu0 0
        %1061 = vmatprep.subr.bf16.mxu0 0
        %1062 = vmatpush1.bf16.msra.mxu0 0
        %1063 = vmatprep.subr.bf16.mxu0 0
        %1064 = vmatpush1.bf16.msra.mxu0 0
        %1065 = vmatprep.subr.bf16.mxu0 0
        %1066 = vmatpush1.bf16.msra.mxu0 0
        %1067 = vmatprep.subr.bf16.mxu0 0
        %1068 = vmatpush1.bf16.msra.mxu0 0
        %1069 = vmatprep.subr.bf16.mxu0 0
        %1070 = vmatpush1.bf16.msra.mxu0 0
        %1071 = vmatprep.subr.bf16.mxu0 0
        %1072 = vmatpush1.bf16.msra.mxu0 0
        %1073 = vmatprep.subr.bf16.mxu0 0
        %1074 = vmatpush1.bf16.msra.mxu0 0
        %1075 = vmatprep.subr.bf16.mxu0 0
        %1076 = vmatpush1.bf16.msra.mxu0 0
        %1077 = vmatprep.subr.bf16.mxu0 0
        %1078 = vmatpush1.bf16.msra.mxu0 0
        %1079 = vmatprep.mubr.bf16.mxu0 0
        %1080 = vmatmul.mubr.bf16.gmra.mrb[0].mxu0 %v1045
        %v1081 = vpop.f32.mrb[0].mxu0
        %v1082 = vadd.f32 %v1030, %v1081
        %v1083 = vpop.f32.mrb[0].mxu0
        %v1084 = vpop.f32.mrb[0].mxu0
        %v1085 = vpop.f32.mrb[0].mxu0
        %1086 = vdwg.mxu0
        %v1087 = vsel %vm394, %v1082, 0.0
        %1088 = vadd.xlane.f32.xlu0 %v1087
        %v1089 = vpop.xlane.xlu0 %1088
        %v1090 = vmul.f32 %v1089, %v398
        %v1091 = vsub.f32 %v1082, %v1090
        %v1092 = vmul.f32 %v1091, %v1091
        %v1093 = vsel %vm394, %v1092, 0.0
        %1094 = vadd.xlane.f32.xlu0 %v1093
        %v1095 = vpop.xlane.xlu0 %1094
        %v1096 = vmul.f32 %v1095, %v398
        %v1097 = vadd.f32 %v1096, 1e-05
        %v1098 = vrsqrt.pop %v1097
        %v1099 = vmul.f32 %v1091, %v1098
        %v1100 = vmul.f32 %v1099, %v413
        %v1101 = vadd.f32 %v1100, %v420
        %v1102 = vadd.f32 %v1101, %v1019
        %1103 = vst.msk [vmem:[%s389] sm:$0xff] %vm394, %v1102
        %s1104 = sand.u32 %s230, 1
        %s1105 = scalar_lea.sflag [#allocation5], %s1104
        %s1106 = sand.u32 %s230, 1
        %s1107 = smul.addr %s1106, 8
        %s1108 = scalar_lea.vmem [#allocation11], %s1107
        // Predicated region
        $region73: #{tpu_custom_call.1} parent=55 // pred_check
          %p1109 = pneg %p240
        $region74: #{tpu_custom_call.1} parent=55 // pred_check_branch
          %1111 = sbr.rel (%p1109) target = $region76
        $region75: #{tpu_custom_call.1} parent=55 // pred_region
          %s1113 = ssub.s32 128, 128
          %1114 = vsyncadd %s1105, %s1113
          %s1115 = smul.addr %s28, 128
          %s1116 = scalar_lea.hbm %s9, %s1115
          %s1118 = sshll.u32 %s1108, 4
          %s1119 = int_to_ptr.vmem [resolvable:$true] %s1118
          %1121 = dma.vmem_to_hbm [thread:$0]  %s1119, 128, %s1116, %s1105
        $region76: #{tpu_custom_call.1} parent=55 // pred_fallthru
          _
      $region56: #{tpu_custom_call.1} parent=5 // pred_fallthru
        _
      %p1122 = scmp.le.s32.totalorder 2, %s23
      // Predicated region
      $region77: #{tpu_custom_call.1} parent=5 // pred_check
        %p1123 = pneg %p1122
      $region78: #{tpu_custom_call.1} parent=5 // pred_check_branch
        %1125 = sbr.rel (%p1123) target = $region80
      $region79: #{tpu_custom_call.1} parent=5 // pred_region
        %s1126 = ssub.s32 %s23, 2
        // Predicated region
        $region81: #{tpu_custom_call.1} parent=79 // pred_check
          %p1127 = pneg %p246
        $region82: #{tpu_custom_call.1} parent=79 // pred_check_branch
          %1129 = sbr.rel (%p1127) target = $region84
        $region83: #{tpu_custom_call.1} parent=79 // pred_region
          %s1130 = sand.u32 %s231, 1
          %s1131 = scalar_lea.sflag [#allocation5], %s1130
          %s1132 = sand.u32 %s231, 1
          %s1133 = smul.addr %s1132, 8
          %s1134 = scalar_lea.vmem [#allocation11], %s1133
          %1135 = dma.done %s1131, 128
        $region84: #{tpu_custom_call.1} parent=79 // pred_fallthru
          _
      $region80: #{tpu_custom_call.1} parent=5 // pred_fallthru
        _
    $region6: #{tpu_custom_call.1} parent=1 // loop_footer
      %s27 = sadd.s32 1, %s23
    $region7: #{tpu_custom_call.1} parent=1 // loop_footer_branch
      %22 = sbr.rel target = $region3
    $region8: #{tpu_custom_call.1} parent=1 // loop_exit
      _
    %1136 = vsyncpa [#allocation4], 1
    %s1137 = scalar_lea.sflag [#allocation4], 1
    %1138 = vsyncpa %s1137, 1
    %1139 = vsyncpa [#allocation7], 1
    %1140 = vsyncpa [#allocation10], 1
    %1141 = vsyncpa [#allocation5], 1
    %s1142 = scalar_lea.sflag [#allocation5], 1
    %1143 = vsyncpa %s1142, 1

</llo_original>
